<compile_context>
chip_gen: v6e
topology: v6e:2x2x1
jax: 0.10.0
libtpu: 0.0.40
codegen_flags: <defaults>
</compile_context>

<pallas_src>
import numpy as np
import jax
import jax.numpy as jnp
from jax.experimental import pallas as pl
from jax.experimental.pallas import tpu as pltpu

LATENT_DIMS = 32


# ----------------------------- fused kernel --------------------------------

def _make_fused_kernel(plan, latent_dims):
    """plan: static per-layer descriptors. Ref order: x, eps,
       [S?, M, bias] per layer, out."""

    def kernel(*refs):
        x_ref, eps_ref = refs[0], refs[1]
        out_ref = refs[-1]
        params = refs[2:-1]
        pos = 0
        x = x_ref[...]                                   # bf16 (B*16, W*C)
        y = None
        for spec in plan:
            if spec["has_s"]:
                s_ref = params[pos]; pos += 1
                m_ref = params[pos]; pos += 1
                b_ref = params[pos]; pos += 1
                acc = None
                for t in range(spec["taps"]):
                    # 0/1 row selection on the MXU (replaces strided gather);
                    # selection is exact, so the bf16 recast is lossless.
                    part = jnp.dot(s_ref[t], x,
                                   preferred_element_type=jnp.float32
                                   ).astype(jnp.bfloat16)
                    d = jnp.dot(part, m_ref[t],
                                preferred_element_type=jnp.float32)
                    acc = d if acc is None else acc + d
                y = acc + b_ref[...]
            else:
                m_ref = params[pos]; pos += 1
                b_ref = params[pos]; pos += 1
                y = jnp.dot(x, m_ref[...],
                            preferred_element_type=jnp.float32) + b_ref[...]
            if spec["act"] == "leaky":
                y = jnp.where(y > 0, y, 0.01 * y)        # nn.LeakyReLU default
            elif spec["act"] == "sigmoid":
                # exp + reciprocal both on the EUP slot.
                y = pl.reciprocal(1.0 + jnp.exp(-y), approx=True)
            if spec["reparam"]:
                mu = y[:, :latent_dims]
                log_sigma = y[:, latent_dims:]
                y = mu + jnp.exp(log_sigma) * eps_ref[...]
            x = y.astype(jnp.bfloat16)
        out_ref[...] = y.astype(out_ref.dtype)

    return kernel


# ------------------- host-side one-time operator building ------------------

def _np(a):
    return np.asarray(jax.device_get(a), dtype=np.float32)


def _conv_ops(w, b, H, W, stride, pad, batch):
    """PyTorch Conv2d (w:(Co,Ci,kh,kw)) -> per-tap row-selection + column ops."""
    Co, Ci, kh, kw = w.shape
    Ho = (H + 2 * pad - kh) // stride + 1
    Wo = (W + 2 * pad - kw) // stride + 1
    S = np.zeros((kh, Ho, H), np.float32)
    M = np.zeros((kh, W * Ci, Wo * Co), np.float32)
    for di in range(kh):
        for ho in range(Ho):
            r = stride * ho - pad + di
            if 0 <= r < H:
                S[di, ho, r] = 1.0
        for wo in range(Wo):
            for dj in range(kw):
                wc = stride * wo - pad + dj
                if 0 <= wc < W:
                    M[di, wc * Ci:(wc + 1) * Ci,
                      wo * Co:(wo + 1) * Co] += w[:, :, di, dj].T
    S_full = np.stack([np.kron(np.eye(batch, dtype=np.float32), S[t])
                       for t in range(kh)])
    bias = np.tile(b, Wo)[None, :]                       # row-constant -> (1,N)
    return S_full, M, bias, Ho, Wo, Co


def _deconv_ops(w, b, H, W, stride, pad, batch):
    """PyTorch ConvTranspose2d (w:(Ci,Co,kh,kw)); no zero-inserted dilation."""
    Ci, Co, kh, kw = w.shape
    Ho = (H - 1) * stride - 2 * pad + kh
    Wo = (W - 1) * stride - 2 * pad + kw
    S = np.zeros((kh, Ho, H), np.float32)
    M = np.zeros((kh, W * Ci, Wo * Co), np.float32)
    for ky in range(kh):
        for i in range(H):
            y = stride * i - pad + ky
            if 0 <= y < Ho:
                S[ky, y, i] = 1.0
        for j in range(W):
            for kx in range(kw):
                xo = stride * j - pad + kx
                if 0 <= xo < Wo:
                    M[ky, j * Ci:(j + 1) * Ci,
                      xo * Co:(xo + 1) * Co] += w[:, :, ky, kx]
    S_full = np.stack([np.kron(np.eye(batch, dtype=np.float32), S[t])
                       for t in range(kh)])
    bias = np.tile(b, Wo)[None, :]                       # row-constant -> (1,N)
    return S_full, M, bias, Ho, Wo, Co


def _flatten_fc_ops(w_fc, b_fc, Hc, Wc, Cc, batch):
    """torch.flatten(NCHW, 1) + Linear, acting on (b*h, w*c) slabs."""
    Dout = w_fc.shape[1]
    S = np.zeros((Hc, batch, batch * Hc), np.float32)
    M = np.zeros((Hc, Wc * Cc, Dout), np.float32)
    for h in range(Hc):
        for bb in range(batch):
            S[h, bb, bb * Hc + h] = 1.0
        for w_ in range(Wc):
            for c in range(Cc):
                M[h, w_ * Cc + c, :] = w_fc[c * Hc * Wc + h * Wc + w_, :]
    bias = b_fc[None, :]
    return S, M, bias


def _fc_unflatten_ops(w_fc, b_fc, Hc, Wc, Cc, batch):
    """Linear + .reshape(B, C, H, W), emitted directly as (b*h, w*c) slabs."""
    Din = w_fc.shape[0]
    S = np.zeros((Hc, batch * Hc, batch), np.float32)
    M = np.zeros((Hc, Din, Wc * Cc), np.float32)
    bias = np.zeros((batch * Hc, Wc * Cc), np.float32)   # row-varying bias
    for h in range(Hc):
        for bb in range(batch):
            S[h, bb * Hc + h, bb] = 1.0
        for w_ in range(Wc):
            for c in range(Cc):
                M[h, :, w_ * Cc + c] = w_fc[:, c * Hc * Wc + h * Wc + w_]
                bias[h::Hc, w_ * Cc + c] = b_fc[c * Hc * Wc + h * Wc + w_]
    return S, M, bias


def prepare_kernel_params(params, batch, latent_dims=LATENT_DIMS):
    """One-time host prep: densify conv/deconv layers into per-tap (S_t, M_t)
       operator pairs, permute FC weights into the kernel's lane-dense
       (rows=b*h, lanes=w*c) layout, merge the mu and log_sigma heads.
       Operators are cast to bf16 (biases stay f32)."""
    p = {k: _np(v) for k, v in params.items()}
    plan, flat = [], []

    def add(S, M, bias, act, reparam=False):
        has_s = S is not None
        if has_s:
            flat.append(jnp.asarray(S, jnp.bfloat16))
        flat.append(jnp.asarray(M, jnp.bfloat16))
        flat.append(jnp.asarray(bias, jnp.float32))
        plan.append(dict(has_s=has_s, taps=(S.shape[0] if has_s else 1),
                         act=act, reparam=reparam))

    # encoder convs: (16,16,4) -> (8,8,16) -> (4,4,32)
    S, M, b, H1, W1, C1 = _conv_ops(p["conv1_w"], p["conv1_b"], 16, 16, 2, 1, batch)
    add(S, M, b, "leaky")
    S, M, b, H2, W2, C2 = _conv_ops(p["conv2_w"], p["conv2_b"], H1, W1, 2, 1, batch)
    add(S, M, b, "leaky")
    # flatten + enc_fc
    S, M, b = _flatten_fc_ops(p["enc_fc_w"], p["enc_fc_b"], H2, W2, C2, batch)
    add(S, M, b, "leaky")
    # merged mu || log_sigma heads + in-kernel reparameterization
    M = np.concatenate([p["mu_w"], p["sig_w"]], axis=1)
    b = np.concatenate([p["mu_b"], p["sig_b"]])[None, :]
    add(None, M, b, "none", reparam=True)
    # decoder FCs
    add(None, p["dec_fc1_w"], p["dec_fc1_b"][None, :], "leaky")
    S, M, b = _fc_unflatten_ops(p["dec_fc2_w"], p["dec_fc2_b"], H2, W2, C2, batch)
    add(S, M, b, "leaky")
    # decoder transposed convs: (4,4,32) -> (8,8,16) -> (16,16,4)
    S, M, b, H3, W3, C3 = _deconv_ops(p["deconv1_w"], p["deconv1_b"], H2, W2, 2, 1, batch)
    add(S, M, b, "leaky")
    S, M, b, H4, W4, C4 = _deconv_ops(p["deconv2_w"], p["deconv2_b"], H3, W3, 2, 1, batch)
    add(S, M, b, "sigmoid")

    return plan, flat, (H4, W4, C4)


# -------------------------------- forward ----------------------------------

def make_vae_forward(plan, out_hwc, latent_dims=LATENT_DIMS):
    H4, W4, C4 = out_hwc

    def fwd(x, eps, flat_params):
        B, C, H, W = x.shape
        # NCHW -> lane-dense (B*H, W*C) slab, once at entry.
        x2d = x.transpose(0, 2, 3, 1).reshape(B * H, W * C).astype(jnp.bfloat16)
        n_in = 2 + len(flat_params)
        out2d = pl.pallas_call(
            _make_fused_kernel(plan, latent_dims),
            out_shape=jax.ShapeDtypeStruct((B * H4, W4 * C4), jnp.float32),
            in_specs=[pl.BlockSpec(memory_space=pltpu.MemorySpace.VMEM)] * n_in,
            out_specs=pl.BlockSpec(memory_space=pltpu.MemorySpace.VMEM),
            compiler_params=pltpu.CompilerParams(
                vmem_limit_bytes=32 * 1024 * 1024),
        )(x2d, eps.astype(jnp.float32), *flat_params)
        # (B*H, W*C) -> NCHW once at exit.
        return out2d.reshape(B, H4, W4, C4).transpose(0, 3, 1, 2)

    return fwd


# ------------------------------- parameters --------------------------------

def init_params(key, latent_dims=LATENT_DIMS):
    ks = jax.random.split(key, 16)
    n = lambda k, shape, s=0.1: (s * jax.random.normal(k, shape)).astype(jnp.float32)
    return {
        # encoder
        "conv1_w": n(ks[0], (16, 4, 3, 3)), "conv1_b": n(ks[1], (16,)),
        "conv2_w": n(ks[2], (32, 16, 3, 3)), "conv2_b": n(ks[3], (32,)),
        "enc_fc_w": n(ks[4], (512, 128)), "enc_fc_b": n(ks[5], (128,)),
        "mu_w": n(ks[6], (128, latent_dims)), "mu_b": n(ks[7], (latent_dims,)),
        "sig_w": n(ks[8], (128, latent_dims)), "sig_b": n(ks[9], (latent_dims,)),
        # decoder
        "dec_fc1_w": n(ks[10], (latent_dims, 128)), "dec_fc1_b": n(ks[11], (128,)),
        "dec_fc2_w": n(ks[12], (128, 512)), "dec_fc2_b": n(ks[13], (512,)),
        "deconv1_w": n(ks[14], (32, 16, 4, 4)), "deconv1_b": jnp.zeros((16,), jnp.float32),
        "deconv2_w": n(ks[15], (16, 4, 4, 4)), "deconv2_b": jnp.zeros((4,), jnp.float32),
    }


if __name__ == "__main__":
    B = 2
    root = jax.random.PRNGKey(0)
    k_x, k_p, k_eps = jax.random.split(root, 3)
    x = jax.random.uniform(k_x, (B, 4, 16, 16), dtype=jnp.float32)
    params = init_params(k_p, latent_dims=LATENT_DIMS)
    # deterministic stand-in for torch.distributions.Normal(0,1).sample(mu.shape)
    eps = jax.random.normal(k_eps, (B, LATENT_DIMS), dtype=jnp.float32)

    plan, flat_params, out_hwc = prepare_kernel_params(params, B)
    fwd = jax.jit(make_vae_forward(plan, out_hwc))
    out = fwd(x, eps, flat_params)
    jax.block_until_ready(out)
    assert out.shape == (B, 4, 16, 16) and out.dtype == jnp.float32
    assert bool(jnp.all(jnp.isfinite(out)))
    print("KERNEL_OK")
</pallas_src>

<mosaic_0001>
module attributes {stable_mosaic.version = 11 : i64} {
  func.func @kernel(%arg0: memref<32x64xbf16, #tpu.memory_space<vmem>>, %arg1: memref<2x32xf32, #tpu.memory_space<vmem>>, %arg2: memref<3x16x32xbf16, #tpu.memory_space<vmem>>, %arg3: memref<3x64x128xbf16, #tpu.memory_space<vmem>>, %arg4: memref<1x128xf32, #tpu.memory_space<vmem>>, %arg5: memref<3x8x16xbf16, #tpu.memory_space<vmem>>, %arg6: memref<3x128x128xbf16, #tpu.memory_space<vmem>>, %arg7: memref<1x128xf32, #tpu.memory_space<vmem>>, %arg8: memref<4x2x8xbf16, #tpu.memory_space<vmem>>, %arg9: memref<4x128x128xbf16, #tpu.memory_space<vmem>>, %arg10: memref<1x128xf32, #tpu.memory_space<vmem>>, %arg11: memref<128x64xbf16, #tpu.memory_space<vmem>>, %arg12: memref<1x64xf32, #tpu.memory_space<vmem>>, %arg13: memref<32x128xbf16, #tpu.memory_space<vmem>>, %arg14: memref<1x128xf32, #tpu.memory_space<vmem>>, %arg15: memref<4x8x2xbf16, #tpu.memory_space<vmem>>, %arg16: memref<4x128x128xbf16, #tpu.memory_space<vmem>>, %arg17: memref<8x128xf32, #tpu.memory_space<vmem>>, %arg18: memref<4x16x8xbf16, #tpu.memory_space<vmem>>, %arg19: memref<4x128x128xbf16, #tpu.memory_space<vmem>>, %arg20: memref<1x128xf32, #tpu.memory_space<vmem>>, %arg21: memref<4x32x16xbf16, #tpu.memory_space<vmem>>, %arg22: memref<4x128x64xbf16, #tpu.memory_space<vmem>>, %arg23: memref<1x64xf32, #tpu.memory_space<vmem>>, %arg24: memref<32x64xf32, #tpu.memory_space<vmem>>) attributes {dimension_semantics = [], scalar_prefetch = 0 : i64, scratch_operands = 0 : i64, tpu.core_type = #tpu.core_type<tc>} {
    %c0 = arith.constant 0 : index
    %c0_0 = arith.constant 0 : index
    %0 = vector.load %arg0[%c0, %c0_0] : memref<32x64xbf16, #tpu.memory_space<vmem>>, vector<32x64xbf16>
    %c0_1 = arith.constant 0 : index
    %c0_2 = arith.constant 0 : index
    %c0_3 = arith.constant 0 : index
    %1 = vector.load %arg2[%c0_1, %c0_2, %c0_3] : memref<3x16x32xbf16, #tpu.memory_space<vmem>>, vector<1x16x32xbf16>
    %2 = vector.shape_cast %1 : vector<1x16x32xbf16> to vector<16x32xbf16>
    %cst = arith.constant dense<0.000000e+00> : vector<16x64xf32>
    %3 = tpu.matmul %2, %0, %cst {dimension_numbers = #tpu.dot_dimension_numbers<[1], [0], [0], [1], [0, 0, 1, 1], [], []>} : vector<16x32xbf16>, vector<32x64xbf16>, vector<16x64xf32> -> vector<16x64xf32>
    %4 = arith.truncf %3 : vector<16x64xf32> to vector<16x64xbf16>
    %c0_4 = arith.constant 0 : index
    %c0_5 = arith.constant 0 : index
    %c0_6 = arith.constant 0 : index
    %5 = vector.load %arg3[%c0_4, %c0_5, %c0_6] : memref<3x64x128xbf16, #tpu.memory_space<vmem>>, vector<1x64x128xbf16>
    %6 = vector.shape_cast %5 : vector<1x64x128xbf16> to vector<64x128xbf16>
    %cst_7 = arith.constant dense<0.000000e+00> : vector<16x128xf32>
    %7 = tpu.matmul %4, %6, %cst_7 {dimension_numbers = #tpu.dot_dimension_numbers<[1], [0], [0], [1], [0, 0, 1, 1], [], []>} : vector<16x64xbf16>, vector<64x128xbf16>, vector<16x128xf32> -> vector<16x128xf32>
    %c1 = arith.constant 1 : index
    %c0_8 = arith.constant 0 : index
    %c0_9 = arith.constant 0 : index
    %8 = vector.load %arg2[%c1, %c0_8, %c0_9] : memref<3x16x32xbf16, #tpu.memory_space<vmem>>, vector<1x16x32xbf16>
    %9 = vector.shape_cast %8 : vector<1x16x32xbf16> to vector<16x32xbf16>
    %cst_10 = arith.constant dense<0.000000e+00> : vector<16x64xf32>
    %10 = tpu.matmul %9, %0, %cst_10 {dimension_numbers = #tpu.dot_dimension_numbers<[1], [0], [0], [1], [0, 0, 1, 1], [], []>} : vector<16x32xbf16>, vector<32x64xbf16>, vector<16x64xf32> -> vector<16x64xf32>
    %11 = arith.truncf %10 : vector<16x64xf32> to vector<16x64xbf16>
    %c1_11 = arith.constant 1 : index
    %c0_12 = arith.constant 0 : index
    %c0_13 = arith.constant 0 : index
    %12 = vector.load %arg3[%c1_11, %c0_12, %c0_13] : memref<3x64x128xbf16, #tpu.memory_space<vmem>>, vector<1x64x128xbf16>
    %13 = vector.shape_cast %12 : vector<1x64x128xbf16> to vector<64x128xbf16>
    %cst_14 = arith.constant dense<0.000000e+00> : vector<16x128xf32>
    %14 = tpu.matmul %11, %13, %cst_14 {dimension_numbers = #tpu.dot_dimension_numbers<[1], [0], [0], [1], [0, 0, 1, 1], [], []>} : vector<16x64xbf16>, vector<64x128xbf16>, vector<16x128xf32> -> vector<16x128xf32>
    %15 = arith.addf %7, %14 : vector<16x128xf32>
    %c2 = arith.constant 2 : index
    %c0_15 = arith.constant 0 : index
    %c0_16 = arith.constant 0 : index
    %16 = vector.load %arg2[%c2, %c0_15, %c0_16] : memref<3x16x32xbf16, #tpu.memory_space<vmem>>, vector<1x16x32xbf16>
    %17 = vector.shape_cast %16 : vector<1x16x32xbf16> to vector<16x32xbf16>
    %cst_17 = arith.constant dense<0.000000e+00> : vector<16x64xf32>
    %18 = tpu.matmul %17, %0, %cst_17 {dimension_numbers = #tpu.dot_dimension_numbers<[1], [0], [0], [1], [0, 0, 1, 1], [], []>} : vector<16x32xbf16>, vector<32x64xbf16>, vector<16x64xf32> -> vector<16x64xf32>
    %19 = arith.truncf %18 : vector<16x64xf32> to vector<16x64xbf16>
    %c2_18 = arith.constant 2 : index
    %c0_19 = arith.constant 0 : index
    %c0_20 = arith.constant 0 : index
    %20 = vector.load %arg3[%c2_18, %c0_19, %c0_20] : memref<3x64x128xbf16, #tpu.memory_space<vmem>>, vector<1x64x128xbf16>
    %21 = vector.shape_cast %20 : vector<1x64x128xbf16> to vector<64x128xbf16>
    %cst_21 = arith.constant dense<0.000000e+00> : vector<16x128xf32>
    %22 = tpu.matmul %19, %21, %cst_21 {dimension_numbers = #tpu.dot_dimension_numbers<[1], [0], [0], [1], [0, 0, 1, 1], [], []>} : vector<16x64xbf16>, vector<64x128xbf16>, vector<16x128xf32> -> vector<16x128xf32>
    %23 = arith.addf %15, %22 : vector<16x128xf32>
    %c0_22 = arith.constant 0 : index
    %c0_23 = arith.constant 0 : index
    %24 = vector.load %arg4[%c0_22, %c0_23] : memref<1x128xf32, #tpu.memory_space<vmem>>, vector<1x128xf32>
    %25 = vector.broadcast %24 : vector<1x128xf32> to vector<16x128xf32>
    %26 = arith.addf %23, %25 : vector<16x128xf32>
    %cst_24 = arith.constant 0.000000e+00 : f32
    %27 = vector.broadcast %cst_24 : f32 to vector<16x128xf32>
    %28 = arith.cmpf ogt, %26, %27 : vector<16x128xf32>
    %cst_25 = arith.constant 0.00999999977 : f32
    %29 = vector.broadcast %cst_25 : f32 to vector<16x128xf32>
    %30 = arith.mulf %29, %26 : vector<16x128xf32>
    %31 = arith.select %28, %26, %30 : vector<16x128xi1>, vector<16x128xf32>
    %32 = arith.truncf %31 : vector<16x128xf32> to vector<16x128xbf16>
    %c0_26 = arith.constant 0 : index
    %c0_27 = arith.constant 0 : index
    %c0_28 = arith.constant 0 : index
    %33 = vector.load %arg5[%c0_26, %c0_27, %c0_28] : memref<3x8x16xbf16, #tpu.memory_space<vmem>>, vector<1x8x16xbf16>
    %34 = vector.shape_cast %33 : vector<1x8x16xbf16> to vector<8x16xbf16>
    %cst_29 = arith.constant dense<0.000000e+00> : vector<8x128xf32>
    %35 = tpu.matmul %34, %32, %cst_29 {dimension_numbers = #tpu.dot_dimension_numbers<[1], [0], [0], [1], [0, 0, 1, 1], [], []>} : vector<8x16xbf16>, vector<16x128xbf16>, vector<8x128xf32> -> vector<8x128xf32>
    %36 = arith.truncf %35 : vector<8x128xf32> to vector<8x128xbf16>
    %c0_30 = arith.constant 0 : index
    %c0_31 = arith.constant 0 : index
    %c0_32 = arith.constant 0 : index
    %37 = vector.load %arg6[%c0_30, %c0_31, %c0_32] : memref<3x128x128xbf16, #tpu.memory_space<vmem>>, vector<1x128x128xbf16>
    %38 = vector.shape_cast %37 : vector<1x128x128xbf16> to vector<128x128xbf16>
    %cst_33 = arith.constant dense<0.000000e+00> : vector<8x128xf32>
    %39 = tpu.matmul %36, %38, %cst_33 {dimension_numbers = #tpu.dot_dimension_numbers<[1], [0], [0], [1], [0, 0, 1, 1], [], []>} : vector<8x128xbf16>, vector<128x128xbf16>, vector<8x128xf32> -> vector<8x128xf32>
    %c1_34 = arith.constant 1 : index
    %c0_35 = arith.constant 0 : index
    %c0_36 = arith.constant 0 : index
    %40 = vector.load %arg5[%c1_34, %c0_35, %c0_36] : memref<3x8x16xbf16, #tpu.memory_space<vmem>>, vector<1x8x16xbf16>
    %41 = vector.shape_cast %40 : vector<1x8x16xbf16> to vector<8x16xbf16>
    %cst_37 = arith.constant dense<0.000000e+00> : vector<8x128xf32>
    %42 = tpu.matmul %41, %32, %cst_37 {dimension_numbers = #tpu.dot_dimension_numbers<[1], [0], [0], [1], [0, 0, 1, 1], [], []>} : vector<8x16xbf16>, vector<16x128xbf16>, vector<8x128xf32> -> vector<8x128xf32>
    %43 = arith.truncf %42 : vector<8x128xf32> to vector<8x128xbf16>
    %c1_38 = arith.constant 1 : index
    %c0_39 = arith.constant 0 : index
    %c0_40 = arith.constant 0 : index
    %44 = vector.load %arg6[%c1_38, %c0_39, %c0_40] : memref<3x128x128xbf16, #tpu.memory_space<vmem>>, vector<1x128x128xbf16>
    %45 = vector.shape_cast %44 : vector<1x128x128xbf16> to vector<128x128xbf16>
    %cst_41 = arith.constant dense<0.000000e+00> : vector<8x128xf32>
    %46 = tpu.matmul %43, %45, %cst_41 {dimension_numbers = #tpu.dot_dimension_numbers<[1], [0], [0], [1], [0, 0, 1, 1], [], []>} : vector<8x128xbf16>, vector<128x128xbf16>, vector<8x128xf32> -> vector<8x128xf32>
    %47 = arith.addf %39, %46 : vector<8x128xf32>
    %c2_42 = arith.constant 2 : index
    %c0_43 = arith.constant 0 : index
    %c0_44 = arith.constant 0 : index
    %48 = vector.load %arg5[%c2_42, %c0_43, %c0_44] : memref<3x8x16xbf16, #tpu.memory_space<vmem>>, vector<1x8x16xbf16>
    %49 = vector.shape_cast %48 : vector<1x8x16xbf16> to vector<8x16xbf16>
    %cst_45 = arith.constant dense<0.000000e+00> : vector<8x128xf32>
    %50 = tpu.matmul %49, %32, %cst_45 {dimension_numbers = #tpu.dot_dimension_numbers<[1], [0], [0], [1], [0, 0, 1, 1], [], []>} : vector<8x16xbf16>, vector<16x128xbf16>, vector<8x128xf32> -> vector<8x128xf32>
    %51 = arith.truncf %50 : vector<8x128xf32> to vector<8x128xbf16>
    %c2_46 = arith.constant 2 : index
    %c0_47 = arith.constant 0 : index
    %c0_48 = arith.constant 0 : index
    %52 = vector.load %arg6[%c2_46, %c0_47, %c0_48] : memref<3x128x128xbf16, #tpu.memory_space<vmem>>, vector<1x128x128xbf16>
    %53 = vector.shape_cast %52 : vector<1x128x128xbf16> to vector<128x128xbf16>
    %cst_49 = arith.constant dense<0.000000e+00> : vector<8x128xf32>
    %54 = tpu.matmul %51, %53, %cst_49 {dimension_numbers = #tpu.dot_dimension_numbers<[1], [0], [0], [1], [0, 0, 1, 1], [], []>} : vector<8x128xbf16>, vector<128x128xbf16>, vector<8x128xf32> -> vector<8x128xf32>
    %55 = arith.addf %47, %54 : vector<8x128xf32>
    %c0_50 = arith.constant 0 : index
    %c0_51 = arith.constant 0 : index
    %56 = vector.load %arg7[%c0_50, %c0_51] : memref<1x128xf32, #tpu.memory_space<vmem>>, vector<1x128xf32>
    %57 = vector.broadcast %56 : vector<1x128xf32> to vector<8x128xf32>
    %58 = arith.addf %55, %57 : vector<8x128xf32>
    %cst_52 = arith.constant 0.000000e+00 : f32
    %59 = vector.broadcast %cst_52 : f32 to vector<8x128xf32>
    %60 = arith.cmpf ogt, %58, %59 : vector<8x128xf32>
    %cst_53 = arith.constant 0.00999999977 : f32
    %61 = vector.broadcast %cst_53 : f32 to vector<8x128xf32>
    %62 = arith.mulf %61, %58 : vector<8x128xf32>
    %63 = arith.select %60, %58, %62 : vector<8x128xi1>, vector<8x128xf32>
    %64 = arith.truncf %63 : vector<8x128xf32> to vector<8x128xbf16>
    %c0_54 = arith.constant 0 : index
    %c0_55 = arith.constant 0 : index
    %c0_56 = arith.constant 0 : index
    %65 = vector.load %arg8[%c0_54, %c0_55, %c0_56] : memref<4x2x8xbf16, #tpu.memory_space<vmem>>, vector<1x2x8xbf16>
    %66 = vector.shape_cast %65 : vector<1x2x8xbf16> to vector<2x8xbf16>
    %cst_57 = arith.constant dense<0.000000e+00> : vector<2x128xf32>
    %67 = tpu.matmul %66, %64, %cst_57 {dimension_numbers = #tpu.dot_dimension_numbers<[1], [0], [0], [1], [0, 0, 1, 1], [], []>} : vector<2x8xbf16>, vector<8x128xbf16>, vector<2x128xf32> -> vector<2x128xf32>
    %68 = arith.truncf %67 : vector<2x128xf32> to vector<2x128xbf16>
    %c0_58 = arith.constant 0 : index
    %c0_59 = arith.constant 0 : index
    %c0_60 = arith.constant 0 : index
    %69 = vector.load %arg9[%c0_58, %c0_59, %c0_60] : memref<4x128x128xbf16, #tpu.memory_space<vmem>>, vector<1x128x128xbf16>
    %70 = vector.shape_cast %69 : vector<1x128x128xbf16> to vector<128x128xbf16>
    %cst_61 = arith.constant dense<0.000000e+00> : vector<2x128xf32>
    %71 = tpu.matmul %68, %70, %cst_61 {dimension_numbers = #tpu.dot_dimension_numbers<[1], [0], [0], [1], [0, 0, 1, 1], [], []>} : vector<2x128xbf16>, vector<128x128xbf16>, vector<2x128xf32> -> vector<2x128xf32>
    %c1_62 = arith.constant 1 : index
    %c0_63 = arith.constant 0 : index
    %c0_64 = arith.constant 0 : index
    %72 = vector.load %arg8[%c1_62, %c0_63, %c0_64] : memref<4x2x8xbf16, #tpu.memory_space<vmem>>, vector<1x2x8xbf16>
    %73 = vector.shape_cast %72 : vector<1x2x8xbf16> to vector<2x8xbf16>
    %cst_65 = arith.constant dense<0.000000e+00> : vector<2x128xf32>
    %74 = tpu.matmul %73, %64, %cst_65 {dimension_numbers = #tpu.dot_dimension_numbers<[1], [0], [0], [1], [0, 0, 1, 1], [], []>} : vector<2x8xbf16>, vector<8x128xbf16>, vector<2x128xf32> -> vector<2x128xf32>
    %75 = arith.truncf %74 : vector<2x128xf32> to vector<2x128xbf16>
    %c1_66 = arith.constant 1 : index
    %c0_67 = arith.constant 0 : index
    %c0_68 = arith.constant 0 : index
    %76 = vector.load %arg9[%c1_66, %c0_67, %c0_68] : memref<4x128x128xbf16, #tpu.memory_space<vmem>>, vector<1x128x128xbf16>
    %77 = vector.shape_cast %76 : vector<1x128x128xbf16> to vector<128x128xbf16>
    %cst_69 = arith.constant dense<0.000000e+00> : vector<2x128xf32>
    %78 = tpu.matmul %75, %77, %cst_69 {dimension_numbers = #tpu.dot_dimension_numbers<[1], [0], [0], [1], [0, 0, 1, 1], [], []>} : vector<2x128xbf16>, vector<128x128xbf16>, vector<2x128xf32> -> vector<2x128xf32>
    %79 = arith.addf %71, %78 : vector<2x128xf32>
    %c2_70 = arith.constant 2 : index
    %c0_71 = arith.constant 0 : index
    %c0_72 = arith.constant 0 : index
    %80 = vector.load %arg8[%c2_70, %c0_71, %c0_72] : memref<4x2x8xbf16, #tpu.memory_space<vmem>>, vector<1x2x8xbf16>
    %81 = vector.shape_cast %80 : vector<1x2x8xbf16> to vector<2x8xbf16>
    %cst_73 = arith.constant dense<0.000000e+00> : vector<2x128xf32>
    %82 = tpu.matmul %81, %64, %cst_73 {dimension_numbers = #tpu.dot_dimension_numbers<[1], [0], [0], [1], [0, 0, 1, 1], [], []>} : vector<2x8xbf16>, vector<8x128xbf16>, vector<2x128xf32> -> vector<2x128xf32>
    %83 = arith.truncf %82 : vector<2x128xf32> to vector<2x128xbf16>
    %c2_74 = arith.constant 2 : index
    %c0_75 = arith.constant 0 : index
    %c0_76 = arith.constant 0 : index
    %84 = vector.load %arg9[%c2_74, %c0_75, %c0_76] : memref<4x128x128xbf16, #tpu.memory_space<vmem>>, vector<1x128x128xbf16>
    %85 = vector.shape_cast %84 : vector<1x128x128xbf16> to vector<128x128xbf16>
    %cst_77 = arith.constant dense<0.000000e+00> : vector<2x128xf32>
    %86 = tpu.matmul %83, %85, %cst_77 {dimension_numbers = #tpu.dot_dimension_numbers<[1], [0], [0], [1], [0, 0, 1, 1], [], []>} : vector<2x128xbf16>, vector<128x128xbf16>, vector<2x128xf32> -> vector<2x128xf32>
    %87 = arith.addf %79, %86 : vector<2x128xf32>
    %c3 = arith.constant 3 : index
    %c0_78 = arith.constant 0 : index
    %c0_79 = arith.constant 0 : index
    %88 = vector.load %arg8[%c3, %c0_78, %c0_79] : memref<4x2x8xbf16, #tpu.memory_space<vmem>>, vector<1x2x8xbf16>
    %89 = vector.shape_cast %88 : vector<1x2x8xbf16> to vector<2x8xbf16>
    %cst_80 = arith.constant dense<0.000000e+00> : vector<2x128xf32>
    %90 = tpu.matmul %89, %64, %cst_80 {dimension_numbers = #tpu.dot_dimension_numbers<[1], [0], [0], [1], [0, 0, 1, 1], [], []>} : vector<2x8xbf16>, vector<8x128xbf16>, vector<2x128xf32> -> vector<2x128xf32>
    %91 = arith.truncf %90 : vector<2x128xf32> to vector<2x128xbf16>
    %c3_81 = arith.constant 3 : index
    %c0_82 = arith.constant 0 : index
    %c0_83 = arith.constant 0 : index
    %92 = vector.load %arg9[%c3_81, %c0_82, %c0_83] : memref<4x128x128xbf16, #tpu.memory_space<vmem>>, vector<1x128x128xbf16>
    %93 = vector.shape_cast %92 : vector<1x128x128xbf16> to vector<128x128xbf16>
    %cst_84 = arith.constant dense<0.000000e+00> : vector<2x128xf32>
    %94 = tpu.matmul %91, %93, %cst_84 {dimension_numbers = #tpu.dot_dimension_numbers<[1], [0], [0], [1], [0, 0, 1, 1], [], []>} : vector<2x128xbf16>, vector<128x128xbf16>, vector<2x128xf32> -> vector<2x128xf32>
    %95 = arith.addf %87, %94 : vector<2x128xf32>
    %c0_85 = arith.constant 0 : index
    %c0_86 = arith.constant 0 : index
    %96 = vector.load %arg10[%c0_85, %c0_86] : memref<1x128xf32, #tpu.memory_space<vmem>>, vector<1x128xf32>
    %97 = vector.broadcast %96 : vector<1x128xf32> to vector<2x128xf32>
    %98 = arith.addf %95, %97 : vector<2x128xf32>
    %cst_87 = arith.constant 0.000000e+00 : f32
    %99 = vector.broadcast %cst_87 : f32 to vector<2x128xf32>
    %100 = arith.cmpf ogt, %98, %99 : vector<2x128xf32>
    %cst_88 = arith.constant 0.00999999977 : f32
    %101 = vector.broadcast %cst_88 : f32 to vector<2x128xf32>
    %102 = arith.mulf %101, %98 : vector<2x128xf32>
    %103 = arith.select %100, %98, %102 : vector<2x128xi1>, vector<2x128xf32>
    %104 = arith.truncf %103 : vector<2x128xf32> to vector<2x128xbf16>
    %c0_89 = arith.constant 0 : index
    %c0_90 = arith.constant 0 : index
    %105 = vector.load %arg11[%c0_89, %c0_90] : memref<128x64xbf16, #tpu.memory_space<vmem>>, vector<128x64xbf16>
    %cst_91 = arith.constant dense<0.000000e+00> : vector<2x64xf32>
    %106 = tpu.matmul %104, %105, %cst_91 {dimension_numbers = #tpu.dot_dimension_numbers<[1], [0], [0], [1], [0, 0, 1, 1], [], []>} : vector<2x128xbf16>, vector<128x64xbf16>, vector<2x64xf32> -> vector<2x64xf32>
    %c0_92 = arith.constant 0 : index
    %c0_93 = arith.constant 0 : index
    %107 = vector.load %arg12[%c0_92, %c0_93] : memref<1x64xf32, #tpu.memory_space<vmem>>, vector<1x64xf32>
    %108 = vector.broadcast %107 : vector<1x64xf32> to vector<2x64xf32>
    %109 = arith.addf %106, %108 : vector<2x64xf32>
    %110 = vector.extract_strided_slice %109 {offsets = [0, 0], sizes = [2, 32], strides = [1, 1]} : vector<2x64xf32> to vector<2x32xf32>
    %111 = vector.extract_strided_slice %109 {offsets = [0, 32], sizes = [2, 32], strides = [1, 1]} : vector<2x64xf32> to vector<2x32xf32>
    %112 = math.exp %111 : vector<2x32xf32>
    %c0_94 = arith.constant 0 : index
    %c0_95 = arith.constant 0 : index
    %113 = vector.load %arg1[%c0_94, %c0_95] : memref<2x32xf32, #tpu.memory_space<vmem>>, vector<2x32xf32>
    %114 = arith.mulf %112, %113 : vector<2x32xf32>
    %115 = arith.addf %110, %114 : vector<2x32xf32>
    %116 = arith.truncf %115 : vector<2x32xf32> to vector<2x32xbf16>
    %c0_96 = arith.constant 0 : index
    %c0_97 = arith.constant 0 : index
    %117 = vector.load %arg13[%c0_96, %c0_97] : memref<32x128xbf16, #tpu.memory_space<vmem>>, vector<32x128xbf16>
    %cst_98 = arith.constant dense<0.000000e+00> : vector<2x128xf32>
    %118 = tpu.matmul %116, %117, %cst_98 {dimension_numbers = #tpu.dot_dimension_numbers<[1], [0], [0], [1], [0, 0, 1, 1], [], []>} : vector<2x32xbf16>, vector<32x128xbf16>, vector<2x128xf32> -> vector<2x128xf32>
    %c0_99 = arith.constant 0 : index
    %c0_100 = arith.constant 0 : index
    %119 = vector.load %arg14[%c0_99, %c0_100] : memref<1x128xf32, #tpu.memory_space<vmem>>, vector<1x128xf32>
    %120 = vector.broadcast %119 : vector<1x128xf32> to vector<2x128xf32>
    %121 = arith.addf %118, %120 : vector<2x128xf32>
    %cst_101 = arith.constant 0.000000e+00 : f32
    %122 = vector.broadcast %cst_101 : f32 to vector<2x128xf32>
    %123 = arith.cmpf ogt, %121, %122 : vector<2x128xf32>
    %cst_102 = arith.constant 0.00999999977 : f32
    %124 = vector.broadcast %cst_102 : f32 to vector<2x128xf32>
    %125 = arith.mulf %124, %121 : vector<2x128xf32>
    %126 = arith.select %123, %121, %125 : vector<2x128xi1>, vector<2x128xf32>
    %127 = arith.truncf %126 : vector<2x128xf32> to vector<2x128xbf16>
    %c0_103 = arith.constant 0 : index
    %c0_104 = arith.constant 0 : index
    %c0_105 = arith.constant 0 : index
    %128 = vector.load %arg15[%c0_103, %c0_104, %c0_105] : memref<4x8x2xbf16, #tpu.memory_space<vmem>>, vector<1x8x2xbf16>
    %129 = vector.shape_cast %128 : vector<1x8x2xbf16> to vector<8x2xbf16>
    %cst_106 = arith.constant dense<0.000000e+00> : vector<8x128xf32>
    %130 = tpu.matmul %129, %127, %cst_106 {dimension_numbers = #tpu.dot_dimension_numbers<[1], [0], [0], [1], [0, 0, 1, 1], [], []>} : vector<8x2xbf16>, vector<2x128xbf16>, vector<8x128xf32> -> vector<8x128xf32>
    %131 = arith.truncf %130 : vector<8x128xf32> to vector<8x128xbf16>
    %c0_107 = arith.constant 0 : index
    %c0_108 = arith.constant 0 : index
    %c0_109 = arith.constant 0 : index
    %132 = vector.load %arg16[%c0_107, %c0_108, %c0_109] : memref<4x128x128xbf16, #tpu.memory_space<vmem>>, vector<1x128x128xbf16>
    %133 = vector.shape_cast %132 : vector<1x128x128xbf16> to vector<128x128xbf16>
    %cst_110 = arith.constant dense<0.000000e+00> : vector<8x128xf32>
    %134 = tpu.matmul %131, %133, %cst_110 {dimension_numbers = #tpu.dot_dimension_numbers<[1], [0], [0], [1], [0, 0, 1, 1], [], []>} : vector<8x128xbf16>, vector<128x128xbf16>, vector<8x128xf32> -> vector<8x128xf32>
    %c1_111 = arith.constant 1 : index
    %c0_112 = arith.constant 0 : index
    %c0_113 = arith.constant 0 : index
    %135 = vector.load %arg15[%c1_111, %c0_112, %c0_113] : memref<4x8x2xbf16, #tpu.memory_space<vmem>>, vector<1x8x2xbf16>
    %136 = vector.shape_cast %135 : vector<1x8x2xbf16> to vector<8x2xbf16>
    %cst_114 = arith.constant dense<0.000000e+00> : vector<8x128xf32>
    %137 = tpu.matmul %136, %127, %cst_114 {dimension_numbers = #tpu.dot_dimension_numbers<[1], [0], [0], [1], [0, 0, 1, 1], [], []>} : vector<8x2xbf16>, vector<2x128xbf16>, vector<8x128xf32> -> vector<8x128xf32>
    %138 = arith.truncf %137 : vector<8x128xf32> to vector<8x128xbf16>
    %c1_115 = arith.constant 1 : index
    %c0_116 = arith.constant 0 : index
    %c0_117 = arith.constant 0 : index
    %139 = vector.load %arg16[%c1_115, %c0_116, %c0_117] : memref<4x128x128xbf16, #tpu.memory_space<vmem>>, vector<1x128x128xbf16>
    %140 = vector.shape_cast %139 : vector<1x128x128xbf16> to vector<128x128xbf16>
    %cst_118 = arith.constant dense<0.000000e+00> : vector<8x128xf32>
    %141 = tpu.matmul %138, %140, %cst_118 {dimension_numbers = #tpu.dot_dimension_numbers<[1], [0], [0], [1], [0, 0, 1, 1], [], []>} : vector<8x128xbf16>, vector<128x128xbf16>, vector<8x128xf32> -> vector<8x128xf32>
    %142 = arith.addf %134, %141 : vector<8x128xf32>
    %c2_119 = arith.constant 2 : index
    %c0_120 = arith.constant 0 : index
    %c0_121 = arith.constant 0 : index
    %143 = vector.load %arg15[%c2_119, %c0_120, %c0_121] : memref<4x8x2xbf16, #tpu.memory_space<vmem>>, vector<1x8x2xbf16>
    %144 = vector.shape_cast %143 : vector<1x8x2xbf16> to vector<8x2xbf16>
    %cst_122 = arith.constant dense<0.000000e+00> : vector<8x128xf32>
    %145 = tpu.matmul %144, %127, %cst_122 {dimension_numbers = #tpu.dot_dimension_numbers<[1], [0], [0], [1], [0, 0, 1, 1], [], []>} : vector<8x2xbf16>, vector<2x128xbf16>, vector<8x128xf32> -> vector<8x128xf32>
    %146 = arith.truncf %145 : vector<8x128xf32> to vector<8x128xbf16>
    %c2_123 = arith.constant 2 : index
    %c0_124 = arith.constant 0 : index
    %c0_125 = arith.constant 0 : index
    %147 = vector.load %arg16[%c2_123, %c0_124, %c0_125] : memref<4x128x128xbf16, #tpu.memory_space<vmem>>, vector<1x128x128xbf16>
    %148 = vector.shape_cast %147 : vector<1x128x128xbf16> to vector<128x128xbf16>
    %cst_126 = arith.constant dense<0.000000e+00> : vector<8x128xf32>
    %149 = tpu.matmul %146, %148, %cst_126 {dimension_numbers = #tpu.dot_dimension_numbers<[1], [0], [0], [1], [0, 0, 1, 1], [], []>} : vector<8x128xbf16>, vector<128x128xbf16>, vector<8x128xf32> -> vector<8x128xf32>
    %150 = arith.addf %142, %149 : vector<8x128xf32>
    %c3_127 = arith.constant 3 : index
    %c0_128 = arith.constant 0 : index
    %c0_129 = arith.constant 0 : index
    %151 = vector.load %arg15[%c3_127, %c0_128, %c0_129] : memref<4x8x2xbf16, #tpu.memory_space<vmem>>, vector<1x8x2xbf16>
    %152 = vector.shape_cast %151 : vector<1x8x2xbf16> to vector<8x2xbf16>
    %cst_130 = arith.constant dense<0.000000e+00> : vector<8x128xf32>
    %153 = tpu.matmul %152, %127, %cst_130 {dimension_numbers = #tpu.dot_dimension_numbers<[1], [0], [0], [1], [0, 0, 1, 1], [], []>} : vector<8x2xbf16>, vector<2x128xbf16>, vector<8x128xf32> -> vector<8x128xf32>
    %154 = arith.truncf %153 : vector<8x128xf32> to vector<8x128xbf16>
    %c3_131 = arith.constant 3 : index
    %c0_132 = arith.constant 0 : index
    %c0_133 = arith.constant 0 : index
    %155 = vector.load %arg16[%c3_131, %c0_132, %c0_133] : memref<4x128x128xbf16, #tpu.memory_space<vmem>>, vector<1x128x128xbf16>
    %156 = vector.shape_cast %155 : vector<1x128x128xbf16> to vector<128x128xbf16>
    %cst_134 = arith.constant dense<0.000000e+00> : vector<8x128xf32>
    %157 = tpu.matmul %154, %156, %cst_134 {dimension_numbers = #tpu.dot_dimension_numbers<[1], [0], [0], [1], [0, 0, 1, 1], [], []>} : vector<8x128xbf16>, vector<128x128xbf16>, vector<8x128xf32> -> vector<8x128xf32>
    %158 = arith.addf %150, %157 : vector<8x128xf32>
    %c0_135 = arith.constant 0 : index
    %c0_136 = arith.constant 0 : index
    %159 = vector.load %arg17[%c0_135, %c0_136] : memref<8x128xf32, #tpu.memory_space<vmem>>, vector<8x128xf32>
    %160 = arith.addf %158, %159 : vector<8x128xf32>
    %cst_137 = arith.constant 0.000000e+00 : f32
    %161 = vector.broadcast %cst_137 : f32 to vector<8x128xf32>
    %162 = arith.cmpf ogt, %160, %161 : vector<8x128xf32>
    %cst_138 = arith.constant 0.00999999977 : f32
    %163 = vector.broadcast %cst_138 : f32 to vector<8x128xf32>
    %164 = arith.mulf %163, %160 : vector<8x128xf32>
    %165 = arith.select %162, %160, %164 : vector<8x128xi1>, vector<8x128xf32>
    %166 = arith.truncf %165 : vector<8x128xf32> to vector<8x128xbf16>
    %c0_139 = arith.constant 0 : index
    %c0_140 = arith.constant 0 : index
    %c0_141 = arith.constant 0 : index
    %167 = vector.load %arg18[%c0_139, %c0_140, %c0_141] : memref<4x16x8xbf16, #tpu.memory_space<vmem>>, vector<1x16x8xbf16>
    %168 = vector.shape_cast %167 : vector<1x16x8xbf16> to vector<16x8xbf16>
    %cst_142 = arith.constant dense<0.000000e+00> : vector<16x128xf32>
    %169 = tpu.matmul %168, %166, %cst_142 {dimension_numbers = #tpu.dot_dimension_numbers<[1], [0], [0], [1], [0, 0, 1, 1], [], []>} : vector<16x8xbf16>, vector<8x128xbf16>, vector<16x128xf32> -> vector<16x128xf32>
    %170 = arith.truncf %169 : vector<16x128xf32> to vector<16x128xbf16>
    %c0_143 = arith.constant 0 : index
    %c0_144 = arith.constant 0 : index
    %c0_145 = arith.constant 0 : index
    %171 = vector.load %arg19[%c0_143, %c0_144, %c0_145] : memref<4x128x128xbf16, #tpu.memory_space<vmem>>, vector<1x128x128xbf16>
    %172 = vector.shape_cast %171 : vector<1x128x128xbf16> to vector<128x128xbf16>
    %cst_146 = arith.constant dense<0.000000e+00> : vector<16x128xf32>
    %173 = tpu.matmul %170, %172, %cst_146 {dimension_numbers = #tpu.dot_dimension_numbers<[1], [0], [0], [1], [0, 0, 1, 1], [], []>} : vector<16x128xbf16>, vector<128x128xbf16>, vector<16x128xf32> -> vector<16x128xf32>
    %c1_147 = arith.constant 1 : index
    %c0_148 = arith.constant 0 : index
    %c0_149 = arith.constant 0 : index
    %174 = vector.load %arg18[%c1_147, %c0_148, %c0_149] : memref<4x16x8xbf16, #tpu.memory_space<vmem>>, vector<1x16x8xbf16>
    %175 = vector.shape_cast %174 : vector<1x16x8xbf16> to vector<16x8xbf16>
    %cst_150 = arith.constant dense<0.000000e+00> : vector<16x128xf32>
    %176 = tpu.matmul %175, %166, %cst_150 {dimension_numbers = #tpu.dot_dimension_numbers<[1], [0], [0], [1], [0, 0, 1, 1], [], []>} : vector<16x8xbf16>, vector<8x128xbf16>, vector<16x128xf32> -> vector<16x128xf32>
    %177 = arith.truncf %176 : vector<16x128xf32> to vector<16x128xbf16>
    %c1_151 = arith.constant 1 : index
    %c0_152 = arith.constant 0 : index
    %c0_153 = arith.constant 0 : index
    %178 = vector.load %arg19[%c1_151, %c0_152, %c0_153] : memref<4x128x128xbf16, #tpu.memory_space<vmem>>, vector<1x128x128xbf16>
    %179 = vector.shape_cast %178 : vector<1x128x128xbf16> to vector<128x128xbf16>
    %cst_154 = arith.constant dense<0.000000e+00> : vector<16x128xf32>
    %180 = tpu.matmul %177, %179, %cst_154 {dimension_numbers = #tpu.dot_dimension_numbers<[1], [0], [0], [1], [0, 0, 1, 1], [], []>} : vector<16x128xbf16>, vector<128x128xbf16>, vector<16x128xf32> -> vector<16x128xf32>
    %181 = arith.addf %173, %180 : vector<16x128xf32>
    %c2_155 = arith.constant 2 : index
    %c0_156 = arith.constant 0 : index
    %c0_157 = arith.constant 0 : index
    %182 = vector.load %arg18[%c2_155, %c0_156, %c0_157] : memref<4x16x8xbf16, #tpu.memory_space<vmem>>, vector<1x16x8xbf16>
    %183 = vector.shape_cast %182 : vector<1x16x8xbf16> to vector<16x8xbf16>
    %cst_158 = arith.constant dense<0.000000e+00> : vector<16x128xf32>
    %184 = tpu.matmul %183, %166, %cst_158 {dimension_numbers = #tpu.dot_dimension_numbers<[1], [0], [0], [1], [0, 0, 1, 1], [], []>} : vector<16x8xbf16>, vector<8x128xbf16>, vector<16x128xf32> -> vector<16x128xf32>
    %185 = arith.truncf %184 : vector<16x128xf32> to vector<16x128xbf16>
    %c2_159 = arith.constant 2 : index
    %c0_160 = arith.constant 0 : index
    %c0_161 = arith.constant 0 : index
    %186 = vector.load %arg19[%c2_159, %c0_160, %c0_161] : memref<4x128x128xbf16, #tpu.memory_space<vmem>>, vector<1x128x128xbf16>
    %187 = vector.shape_cast %186 : vector<1x128x128xbf16> to vector<128x128xbf16>
    %cst_162 = arith.constant dense<0.000000e+00> : vector<16x128xf32>
    %188 = tpu.matmul %185, %187, %cst_162 {dimension_numbers = #tpu.dot_dimension_numbers<[1], [0], [0], [1], [0, 0, 1, 1], [], []>} : vector<16x128xbf16>, vector<128x128xbf16>, vector<16x128xf32> -> vector<16x128xf32>
    %189 = arith.addf %181, %188 : vector<16x128xf32>
    %c3_163 = arith.constant 3 : index
    %c0_164 = arith.constant 0 : index
    %c0_165 = arith.constant 0 : index
    %190 = vector.load %arg18[%c3_163, %c0_164, %c0_165] : memref<4x16x8xbf16, #tpu.memory_space<vmem>>, vector<1x16x8xbf16>
    %191 = vector.shape_cast %190 : vector<1x16x8xbf16> to vector<16x8xbf16>
    %cst_166 = arith.constant dense<0.000000e+00> : vector<16x128xf32>
    %192 = tpu.matmul %191, %166, %cst_166 {dimension_numbers = #tpu.dot_dimension_numbers<[1], [0], [0], [1], [0, 0, 1, 1], [], []>} : vector<16x8xbf16>, vector<8x128xbf16>, vector<16x128xf32> -> vector<16x128xf32>
    %193 = arith.truncf %192 : vector<16x128xf32> to vector<16x128xbf16>
    %c3_167 = arith.constant 3 : index
    %c0_168 = arith.constant 0 : index
    %c0_169 = arith.constant 0 : index
    %194 = vector.load %arg19[%c3_167, %c0_168, %c0_169] : memref<4x128x128xbf16, #tpu.memory_space<vmem>>, vector<1x128x128xbf16>
    %195 = vector.shape_cast %194 : vector<1x128x128xbf16> to vector<128x128xbf16>
    %cst_170 = arith.constant dense<0.000000e+00> : vector<16x128xf32>
    %196 = tpu.matmul %193, %195, %cst_170 {dimension_numbers = #tpu.dot_dimension_numbers<[1], [0], [0], [1], [0, 0, 1, 1], [], []>} : vector<16x128xbf16>, vector<128x128xbf16>, vector<16x128xf32> -> vector<16x128xf32>
    %197 = arith.addf %189, %196 : vector<16x128xf32>
    %c0_171 = arith.constant 0 : index
    %c0_172 = arith.constant 0 : index
    %198 = vector.load %arg20[%c0_171, %c0_172] : memref<1x128xf32, #tpu.memory_space<vmem>>, vector<1x128xf32>
    %199 = vector.broadcast %198 : vector<1x128xf32> to vector<16x128xf32>
    %200 = arith.addf %197, %199 : vector<16x128xf32>
    %cst_173 = arith.constant 0.000000e+00 : f32
    %201 = vector.broadcast %cst_173 : f32 to vector<16x128xf32>
    %202 = arith.cmpf ogt, %200, %201 : vector<16x128xf32>
    %cst_174 = arith.constant 0.00999999977 : f32
    %203 = vector.broadcast %cst_174 : f32 to vector<16x128xf32>
    %204 = arith.mulf %203, %200 : vector<16x128xf32>
    %205 = arith.select %202, %200, %204 : vector<16x128xi1>, vector<16x128xf32>
    %206 = arith.truncf %205 : vector<16x128xf32> to vector<16x128xbf16>
    %c0_175 = arith.constant 0 : index
    %c0_176 = arith.constant 0 : index
    %c0_177 = arith.constant 0 : index
    %207 = vector.load %arg21[%c0_175, %c0_176, %c0_177] : memref<4x32x16xbf16, #tpu.memory_space<vmem>>, vector<1x32x16xbf16>
    %208 = vector.shape_cast %207 : vector<1x32x16xbf16> to vector<32x16xbf16>
    %cst_178 = arith.constant dense<0.000000e+00> : vector<32x128xf32>
    %209 = tpu.matmul %208, %206, %cst_178 {dimension_numbers = #tpu.dot_dimension_numbers<[1], [0], [0], [1], [0, 0, 1, 1], [], []>} : vector<32x16xbf16>, vector<16x128xbf16>, vector<32x128xf32> -> vector<32x128xf32>
    %210 = arith.truncf %209 : vector<32x128xf32> to vector<32x128xbf16>
    %c0_179 = arith.constant 0 : index
    %c0_180 = arith.constant 0 : index
    %c0_181 = arith.constant 0 : index
    %211 = vector.load %arg22[%c0_179, %c0_180, %c0_181] : memref<4x128x64xbf16, #tpu.memory_space<vmem>>, vector<1x128x64xbf16>
    %212 = vector.shape_cast %211 : vector<1x128x64xbf16> to vector<128x64xbf16>
    %cst_182 = arith.constant dense<0.000000e+00> : vector<32x64xf32>
    %213 = tpu.matmul %210, %212, %cst_182 {dimension_numbers = #tpu.dot_dimension_numbers<[1], [0], [0], [1], [0, 0, 1, 1], [], []>} : vector<32x128xbf16>, vector<128x64xbf16>, vector<32x64xf32> -> vector<32x64xf32>
    %c1_183 = arith.constant 1 : index
    %c0_184 = arith.constant 0 : index
    %c0_185 = arith.constant 0 : index
    %214 = vector.load %arg21[%c1_183, %c0_184, %c0_185] : memref<4x32x16xbf16, #tpu.memory_space<vmem>>, vector<1x32x16xbf16>
    %215 = vector.shape_cast %214 : vector<1x32x16xbf16> to vector<32x16xbf16>
    %cst_186 = arith.constant dense<0.000000e+00> : vector<32x128xf32>
    %216 = tpu.matmul %215, %206, %cst_186 {dimension_numbers = #tpu.dot_dimension_numbers<[1], [0], [0], [1], [0, 0, 1, 1], [], []>} : vector<32x16xbf16>, vector<16x128xbf16>, vector<32x128xf32> -> vector<32x128xf32>
    %217 = arith.truncf %216 : vector<32x128xf32> to vector<32x128xbf16>
    %c1_187 = arith.constant 1 : index
    %c0_188 = arith.constant 0 : index
    %c0_189 = arith.constant 0 : index
    %218 = vector.load %arg22[%c1_187, %c0_188, %c0_189] : memref<4x128x64xbf16, #tpu.memory_space<vmem>>, vector<1x128x64xbf16>
    %219 = vector.shape_cast %218 : vector<1x128x64xbf16> to vector<128x64xbf16>
    %cst_190 = arith.constant dense<0.000000e+00> : vector<32x64xf32>
    %220 = tpu.matmul %217, %219, %cst_190 {dimension_numbers = #tpu.dot_dimension_numbers<[1], [0], [0], [1], [0, 0, 1, 1], [], []>} : vector<32x128xbf16>, vector<128x64xbf16>, vector<32x64xf32> -> vector<32x64xf32>
    %221 = arith.addf %213, %220 : vector<32x64xf32>
    %c2_191 = arith.constant 2 : index
    %c0_192 = arith.constant 0 : index
    %c0_193 = arith.constant 0 : index
    %222 = vector.load %arg21[%c2_191, %c0_192, %c0_193] : memref<4x32x16xbf16, #tpu.memory_space<vmem>>, vector<1x32x16xbf16>
    %223 = vector.shape_cast %222 : vector<1x32x16xbf16> to vector<32x16xbf16>
    %cst_194 = arith.constant dense<0.000000e+00> : vector<32x128xf32>
    %224 = tpu.matmul %223, %206, %cst_194 {dimension_numbers = #tpu.dot_dimension_numbers<[1], [0], [0], [1], [0, 0, 1, 1], [], []>} : vector<32x16xbf16>, vector<16x128xbf16>, vector<32x128xf32> -> vector<32x128xf32>
    %225 = arith.truncf %224 : vector<32x128xf32> to vector<32x128xbf16>
    %c2_195 = arith.constant 2 : index
    %c0_196 = arith.constant 0 : index
    %c0_197 = arith.constant 0 : index
    %226 = vector.load %arg22[%c2_195, %c0_196, %c0_197] : memref<4x128x64xbf16, #tpu.memory_space<vmem>>, vector<1x128x64xbf16>
    %227 = vector.shape_cast %226 : vector<1x128x64xbf16> to vector<128x64xbf16>
    %cst_198 = arith.constant dense<0.000000e+00> : vector<32x64xf32>
    %228 = tpu.matmul %225, %227, %cst_198 {dimension_numbers = #tpu.dot_dimension_numbers<[1], [0], [0], [1], [0, 0, 1, 1], [], []>} : vector<32x128xbf16>, vector<128x64xbf16>, vector<32x64xf32> -> vector<32x64xf32>
    %229 = arith.addf %221, %228 : vector<32x64xf32>
    %c3_199 = arith.constant 3 : index
    %c0_200 = arith.constant 0 : index
    %c0_201 = arith.constant 0 : index
    %230 = vector.load %arg21[%c3_199, %c0_200, %c0_201] : memref<4x32x16xbf16, #tpu.memory_space<vmem>>, vector<1x32x16xbf16>
    %231 = vector.shape_cast %230 : vector<1x32x16xbf16> to vector<32x16xbf16>
    %cst_202 = arith.constant dense<0.000000e+00> : vector<32x128xf32>
    %232 = tpu.matmul %231, %206, %cst_202 {dimension_numbers = #tpu.dot_dimension_numbers<[1], [0], [0], [1], [0, 0, 1, 1], [], []>} : vector<32x16xbf16>, vector<16x128xbf16>, vector<32x128xf32> -> vector<32x128xf32>
    %233 = arith.truncf %232 : vector<32x128xf32> to vector<32x128xbf16>
    %c3_203 = arith.constant 3 : index
    %c0_204 = arith.constant 0 : index
    %c0_205 = arith.constant 0 : index
    %234 = vector.load %arg22[%c3_203, %c0_204, %c0_205] : memref<4x128x64xbf16, #tpu.memory_space<vmem>>, vector<1x128x64xbf16>
    %235 = vector.shape_cast %234 : vector<1x128x64xbf16> to vector<128x64xbf16>
    %cst_206 = arith.constant dense<0.000000e+00> : vector<32x64xf32>
    %236 = tpu.matmul %233, %235, %cst_206 {dimension_numbers = #tpu.dot_dimension_numbers<[1], [0], [0], [1], [0, 0, 1, 1], [], []>} : vector<32x128xbf16>, vector<128x64xbf16>, vector<32x64xf32> -> vector<32x64xf32>
    %237 = arith.addf %229, %236 : vector<32x64xf32>
    %c0_207 = arith.constant 0 : index
    %c0_208 = arith.constant 0 : index
    %238 = vector.load %arg23[%c0_207, %c0_208] : memref<1x64xf32, #tpu.memory_space<vmem>>, vector<1x64xf32>
    %239 = vector.broadcast %238 : vector<1x64xf32> to vector<32x64xf32>
    %240 = arith.addf %237, %239 : vector<32x64xf32>
    %cst_209 = arith.constant 0.000000e+00 : f32
    %241 = vector.broadcast %cst_209 : f32 to vector<32x64xf32>
    %242 = arith.subf %241, %240 : vector<32x64xf32>
    %243 = math.exp %242 : vector<32x64xf32>
    %cst_210 = arith.constant 1.000000e+00 : f32
    %244 = vector.broadcast %cst_210 : f32 to vector<32x64xf32>
    %245 = arith.addf %244, %243 : vector<32x64xf32>
    %246 = tpu.reciprocal %245 {approx = true} : vector<32x64xf32> -> vector<32x64xf32>
    %c0_211 = arith.constant 0 : index
    %c0_212 = arith.constant 0 : index
    %247 = vector.load %arg24[%c0_211, %c0_212] : memref<32x64xf32, #tpu.memory_space<vmem>>, vector<32x64xf32>
    tpu.vector_store %arg24[%c0_211, %c0_212], %246 {strides = array<i32>} : memref<32x64xf32, #tpu.memory_space<vmem>>, vector<32x64xf32>,
    return
  }
}

</mosaic_0001>

<llo_original>
// kernel: fwd.1
$region0: #{fwd.1}
  #allocation0 [shape = 'u32[]', space=smem, size = 0x4, offset = 0x4, fixed_abs, tag = 'smem constant byte address 0x4 - core index']
  #allocation1 [shape = 'u32[144,128]{1,0:T(1,128)}', space=vmem, size = 0x12000, scoped, tag = 'internal scratch']
  %s0 = inlined_call_operand.vmem [shape: bf16[32,64], index: 0, kind: input, shape index: {}]
  %s1 = inlined_call_operand.hbm [shape: f32[2,32], index: 1, kind: input, shape index: {}]
  %s2 = inlined_call_operand.hbm [shape: bf16[3,16,32], index: 2, kind: input, shape index: {}]
  %s3 = inlined_call_operand.hbm [shape: bf16[3,64,128], index: 3, kind: input, shape index: {}]
  %s4 = inlined_call_operand.vmem [shape: f32[1,128], index: 4, kind: input, shape index: {}]
  %s5 = inlined_call_operand.hbm [shape: bf16[3,8,16], index: 5, kind: input, shape index: {}]
  %s6 = inlined_call_operand.vmem [shape: bf16[3,128,128], index: 6, kind: input, shape index: {}]
  %s7 = inlined_call_operand.hbm [shape: f32[1,128], index: 7, kind: input, shape index: {}]
  %s8 = inlined_call_operand.hbm [shape: bf16[4,2,8], index: 8, kind: input, shape index: {}]
  %s9 = inlined_call_operand.vmem [shape: bf16[4,128,128], index: 9, kind: input, shape index: {}]
  %s10 = inlined_call_operand.hbm [shape: f32[1,128], index: 10, kind: input, shape index: {}]
  %s11 = inlined_call_operand.vmem [shape: bf16[128,64], index: 11, kind: input, shape index: {}]
  %s12 = inlined_call_operand.hbm [shape: f32[1,64], index: 12, kind: input, shape index: {}]
  %s13 = inlined_call_operand.hbm [shape: bf16[32,128], index: 13, kind: input, shape index: {}]
  %s14 = inlined_call_operand.hbm [shape: f32[1,128], index: 14, kind: input, shape index: {}]
  %s15 = inlined_call_operand.vmem [shape: bf16[4,8,2], index: 15, kind: input, shape index: {}]
  %s16 = inlined_call_operand.vmem [shape: bf16[4,128,128], index: 16, kind: input, shape index: {}]
  %s17 = inlined_call_operand.hbm [shape: f32[8,128], index: 17, kind: input, shape index: {}]
  %s18 = inlined_call_operand.vmem [shape: bf16[4,16,8], index: 18, kind: input, shape index: {}]
  %s19 = inlined_call_operand.vmem [shape: bf16[4,128,128], index: 19, kind: input, shape index: {}]
  %s20 = inlined_call_operand.hbm [shape: f32[1,128], index: 20, kind: input, shape index: {}]
  %s21 = inlined_call_operand.vmem [shape: bf16[4,32,16], index: 21, kind: input, shape index: {}]
  %s22 = inlined_call_operand.vmem [shape: bf16[4,128,64], index: 22, kind: input, shape index: {}]
  %s23 = inlined_call_operand.vmem [shape: f32[1,64], index: 23, kind: input, shape index: {}]
  %s24 = inlined_call_operand.vmem [shape: f32[32,64], index: 24, kind: output, shape index: {}]
  %s25 = sld [smem:[#allocation0]]
  $region154: #{fwd.1} parent=0
    _
  %s27 = ssub.s32 1, %s25
  %s28 = scalar_select 0, %s27, %s25
  $region1: #{fwd.1} parent=0
    #allocation2 [shape = 'u8[1024]{0}', space=vmem, size = 0x400, scoped, tag = 'input window, operand 1, single buffered']
    #allocation3 [shape = 's32[1]{0}', space=sflag, size = 0x4, scoped, tag = 'scoped memory for fwd.1']
    #allocation4 [shape = 'u8[12288]{0}', space=vmem, size = 0x3000, scoped, tag = 'input window, operand 2, single buffered']
    #allocation5 [shape = 's32[1]{0}', space=sflag, size = 0x4, scoped, tag = 'scoped memory for fwd.1']
    #allocation6 [shape = 'u8[49152]{0}', space=vmem, size = 0xc000, scoped, tag = 'input window, operand 3, single buffered']
    #allocation7 [shape = 'u8[6144]{0}', space=vmem, size = 0x1800, scoped, tag = 'input window, operand 5, single buffered']
    #allocation8 [shape = 's32[1]{0}', space=sflag, size = 0x4, scoped, tag = 'scoped memory for fwd.1']
    #allocation9 [shape = 'u8[512]{0}', space=vmem, size = 0x400, scoped, tag = 'input window, operand 7, single buffered']
    #allocation10 [shape = 'u8[2048]{0}', space=vmem, size = 0x800, scoped, tag = 'input window, operand 8, single buffered']
    #allocation11 [shape = 's32[1]{0}', space=sflag, size = 0x4, scoped, tag = 'scoped memory for fwd.1']
    #allocation12 [shape = 'u8[512]{0}', space=vmem, size = 0x400, scoped, tag = 'input window, operand 10, single buffered']
    #allocation13 [shape = 'u8[512]{0}', space=vmem, size = 0x400, scoped, tag = 'input window, operand 12, single buffered']
    #allocation14 [shape = 's32[1]{0}', space=sflag, size = 0x4, scoped, tag = 'scoped memory for fwd.1']
    #allocation15 [shape = 'u8[8192]{0}', space=vmem, size = 0x2000, scoped, tag = 'input window, operand 13, single buffered']
    #allocation16 [shape = 'u8[512]{0}', space=vmem, size = 0x400, scoped, tag = 'input window, operand 14, single buffered']
    #allocation17 [shape = 's32[1]{0}', space=sflag, size = 0x4, scoped, tag = 'scoped memory for fwd.1']
    #allocation18 [shape = 'u8[4096]{0}', space=vmem, size = 0x1000, scoped, tag = 'input window, operand 17, single buffered']
    #allocation19 [shape = 'u8[512]{0}', space=vmem, size = 0x400, scoped, tag = 'input window, operand 20, single buffered']
    #allocation20 [shape = 's32[1]{0}', space=sflag, size = 0x4, scoped, tag = 'scoped memory for fwd.1']
    %29 = vsyncpa [#allocation3], 0
    %30 = vsyncpa [#allocation5], 0
    %31 = vsyncpa [#allocation8], 0
    %32 = vsyncpa [#allocation11], 0
    %33 = vsyncpa [#allocation14], 0
    %34 = vsyncpa [#allocation17], 0
    %35 = vsyncpa [#allocation20], 0
    // Predicated region
    $region2: #{fwd.1} parent=1 // pred_check
      _
    $region3: #{fwd.1} parent=1 // pred_check_branch
      %37 = sbr.rel (0) target = $region5
    $region4: #{fwd.1} parent=1 // pred_region
      _
    $region5: #{fwd.1} parent=1 // pred_fallthru
      _
    // Predicated region
    $region6: #{fwd.1} parent=1 // pred_check
      _
    $region7: #{fwd.1} parent=1 // pred_check_branch
      %39 = sbr.rel (0) target = $region9
    $region8: #{fwd.1} parent=1 // pred_region
      %s41 = ssub.s32 32, 32
      %42 = vsyncadd [#allocation3], %s41
      %s44 = sshll.u32 [#allocation2], 4
      %s45 = int_to_ptr.vmem [resolvable:$true] %s44
      %47 = dma.hbm_to_vmem [thread:$0]  %s1, 32, %s45, [#allocation3]
    $region9: #{fwd.1} parent=1 // pred_fallthru
      _
    // Predicated region
    $region10: #{fwd.1} parent=1 // pred_check
      _
    $region11: #{fwd.1} parent=1 // pred_check_branch
      %49 = sbr.rel (0) target = $region13
    $region12: #{fwd.1} parent=1 // pred_region
      %s51 = ssub.s32 384, 384
      %52 = vsyncadd [#allocation5], %s51
      %s53 = sshll.u32 [#allocation4], 4
      %s54 = int_to_ptr.vmem [resolvable:$true] %s53
      %59 = dma.hbm_to_vmem [thread:$0]  %s2, 384, %s54, [#allocation5], 64, 64, 4
    $region13: #{fwd.1} parent=1 // pred_fallthru
      _
    // Predicated region
    $region14: #{fwd.1} parent=1 // pred_check
      _
    $region15: #{fwd.1} parent=1 // pred_check_branch
      %61 = sbr.rel (0) target = $region17
    $region16: #{fwd.1} parent=1 // pred_region
      %s63 = ssub.s32 1536, 1536
      %64 = vsyncadd [#allocation5], %s63
      %s65 = sshll.u32 [#allocation6], 4
      %s66 = int_to_ptr.vmem [resolvable:$true] %s65
      %71 = dma.hbm_to_vmem [thread:$0]  %s3, 1536, %s66, [#allocation5], 64, 64, 4
    $region17: #{fwd.1} parent=1 // pred_fallthru
      _
    // Predicated region
    $region18: #{fwd.1} parent=1 // pred_check
      _
    $region19: #{fwd.1} parent=1 // pred_check_branch
      %73 = sbr.rel (0) target = $region21
    $region20: #{fwd.1} parent=1 // pred_region
      _
    $region21: #{fwd.1} parent=1 // pred_fallthru
      _
    // Predicated region
    $region22: #{fwd.1} parent=1 // pred_check
      _
    $region23: #{fwd.1} parent=1 // pred_check_branch
      %75 = sbr.rel (0) target = $region25
    $region24: #{fwd.1} parent=1 // pred_region
      %s77 = ssub.s32 192, 192
      %78 = vsyncadd [#allocation8], %s77
      %s79 = sshll.u32 [#allocation7], 4
      %s80 = int_to_ptr.vmem [resolvable:$true] %s79
      %85 = dma.hbm_to_vmem [thread:$0]  %s5, 192, %s80, [#allocation8], 64, 64, 4
    $region25: #{fwd.1} parent=1 // pred_fallthru
      _
    // Predicated region
    $region26: #{fwd.1} parent=1 // pred_check
      _
    $region27: #{fwd.1} parent=1 // pred_check_branch
      %87 = sbr.rel (0) target = $region29
    $region28: #{fwd.1} parent=1 // pred_region
      _
    $region29: #{fwd.1} parent=1 // pred_fallthru
      _
    // Predicated region
    $region30: #{fwd.1} parent=1 // pred_check
      _
    $region31: #{fwd.1} parent=1 // pred_check_branch
      %89 = sbr.rel (0) target = $region33
    $region32: #{fwd.1} parent=1 // pred_region
      %s91 = ssub.s32 16, 16
      %92 = vsyncadd [#allocation8], %s91
      %s94 = sshll.u32 [#allocation9], 4
      %s95 = int_to_ptr.vmem [resolvable:$true] %s94
      %97 = dma.hbm_to_vmem [thread:$0]  %s7, 16, %s95, [#allocation8]
    $region33: #{fwd.1} parent=1 // pred_fallthru
      _
    // Predicated region
    $region34: #{fwd.1} parent=1 // pred_check
      _
    $region35: #{fwd.1} parent=1 // pred_check_branch
      %99 = sbr.rel (0) target = $region37
    $region36: #{fwd.1} parent=1 // pred_region
      %s101 = ssub.s32 64, 64
      %102 = vsyncadd [#allocation11], %s101
      %s103 = sshll.u32 [#allocation10], 4
      %s104 = int_to_ptr.vmem [resolvable:$true] %s103
      %109 = dma.hbm_to_vmem [thread:$0]  %s8, 64, %s104, [#allocation11], 16, 16, 1
    $region37: #{fwd.1} parent=1 // pred_fallthru
      _
    // Predicated region
    $region38: #{fwd.1} parent=1 // pred_check
      _
    $region39: #{fwd.1} parent=1 // pred_check_branch
      %111 = sbr.rel (0) target = $region41
    $region40: #{fwd.1} parent=1 // pred_region
      _
    $region41: #{fwd.1} parent=1 // pred_fallthru
      _
    // Predicated region
    $region42: #{fwd.1} parent=1 // pred_check
      _
    $region43: #{fwd.1} parent=1 // pred_check_branch
      %113 = sbr.rel (0) target = $region45
    $region44: #{fwd.1} parent=1 // pred_region
      %s115 = ssub.s32 16, 16
      %116 = vsyncadd [#allocation11], %s115
      %s118 = sshll.u32 [#allocation12], 4
      %s119 = int_to_ptr.vmem [resolvable:$true] %s118
      %121 = dma.hbm_to_vmem [thread:$0]  %s10, 16, %s119, [#allocation11]
    $region45: #{fwd.1} parent=1 // pred_fallthru
      _
    // Predicated region
    $region46: #{fwd.1} parent=1 // pred_check
      _
    $region47: #{fwd.1} parent=1 // pred_check_branch
      %123 = sbr.rel (0) target = $region49
    $region48: #{fwd.1} parent=1 // pred_region
      _
    $region49: #{fwd.1} parent=1 // pred_fallthru
      _
    // Predicated region
    $region50: #{fwd.1} parent=1 // pred_check
      _
    $region51: #{fwd.1} parent=1 // pred_check_branch
      %125 = sbr.rel (0) target = $region53
    $region52: #{fwd.1} parent=1 // pred_region
      %s127 = ssub.s32 16, 16
      %128 = vsyncadd [#allocation14], %s127
      %s130 = sshll.u32 [#allocation13], 4
      %s131 = int_to_ptr.vmem [resolvable:$true] %s130
      %133 = dma.hbm_to_vmem [thread:$0]  %s12, 16, %s131, [#allocation14]
    $region53: #{fwd.1} parent=1 // pred_fallthru
      _
    // Predicated region
    $region54: #{fwd.1} parent=1 // pred_check
      _
    $region55: #{fwd.1} parent=1 // pred_check_branch
      %135 = sbr.rel (0) target = $region57
    $region56: #{fwd.1} parent=1 // pred_region
      %s137 = ssub.s32 256, 256
      %138 = vsyncadd [#allocation14], %s137
      %s139 = sshll.u32 [#allocation15], 4
      %s140 = int_to_ptr.vmem [resolvable:$true] %s139
      %145 = dma.hbm_to_vmem [thread:$0]  %s13, 256, %s140, [#allocation14], 64, 64, 4
    $region57: #{fwd.1} parent=1 // pred_fallthru
      _
    // Predicated region
    $region58: #{fwd.1} parent=1 // pred_check
      _
    $region59: #{fwd.1} parent=1 // pred_check_branch
      %147 = sbr.rel (0) target = $region61
    $region60: #{fwd.1} parent=1 // pred_region
      %s149 = ssub.s32 16, 16
      %150 = vsyncadd [#allocation17], %s149
      %s152 = sshll.u32 [#allocation16], 4
      %s153 = int_to_ptr.vmem [resolvable:$true] %s152
      %155 = dma.hbm_to_vmem [thread:$0]  %s14, 16, %s153, [#allocation17]
    $region61: #{fwd.1} parent=1 // pred_fallthru
      _
    // Predicated region
    $region62: #{fwd.1} parent=1 // pred_check
      _
    $region63: #{fwd.1} parent=1 // pred_check_branch
      %157 = sbr.rel (0) target = $region65
    $region64: #{fwd.1} parent=1 // pred_region
      _
    $region65: #{fwd.1} parent=1 // pred_fallthru
      _
    // Predicated region
    $region66: #{fwd.1} parent=1 // pred_check
      _
    $region67: #{fwd.1} parent=1 // pred_check_branch
      %159 = sbr.rel (0) target = $region69
    $region68: #{fwd.1} parent=1 // pred_region
      _
    $region69: #{fwd.1} parent=1 // pred_fallthru
      _
    // Predicated region
    $region70: #{fwd.1} parent=1 // pred_check
      _
    $region71: #{fwd.1} parent=1 // pred_check_branch
      %161 = sbr.rel (0) target = $region73
    $region72: #{fwd.1} parent=1 // pred_region
      %s163 = ssub.s32 128, 128
      %164 = vsyncadd [#allocation17], %s163
      %s166 = sshll.u32 [#allocation18], 4
      %s167 = int_to_ptr.vmem [resolvable:$true] %s166
      %169 = dma.hbm_to_vmem [thread:$0]  %s17, 128, %s167, [#allocation17]
    $region73: #{fwd.1} parent=1 // pred_fallthru
      _
    // Predicated region
    $region74: #{fwd.1} parent=1 // pred_check
      _
    $region75: #{fwd.1} parent=1 // pred_check_branch
      %171 = sbr.rel (0) target = $region77
    $region76: #{fwd.1} parent=1 // pred_region
      _
    $region77: #{fwd.1} parent=1 // pred_fallthru
      _
    // Predicated region
    $region78: #{fwd.1} parent=1 // pred_check
      _
    $region79: #{fwd.1} parent=1 // pred_check_branch
      %173 = sbr.rel (0) target = $region81
    $region80: #{fwd.1} parent=1 // pred_region
      _
    $region81: #{fwd.1} parent=1 // pred_fallthru
      _
    // Predicated region
    $region82: #{fwd.1} parent=1 // pred_check
      _
    $region83: #{fwd.1} parent=1 // pred_check_branch
      %175 = sbr.rel (0) target = $region85
    $region84: #{fwd.1} parent=1 // pred_region
      %s177 = ssub.s32 16, 16
      %178 = vsyncadd [#allocation20], %s177
      %s180 = sshll.u32 [#allocation19], 4
      %s181 = int_to_ptr.vmem [resolvable:$true] %s180
      %183 = dma.hbm_to_vmem [thread:$0]  %s20, 16, %s181, [#allocation20]
    $region85: #{fwd.1} parent=1 // pred_fallthru
      _
    // Predicated region
    $region86: #{fwd.1} parent=1 // pred_check
      _
    $region87: #{fwd.1} parent=1 // pred_check_branch
      %185 = sbr.rel (0) target = $region89
    $region88: #{fwd.1} parent=1 // pred_region
      _
    $region89: #{fwd.1} parent=1 // pred_fallthru
      _
    // Predicated region
    $region90: #{fwd.1} parent=1 // pred_check
      _
    $region91: #{fwd.1} parent=1 // pred_check_branch
      %187 = sbr.rel (0) target = $region93
    $region92: #{fwd.1} parent=1 // pred_region
      _
    $region93: #{fwd.1} parent=1 // pred_fallthru
      _
    // Predicated region
    $region94: #{fwd.1} parent=1 // pred_check
      _
    $region95: #{fwd.1} parent=1 // pred_check_branch
      %189 = sbr.rel (0) target = $region97
    $region96: #{fwd.1} parent=1 // pred_region
      _
    $region97: #{fwd.1} parent=1 // pred_fallthru
      _
    // Predicated region
    $region98: #{fwd.1} parent=1 // pred_check
      _
    $region99: #{fwd.1} parent=1 // pred_check_branch
      %191 = sbr.rel (0) target = $region101
    $region100: #{fwd.1} parent=1 // pred_region
      %192 = dma.done [#allocation3], 32
    $region101: #{fwd.1} parent=1 // pred_fallthru
      _
    // Predicated region
    $region102: #{fwd.1} parent=1 // pred_check
      _
    $region103: #{fwd.1} parent=1 // pred_check_branch
      %194 = sbr.rel (0) target = $region105
    $region104: #{fwd.1} parent=1 // pred_region
      %195 = dma.done [#allocation5], 384
    $region105: #{fwd.1} parent=1 // pred_fallthru
      _
    // Predicated region
    $region106: #{fwd.1} parent=1 // pred_check
      _
    $region107: #{fwd.1} parent=1 // pred_check_branch
      %197 = sbr.rel (0) target = $region109
    $region108: #{fwd.1} parent=1 // pred_region
      %198 = dma.done [#allocation5], 1536
    $region109: #{fwd.1} parent=1 // pred_fallthru
      _
    // Predicated region
    $region110: #{fwd.1} parent=1 // pred_check
      _
    $region111: #{fwd.1} parent=1 // pred_check_branch
      %200 = sbr.rel (0) target = $region113
    $region112: #{fwd.1} parent=1 // pred_region
      %201 = dma.done [#allocation8], 192
    $region113: #{fwd.1} parent=1 // pred_fallthru
      _
    // Predicated region
    $region114: #{fwd.1} parent=1 // pred_check
      _
    $region115: #{fwd.1} parent=1 // pred_check_branch
      %203 = sbr.rel (0) target = $region117
    $region116: #{fwd.1} parent=1 // pred_region
      %204 = dma.done [#allocation8], 16
    $region117: #{fwd.1} parent=1 // pred_fallthru
      _
    // Predicated region
    $region118: #{fwd.1} parent=1 // pred_check
      _
    $region119: #{fwd.1} parent=1 // pred_check_branch
      %206 = sbr.rel (0) target = $region121
    $region120: #{fwd.1} parent=1 // pred_region
      %207 = dma.done [#allocation11], 64
    $region121: #{fwd.1} parent=1 // pred_fallthru
      _
    // Predicated region
    $region122: #{fwd.1} parent=1 // pred_check
      _
    $region123: #{fwd.1} parent=1 // pred_check_branch
      %209 = sbr.rel (0) target = $region125
    $region124: #{fwd.1} parent=1 // pred_region
      %210 = dma.done [#allocation11], 16
    $region125: #{fwd.1} parent=1 // pred_fallthru
      _
    // Predicated region
    $region126: #{fwd.1} parent=1 // pred_check
      _
    $region127: #{fwd.1} parent=1 // pred_check_branch
      %212 = sbr.rel (0) target = $region129
    $region128: #{fwd.1} parent=1 // pred_region
      %213 = dma.done [#allocation14], 16
    $region129: #{fwd.1} parent=1 // pred_fallthru
      _
    // Predicated region
    $region130: #{fwd.1} parent=1 // pred_check
      _
    $region131: #{fwd.1} parent=1 // pred_check_branch
      %215 = sbr.rel (0) target = $region133
    $region132: #{fwd.1} parent=1 // pred_region
      %216 = dma.done [#allocation14], 256
    $region133: #{fwd.1} parent=1 // pred_fallthru
      _
    // Predicated region
    $region134: #{fwd.1} parent=1 // pred_check
      _
    $region135: #{fwd.1} parent=1 // pred_check_branch
      %218 = sbr.rel (0) target = $region137
    $region136: #{fwd.1} parent=1 // pred_region
      %219 = dma.done [#allocation17], 16
    $region137: #{fwd.1} parent=1 // pred_fallthru
      _
    // Predicated region
    $region138: #{fwd.1} parent=1 // pred_check
      _
    $region139: #{fwd.1} parent=1 // pred_check_branch
      %221 = sbr.rel (0) target = $region141
    $region140: #{fwd.1} parent=1 // pred_region
      %222 = dma.done [#allocation17], 128
    $region141: #{fwd.1} parent=1 // pred_fallthru
      _
    // Predicated region
    $region142: #{fwd.1} parent=1 // pred_check
      _
    $region143: #{fwd.1} parent=1 // pred_check_branch
      %224 = sbr.rel (0) target = $region145
    $region144: #{fwd.1} parent=1 // pred_region
      %225 = dma.done [#allocation20], 16
    $region145: #{fwd.1} parent=1 // pred_fallthru
      _
    %v227 = vld [vmem:[%s0] sm:$0xf]
    %v228 = vld [vmem:[%s0 + $0x4] sm:$0xf]
    %v229 = vld [vmem:[%s0 + $0x8] sm:$0xf]
    %v230 = vld [vmem:[%s0 + $0xc] sm:$0xf]
    %v231 = vld [vmem:[#allocation4] sm:$0xf]
    %v232 = vld [vmem:[#allocation4 + $0x4] sm:$0xf]
    %v235 = vunpack.c.l.b16 %v231
    %v236 = vunpack.c.l.b16 %v232
    %v237 = vpack.c.b16 %v236, %v235
    %v242 = vunpack.c.l.b16 %v227
    %v243 = vunpack.c.l.b16 %v228
    %v244 = vunpack.c.l.b16 %v229
    %v245 = vunpack.c.l.b16 %v230
    %v246 = vpack.c.b16 %v243, %v242
    %v247 = vpack.c.b16 %v245, %v244
    %vm250 = vcmask 261120
    %v252 = vsel %vm250, %v237, 0
    %254 = vmatprep.subr.bf16.mxu0 0
    %255 = vmatpush1.bf16.msra.mxu0 0
    %256 = vmatprep.subr.bf16.mxu0 0
    %257 = vmatpush1.bf16.msra.mxu0 0
    %258 = vmatprep.subr.bf16.mxu0 0
    %259 = vmatpush1.bf16.msra.mxu0 0
    %260 = vmatprep.subr.bf16.mxu0 0
    %261 = vmatpush1.bf16.msra.mxu0 0
    %262 = vmatprep.subr.bf16.mxu0 0
    %263 = vmatpush1.bf16.msra.mxu0 0
    %264 = vmatprep.subr.bf16.mxu0 0
    %265 = vmatpush1.bf16.msra.mxu0 0
    %266 = vmatprep.subr.bf16.mxu0 0
    %267 = vmatpush1.bf16.msra.mxu0 %v247
    %268 = vmatprep.subr.bf16.mxu0 0
    %269 = vmatpush1.bf16.msra.mxu0 %v246
    %270 = vmatprep.subr.bf16.mxu0 0
    %271 = vmatpush2.bf16.msra.mxu0 0
    %272 = vmatprep.subr.bf16.mxu0 0
    %273 = vmatpush2.bf16.msra.mxu0 0
    %274 = vmatprep.subr.bf16.mxu0 0
    %275 = vmatpush2.bf16.msra.mxu0 0
    %276 = vmatprep.subr.bf16.mxu0 0
    %277 = vmatpush2.bf16.msra.mxu0 0
    %278 = vmatprep.subr.bf16.mxu0 0
    %279 = vmatpush2.bf16.msra.mxu0 0
    %280 = vmatprep.subr.bf16.mxu0 0
    %281 = vmatpush2.bf16.msra.mxu0 0
    %282 = vmatprep.subr.bf16.mxu0 0
    %283 = vmatpush2.bf16.msra.mxu0 0
    %284 = vmatprep.subr.bf16.mxu0 0
    %285 = vmatpush2.bf16.msra.mxu0 0
    %286 = vmatprep.mubr.bf16.mxu0 0
    %287 = vmatmul.mubr.bf16.gmra.mxu0 %v252
    %v288 = vpop.f32.mrf.mxu0
    %v289 = vadd.f32 0.0, %v288
    %v290 = vpop.f32.mrf.mxu0
    %v291 = vpop.f32.mrf.mxu0
    %v292 = vadd.f32 0.0, %v291
    %v293 = vpop.f32.mrf.mxu0
    %294 = vdwg.mxu0
    %v295 = vpack.c.bf16 %v292, %v289
    %v296 = vld [vmem:[#allocation6] sm:$0xf]
    %v297 = vld [vmem:[#allocation6 + $0x4] sm:$0xf]
    %v298 = vld [vmem:[#allocation6 + $0x8] sm:$0xf]
    %v299 = vld [vmem:[#allocation6 + $0xc] sm:$0xf]
    %v300 = vld [vmem:[#allocation6 + $0x10] sm:$0xf]
    %v301 = vld [vmem:[#allocation6 + $0x14] sm:$0xf]
    %v302 = vld [vmem:[#allocation6 + $0x18] sm:$0xf]
    %v303 = vld [vmem:[#allocation6 + $0x1c] sm:$0xf]
    %s304 = scalar_lea.vmem [#allocation4], 8
    %v305 = vld [vmem:[%s304] sm:$0xf]
    %v306 = vld [vmem:[%s304 + $0x4] sm:$0xf]
    %v309 = vunpack.c.l.b16 %v305
    %v310 = vunpack.c.l.b16 %v306
    %v311 = vpack.c.b16 %v310, %v309
    %v313 = vsel %vm250, %v311, 0
    %315 = vmatprep.subr.bf16.mxu0 0
    %316 = vmatpush1.bf16.msra.mxu0 0
    %317 = vmatprep.subr.bf16.mxu0 0
    %318 = vmatpush1.bf16.msra.mxu0 0
    %319 = vmatprep.subr.bf16.mxu0 0
    %320 = vmatpush1.bf16.msra.mxu0 0
    %321 = vmatprep.subr.bf16.mxu0 0
    %322 = vmatpush1.bf16.msra.mxu0 0
    %323 = vmatprep.subr.bf16.mxu0 0
    %324 = vmatpush1.bf16.msra.mxu0 0
    %325 = vmatprep.subr.bf16.mxu0 0
    %326 = vmatpush1.bf16.msra.mxu0 0
    %327 = vmatprep.subr.bf16.mxu0 0
    %328 = vmatpush1.bf16.msra.mxu0 %v247
    %329 = vmatprep.subr.bf16.mxu0 0
    %330 = vmatpush1.bf16.msra.mxu0 %v246
    %331 = vmatprep.subr.bf16.mxu0 0
    %332 = vmatpush2.bf16.msra.mxu0 0
    %333 = vmatprep.subr.bf16.mxu0 0
    %334 = vmatpush2.bf16.msra.mxu0 0
    %335 = vmatprep.subr.bf16.mxu0 0
    %336 = vmatpush2.bf16.msra.mxu0 0
    %337 = vmatprep.subr.bf16.mxu0 0
    %338 = vmatpush2.bf16.msra.mxu0 0
    %339 = vmatprep.subr.bf16.mxu0 0
    %340 = vmatpush2.bf16.msra.mxu0 0
    %341 = vmatprep.subr.bf16.mxu0 0
    %342 = vmatpush2.bf16.msra.mxu0 0
    %343 = vmatprep.subr.bf16.mxu0 0
    %344 = vmatpush2.bf16.msra.mxu0 0
    %345 = vmatprep.subr.bf16.mxu0 0
    %346 = vmatpush2.bf16.msra.mxu0 0
    %347 = vmatprep.mubr.bf16.mxu0 0
    %348 = vmatmul.mubr.bf16.gmra.mxu0 %v313
    %v349 = vpop.f32.mrf.mxu0
    %v350 = vadd.f32 0.0, %v349
    %v351 = vpop.f32.mrf.mxu0
    %v352 = vpop.f32.mrf.mxu0
    %v353 = vadd.f32 0.0, %v352
    %v354 = vpop.f32.mrf.mxu0
    %355 = vdwg.mxu0
    %v356 = vpack.c.bf16 %v353, %v350
    %s357 = scalar_lea.vmem [#allocation6], 32
    %v358 = vld [vmem:[%s357] sm:$0xf]
    %v359 = vld [vmem:[%s357 + $0x4] sm:$0xf]
    %v360 = vld [vmem:[%s357 + $0x8] sm:$0xf]
    %v361 = vld [vmem:[%s357 + $0xc] sm:$0xf]
    %v362 = vld [vmem:[%s357 + $0x10] sm:$0xf]
    %v363 = vld [vmem:[%s357 + $0x14] sm:$0xf]
    %v364 = vld [vmem:[%s357 + $0x18] sm:$0xf]
    %v365 = vld [vmem:[%s357 + $0x1c] sm:$0xf]
    %v374 = vunpack.c.l.b16 %v358
    %v375 = vunpack.c.l.b16 %v359
    %v376 = vunpack.c.l.b16 %v360
    %v377 = vunpack.c.l.b16 %v361
    %v378 = vunpack.c.l.b16 %v362
    %v379 = vunpack.c.l.b16 %v363
    %v380 = vunpack.c.l.b16 %v364
    %v381 = vunpack.c.l.b16 %v365
    %v382 = vpack.c.b16 %v375, %v374
    %v383 = vpack.c.b16 %v377, %v376
    %v384 = vpack.c.b16 %v379, %v378
    %v385 = vpack.c.b16 %v381, %v380
    %vm390 = vcmask 523264
    %v392 = vsel %vm390, %v356, 0
    %394 = vmatprep.subr.bf16.mxu0 0
    %395 = vmatpush1.bf16.msra.mxu0 0
    %396 = vmatprep.subr.bf16.mxu0 0
    %397 = vmatpush1.bf16.msra.mxu0 0
    %398 = vmatprep.subr.bf16.mxu0 0
    %399 = vmatpush1.bf16.msra.mxu0 0
    %400 = vmatprep.subr.bf16.mxu0 0
    %401 = vmatpush1.bf16.msra.mxu0 0
    %402 = vmatprep.subr.bf16.mxu0 0
    %403 = vmatpush1.bf16.msra.mxu0 %v385
    %404 = vmatprep.subr.bf16.mxu0 0
    %405 = vmatpush1.bf16.msra.mxu0 %v384
    %406 = vmatprep.subr.bf16.mxu0 0
    %407 = vmatpush1.bf16.msra.mxu0 %v383
    %408 = vmatprep.subr.bf16.mxu0 0
    %409 = vmatpush1.bf16.msra.mxu0 %v382
    %410 = vmatprep.subr.bf16.mxu0 0
    %411 = vmatpush2.bf16.msra.mxu0 0
    %412 = vmatprep.subr.bf16.mxu0 0
    %413 = vmatpush2.bf16.msra.mxu0 0
    %414 = vmatprep.subr.bf16.mxu0 0
    %415 = vmatpush2.bf16.msra.mxu0 0
    %416 = vmatprep.subr.bf16.mxu0 0
    %417 = vmatpush2.bf16.msra.mxu0 0
    %418 = vmatprep.subr.bf16.mxu0 0
    %419 = vmatpush2.bf16.msra.mxu0 0
    %420 = vmatprep.subr.bf16.mxu0 0
    %421 = vmatpush2.bf16.msra.mxu0 0
    %422 = vmatprep.subr.bf16.mxu0 0
    %423 = vmatpush2.bf16.msra.mxu0 0
    %424 = vmatprep.subr.bf16.mxu0 0
    %425 = vmatpush2.bf16.msra.mxu0 0
    %426 = vmatprep.mubr.bf16.mxu0 0
    %427 = vmatmul.mubr.bf16.gmra.mxu0 %v392
    %v428 = vpop.f32.mrf.mxu0
    %v429 = vadd.f32 0.0, %v428
    %v430 = vpop.f32.mrf.mxu0
    %v431 = vpop.f32.mrf.mxu0
    %v432 = vadd.f32 0.0, %v431
    %v433 = vpop.f32.mrf.mxu0
    %434 = vdwg.mxu0
    %v443 = vunpack.c.l.b16 %v296
    %v444 = vunpack.c.l.b16 %v297
    %v445 = vunpack.c.l.b16 %v298
    %v446 = vunpack.c.l.b16 %v299
    %v447 = vunpack.c.l.b16 %v300
    %v448 = vunpack.c.l.b16 %v301
    %v449 = vunpack.c.l.b16 %v302
    %v450 = vunpack.c.l.b16 %v303
    %v451 = vpack.c.b16 %v444, %v443
    %v452 = vpack.c.b16 %v446, %v445
    %v453 = vpack.c.b16 %v448, %v447
    %v454 = vpack.c.b16 %v450, %v449
    %v460 = vsel %vm390, %v295, 0
    %462 = vmatprep.subr.bf16.mxu0 0
    %463 = vmatpush1.bf16.msra.mxu0 0
    %464 = vmatprep.subr.bf16.mxu0 0
    %465 = vmatpush1.bf16.msra.mxu0 0
    %466 = vmatprep.subr.bf16.mxu0 0
    %467 = vmatpush1.bf16.msra.mxu0 0
    %468 = vmatprep.subr.bf16.mxu0 0
    %469 = vmatpush1.bf16.msra.mxu0 0
    %470 = vmatprep.subr.bf16.mxu0 0
    %471 = vmatpush1.bf16.msra.mxu0 %v454
    %472 = vmatprep.subr.bf16.mxu0 0
    %473 = vmatpush1.bf16.msra.mxu0 %v453
    %474 = vmatprep.subr.bf16.mxu0 0
    %475 = vmatpush1.bf16.msra.mxu0 %v452
    %476 = vmatprep.subr.bf16.mxu0 0
    %477 = vmatpush1.bf16.msra.mxu0 %v451
    %478 = vmatprep.subr.bf16.mxu0 0
    %479 = vmatpush2.bf16.msra.mxu0 0
    %480 = vmatprep.subr.bf16.mxu0 0
    %481 = vmatpush2.bf16.msra.mxu0 0
    %482 = vmatprep.subr.bf16.mxu0 0
    %483 = vmatpush2.bf16.msra.mxu0 0
    %484 = vmatprep.subr.bf16.mxu0 0
    %485 = vmatpush2.bf16.msra.mxu0 0
    %486 = vmatprep.subr.bf16.mxu0 0
    %487 = vmatpush2.bf16.msra.mxu0 0
    %488 = vmatprep.subr.bf16.mxu0 0
    %489 = vmatpush2.bf16.msra.mxu0 0
    %490 = vmatprep.subr.bf16.mxu0 0
    %491 = vmatpush2.bf16.msra.mxu0 0
    %492 = vmatprep.subr.bf16.mxu0 0
    %493 = vmatpush2.bf16.msra.mxu0 0
    %494 = vmatprep.mubr.bf16.mxu0 0
    %495 = vmatmul.mubr.bf16.gmra.mxu0 %v460
    %v496 = vpop.f32.mrf.mxu0
    %v497 = vadd.f32 %v429, %v496
    %v498 = vpop.f32.mrf.mxu0
    %v499 = vpop.f32.mrf.mxu0
    %v500 = vadd.f32 %v432, %v499
    %v501 = vpop.f32.mrf.mxu0
    %502 = vdwg.mxu0
    %s503 = scalar_lea.vmem [#allocation4], 16
    %v504 = vld [vmem:[%s503] sm:$0xf]
    %v505 = vld [vmem:[%s503 + $0x4] sm:$0xf]
    %v508 = vunpack.c.l.b16 %v504
    %v509 = vunpack.c.l.b16 %v505
    %v510 = vpack.c.b16 %v509, %v508
    %v512 = vsel %vm250, %v510, 0
    %514 = vmatprep.subr.bf16.mxu0 0
    %515 = vmatpush1.bf16.msra.mxu0 0
    %516 = vmatprep.subr.bf16.mxu0 0
    %517 = vmatpush1.bf16.msra.mxu0 0
    %518 = vmatprep.subr.bf16.mxu0 0
    %519 = vmatpush1.bf16.msra.mxu0 0
    %520 = vmatprep.subr.bf16.mxu0 0
    %521 = vmatpush1.bf16.msra.mxu0 0
    %522 = vmatprep.subr.bf16.mxu0 0
    %523 = vmatpush1.bf16.msra.mxu0 0
    %524 = vmatprep.subr.bf16.mxu0 0
    %525 = vmatpush1.bf16.msra.mxu0 0
    %526 = vmatprep.subr.bf16.mxu0 0
    %527 = vmatpush1.bf16.msra.mxu0 %v247
    %528 = vmatprep.subr.bf16.mxu0 0
    %529 = vmatpush1.bf16.msra.mxu0 %v246
    %530 = vmatprep.subr.bf16.mxu0 0
    %531 = vmatpush2.bf16.msra.mxu0 0
    %532 = vmatprep.subr.bf16.mxu0 0
    %533 = vmatpush2.bf16.msra.mxu0 0
    %534 = vmatprep.subr.bf16.mxu0 0
    %535 = vmatpush2.bf16.msra.mxu0 0
    %536 = vmatprep.subr.bf16.mxu0 0
    %537 = vmatpush2.bf16.msra.mxu0 0
    %538 = vmatprep.subr.bf16.mxu0 0
    %539 = vmatpush2.bf16.msra.mxu0 0
    %540 = vmatprep.subr.bf16.mxu0 0
    %541 = vmatpush2.bf16.msra.mxu0 0
    %542 = vmatprep.subr.bf16.mxu0 0
    %543 = vmatpush2.bf16.msra.mxu0 0
    %544 = vmatprep.subr.bf16.mxu0 0
    %545 = vmatpush2.bf16.msra.mxu0 0
    %546 = vmatprep.mubr.bf16.mxu0 0
    %547 = vmatmul.mubr.bf16.gmra.mxu0 %v512
    %v548 = vpop.f32.mrf.mxu0
    %v549 = vadd.f32 0.0, %v548
    %v550 = vpop.f32.mrf.mxu0
    %v551 = vpop.f32.mrf.mxu0
    %v552 = vadd.f32 0.0, %v551
    %v553 = vpop.f32.mrf.mxu0
    %554 = vdwg.mxu0
    %v555 = vpack.c.bf16 %v552, %v549
    %s556 = scalar_lea.vmem [#allocation6], 64
    %v557 = vld [vmem:[%s556] sm:$0xf]
    %v558 = vld [vmem:[%s556 + $0x4] sm:$0xf]
    %v559 = vld [vmem:[%s556 + $0x8] sm:$0xf]
    %v560 = vld [vmem:[%s556 + $0xc] sm:$0xf]
    %v561 = vld [vmem:[%s556 + $0x10] sm:$0xf]
    %v562 = vld [vmem:[%s556 + $0x14] sm:$0xf]
    %v563 = vld [vmem:[%s556 + $0x18] sm:$0xf]
    %v564 = vld [vmem:[%s556 + $0x1c] sm:$0xf]
    %v573 = vunpack.c.l.b16 %v557
    %v574 = vunpack.c.l.b16 %v558
    %v575 = vunpack.c.l.b16 %v559
    %v576 = vunpack.c.l.b16 %v560
    %v577 = vunpack.c.l.b16 %v561
    %v578 = vunpack.c.l.b16 %v562
    %v579 = vunpack.c.l.b16 %v563
    %v580 = vunpack.c.l.b16 %v564
    %v581 = vpack.c.b16 %v574, %v573
    %v582 = vpack.c.b16 %v576, %v575
    %v583 = vpack.c.b16 %v578, %v577
    %v584 = vpack.c.b16 %v580, %v579
    %v590 = vsel %vm390, %v555, 0
    %592 = vmatprep.subr.bf16.mxu0 0
    %593 = vmatpush1.bf16.msra.mxu0 0
    %594 = vmatprep.subr.bf16.mxu0 0
    %595 = vmatpush1.bf16.msra.mxu0 0
    %596 = vmatprep.subr.bf16.mxu0 0
    %597 = vmatpush1.bf16.msra.mxu0 0
    %598 = vmatprep.subr.bf16.mxu0 0
    %599 = vmatpush1.bf16.msra.mxu0 0
    %600 = vmatprep.subr.bf16.mxu0 0
    %601 = vmatpush1.bf16.msra.mxu0 %v584
    %602 = vmatprep.subr.bf16.mxu0 0
    %603 = vmatpush1.bf16.msra.mxu0 %v583
    %604 = vmatprep.subr.bf16.mxu0 0
    %605 = vmatpush1.bf16.msra.mxu0 %v582
    %606 = vmatprep.subr.bf16.mxu0 0
    %607 = vmatpush1.bf16.msra.mxu0 %v581
    %608 = vmatprep.subr.bf16.mxu0 0
    %609 = vmatpush2.bf16.msra.mxu0 0
    %610 = vmatprep.subr.bf16.mxu0 0
    %611 = vmatpush2.bf16.msra.mxu0 0
    %612 = vmatprep.subr.bf16.mxu0 0
    %613 = vmatpush2.bf16.msra.mxu0 0
    %614 = vmatprep.subr.bf16.mxu0 0
    %615 = vmatpush2.bf16.msra.mxu0 0
    %616 = vmatprep.subr.bf16.mxu0 0
    %617 = vmatpush2.bf16.msra.mxu0 0
    %618 = vmatprep.subr.bf16.mxu0 0
    %619 = vmatpush2.bf16.msra.mxu0 0
    %620 = vmatprep.subr.bf16.mxu0 0
    %621 = vmatpush2.bf16.msra.mxu0 0
    %622 = vmatprep.subr.bf16.mxu0 0
    %623 = vmatpush2.bf16.msra.mxu0 0
    %624 = vmatprep.mubr.bf16.mxu0 0
    %625 = vmatmul.mubr.bf16.gmra.mxu0 %v590
    %v626 = vpop.f32.mrf.mxu0
    %v627 = vadd.f32 0.0, %v626
    %v628 = vpop.f32.mrf.mxu0
    %v629 = vpop.f32.mrf.mxu0
    %v630 = vadd.f32 0.0, %v629
    %v631 = vpop.f32.mrf.mxu0
    %632 = vdwg.mxu0
    %v633 = vadd.f32 %v497, %v627
    %v634 = vadd.f32 %v500, %v630
    %v635 = vld [vmem:[%s4] sm:$0x1]
    %v637 = vlaneseq
    %v638 = vshrl.u32 %v637, 7
    %v639 = vsub.s32 0, %v638
    %v640 = vrot.slane %v635, %v639
    %v642 = vadd.f32 %v633, %v640
    %v643 = vadd.f32 %v634, %v640
    %vm644 = vcmp.gt.f32.partialorder %v642, 0.0
    %vm645 = vcmp.gt.f32.partialorder %v643, 0.0
    %v646 = vmul.f32 %v642, 0.01
    %v647 = vmul.f32 %v643, 0.01
    %v648 = vsel %vm644, %v642, %v646
    %v649 = vsel %vm645, %v643, %v647
    %v650 = vpack.c.bf16 %v649, %v648
    %v651 = vld [vmem:[#allocation7] sm:$0xf]
    %vm652 = vcmask 130048
    %v654 = vsel %vm652, %v651, 0
    %656 = vmatprep.subr.bf16.mxu0 0
    %657 = vmatpush1.bf16.msra.mxu0 0
    %658 = vmatprep.subr.bf16.mxu0 0
    %659 = vmatpush1.bf16.msra.mxu0 0
    %660 = vmatprep.subr.bf16.mxu0 0
    %661 = vmatpush1.bf16.msra.mxu0 0
    %662 = vmatprep.subr.bf16.mxu0 0
    %663 = vmatpush1.bf16.msra.mxu0 0
    %664 = vmatprep.subr.bf16.mxu0 0
    %665 = vmatpush1.bf16.msra.mxu0 0
    %666 = vmatprep.subr.bf16.mxu0 0
    %667 = vmatpush1.bf16.msra.mxu0 0
    %668 = vmatprep.subr.bf16.mxu0 0
    %669 = vmatpush1.bf16.msra.mxu0 0
    %670 = vmatprep.subr.bf16.mxu0 0
    %671 = vmatpush1.bf16.msra.mxu0 %v650
    %672 = vmatprep.subr.bf16.mxu0 0
    %673 = vmatpush2.bf16.msra.mxu0 0
    %674 = vmatprep.subr.bf16.mxu0 0
    %675 = vmatpush2.bf16.msra.mxu0 0
    %676 = vmatprep.subr.bf16.mxu0 0
    %677 = vmatpush2.bf16.msra.mxu0 0
    %678 = vmatprep.subr.bf16.mxu0 0
    %679 = vmatpush2.bf16.msra.mxu0 0
    %680 = vmatprep.subr.bf16.mxu0 0
    %681 = vmatpush2.bf16.msra.mxu0 0
    %682 = vmatprep.subr.bf16.mxu0 0
    %683 = vmatpush2.bf16.msra.mxu0 0
    %684 = vmatprep.subr.bf16.mxu0 0
    %685 = vmatpush2.bf16.msra.mxu0 0
    %686 = vmatprep.subr.bf16.mxu0 0
    %687 = vmatpush2.bf16.msra.mxu0 0
    %688 = vmatprep.mubr.bf16.mxu0 0
    %689 = vmatmul.mubr.bf16.gmra.mxu0 %v654
    %v690 = vpop.f32.mrf.mxu0
    %v691 = vadd.f32 0.0, %v690
    %v692 = vpop.f32.mrf.mxu0
    %v693 = vpop.f32.mrf.mxu0
    %v694 = vpop.f32.mrf.mxu0
    %695 = vdwg.mxu0
    %v696 = vpack.c.bf16 %v691, %v691
    %v697 = vld [vmem:[%s6] sm:$0xf]
    %v698 = vld [vmem:[%s6 + $0x4] sm:$0xf]
    %v699 = vld [vmem:[%s6 + $0x8] sm:$0xf]
    %v700 = vld [vmem:[%s6 + $0xc] sm:$0xf]
    %v701 = vld [vmem:[%s6 + $0x10] sm:$0xf]
    %v702 = vld [vmem:[%s6 + $0x14] sm:$0xf]
    %v703 = vld [vmem:[%s6 + $0x18] sm:$0xf]
    %v704 = vld [vmem:[%s6 + $0x1c] sm:$0xf]
    %v705 = vld [vmem:[%s6 + $0x20] sm:$0xf]
    %v706 = vld [vmem:[%s6 + $0x24] sm:$0xf]
    %v707 = vld [vmem:[%s6 + $0x28] sm:$0xf]
    %v708 = vld [vmem:[%s6 + $0x2c] sm:$0xf]
    %v709 = vld [vmem:[%s6 + $0x30] sm:$0xf]
    %v710 = vld [vmem:[%s6 + $0x34] sm:$0xf]
    %v711 = vld [vmem:[%s6 + $0x38] sm:$0xf]
    %v712 = vld [vmem:[%s6 + $0x3c] sm:$0xf]
    %s713 = scalar_lea.vmem [#allocation7], 4
    %v714 = vld [vmem:[%s713] sm:$0xf]
    %v716 = vsel %vm652, %v714, 0
    %718 = vmatprep.subr.bf16.mxu0 0
    %719 = vmatpush1.bf16.msra.mxu0 0
    %720 = vmatprep.subr.bf16.mxu0 0
    %721 = vmatpush1.bf16.msra.mxu0 0
    %722 = vmatprep.subr.bf16.mxu0 0
    %723 = vmatpush1.bf16.msra.mxu0 0
    %724 = vmatprep.subr.bf16.mxu0 0
    %725 = vmatpush1.bf16.msra.mxu0 0
    %726 = vmatprep.subr.bf16.mxu0 0
    %727 = vmatpush1.bf16.msra.mxu0 0
    %728 = vmatprep.subr.bf16.mxu0 0
    %729 = vmatpush1.bf16.msra.mxu0 0
    %730 = vmatprep.subr.bf16.mxu0 0
    %731 = vmatpush1.bf16.msra.mxu0 0
    %732 = vmatprep.subr.bf16.mxu0 0
    %733 = vmatpush1.bf16.msra.mxu0 %v650
    %734 = vmatprep.subr.bf16.mxu0 0
    %735 = vmatpush2.bf16.msra.mxu0 0
    %736 = vmatprep.subr.bf16.mxu0 0
    %737 = vmatpush2.bf16.msra.mxu0 0
    %738 = vmatprep.subr.bf16.mxu0 0
    %739 = vmatpush2.bf16.msra.mxu0 0
    %740 = vmatprep.subr.bf16.mxu0 0
    %741 = vmatpush2.bf16.msra.mxu0 0
    %742 = vmatprep.subr.bf16.mxu0 0
    %743 = vmatpush2.bf16.msra.mxu0 0
    %744 = vmatprep.subr.bf16.mxu0 0
    %745 = vmatpush2.bf16.msra.mxu0 0
    %746 = vmatprep.subr.bf16.mxu0 0
    %747 = vmatpush2.bf16.msra.mxu0 0
    %748 = vmatprep.subr.bf16.mxu0 0
    %749 = vmatpush2.bf16.msra.mxu0 0
    %750 = vmatprep.mubr.bf16.mxu0 0
    %751 = vmatmul.mubr.bf16.gmra.mxu0 %v716
    %v752 = vpop.f32.mrf.mxu0
    %v753 = vadd.f32 0.0, %v752
    %v754 = vpop.f32.mrf.mxu0
    %v755 = vpop.f32.mrf.mxu0
    %v756 = vpop.f32.mrf.mxu0
    %757 = vdwg.mxu0
    %v758 = vpack.c.bf16 %v753, %v753
    %s759 = scalar_lea.vmem %s6, 64
    %v760 = vld [vmem:[%s759] sm:$0xf]
    %v761 = vld [vmem:[%s759 + $0x4] sm:$0xf]
    %v762 = vld [vmem:[%s759 + $0x8] sm:$0xf]
    %v763 = vld [vmem:[%s759 + $0xc] sm:$0xf]
    %v764 = vld [vmem:[%s759 + $0x10] sm:$0xf]
    %v765 = vld [vmem:[%s759 + $0x14] sm:$0xf]
    %v766 = vld [vmem:[%s759 + $0x18] sm:$0xf]
    %v767 = vld [vmem:[%s759 + $0x1c] sm:$0xf]
    %v768 = vld [vmem:[%s759 + $0x20] sm:$0xf]
    %v769 = vld [vmem:[%s759 + $0x24] sm:$0xf]
    %v770 = vld [vmem:[%s759 + $0x28] sm:$0xf]
    %v771 = vld [vmem:[%s759 + $0x2c] sm:$0xf]
    %v772 = vld [vmem:[%s759 + $0x30] sm:$0xf]
    %v773 = vld [vmem:[%s759 + $0x34] sm:$0xf]
    %v774 = vld [vmem:[%s759 + $0x38] sm:$0xf]
    %v775 = vld [vmem:[%s759 + $0x3c] sm:$0xf]
    %v792 = vunpack.c.l.b16 %v760
    %v793 = vunpack.c.l.b16 %v761
    %v794 = vunpack.c.l.b16 %v762
    %v795 = vunpack.c.l.b16 %v763
    %v796 = vunpack.c.l.b16 %v764
    %v797 = vunpack.c.l.b16 %v765
    %v798 = vunpack.c.l.b16 %v766
    %v799 = vunpack.c.l.b16 %v767
    %v800 = vunpack.c.l.b16 %v768
    %v801 = vunpack.c.l.b16 %v769
    %v802 = vunpack.c.l.b16 %v770
    %v803 = vunpack.c.l.b16 %v771
    %v804 = vunpack.c.l.b16 %v772
    %v805 = vunpack.c.l.b16 %v773
    %v806 = vunpack.c.l.b16 %v774
    %v807 = vunpack.c.l.b16 %v775
    %v808 = vpack.c.b16 %v793, %v792
    %v809 = vpack.c.b16 %v795, %v794
    %v810 = vpack.c.b16 %v797, %v796
    %v811 = vpack.c.b16 %v799, %v798
    %v812 = vpack.c.b16 %v801, %v800
    %v813 = vpack.c.b16 %v803, %v802
    %v814 = vpack.c.b16 %v805, %v804
    %v815 = vpack.c.b16 %v807, %v806
    %824 = vmatprep.subr.bf16.mxu0 0
    %825 = vmatpush1.bf16.msra.mxu0 %v815
    %826 = vmatprep.subr.bf16.mxu0 0
    %827 = vmatpush1.bf16.msra.mxu0 %v814
    %828 = vmatprep.subr.bf16.mxu0 0
    %829 = vmatpush1.bf16.msra.mxu0 %v813
    %830 = vmatprep.subr.bf16.mxu0 0
    %831 = vmatpush1.bf16.msra.mxu0 %v812
    %832 = vmatprep.subr.bf16.mxu0 0
    %833 = vmatpush1.bf16.msra.mxu0 %v811
    %834 = vmatprep.subr.bf16.mxu0 0
    %835 = vmatpush1.bf16.msra.mxu0 %v810
    %836 = vmatprep.subr.bf16.mxu0 0
    %837 = vmatpush1.bf16.msra.mxu0 %v809
    %838 = vmatprep.subr.bf16.mxu0 0
    %839 = vmatpush1.bf16.msra.mxu0 %v808
    %840 = vmatprep.subr.bf16.mxu0 0
    %841 = vmatpush2.bf16.msra.mxu0 0
    %842 = vmatprep.subr.bf16.mxu0 0
    %843 = vmatpush2.bf16.msra.mxu0 0
    %844 = vmatprep.subr.bf16.mxu0 0
    %845 = vmatpush2.bf16.msra.mxu0 0
    %846 = vmatprep.subr.bf16.mxu0 0
    %847 = vmatpush2.bf16.msra.mxu0 0
    %848 = vmatprep.subr.bf16.mxu0 0
    %849 = vmatpush2.bf16.msra.mxu0 0
    %850 = vmatprep.subr.bf16.mxu0 0
    %851 = vmatpush2.bf16.msra.mxu0 0
    %852 = vmatprep.subr.bf16.mxu0 0
    %853 = vmatpush2.bf16.msra.mxu0 0
    %854 = vmatprep.subr.bf16.mxu0 0
    %855 = vmatpush2.bf16.msra.mxu0 0
    %856 = vmatprep.mubr.bf16.mxu0 0
    %857 = vmatmul.mubr.bf16.gmra.mxu0 %v758
    %v858 = vpop.f32.mrf.mxu0
    %v859 = vadd.f32 0.0, %v858
    %v860 = vpop.f32.mrf.mxu0
    %v861 = vpop.f32.mrf.mxu0
    %v862 = vpop.f32.mrf.mxu0
    %863 = vdwg.mxu0
    %v880 = vunpack.c.l.b16 %v697
    %v881 = vunpack.c.l.b16 %v698
    %v882 = vunpack.c.l.b16 %v699
    %v883 = vunpack.c.l.b16 %v700
    %v884 = vunpack.c.l.b16 %v701
    %v885 = vunpack.c.l.b16 %v702
    %v886 = vunpack.c.l.b16 %v703
    %v887 = vunpack.c.l.b16 %v704
    %v888 = vunpack.c.l.b16 %v705
    %v889 = vunpack.c.l.b16 %v706
    %v890 = vunpack.c.l.b16 %v707
    %v891 = vunpack.c.l.b16 %v708
    %v892 = vunpack.c.l.b16 %v709
    %v893 = vunpack.c.l.b16 %v710
    %v894 = vunpack.c.l.b16 %v711
    %v895 = vunpack.c.l.b16 %v712
    %v896 = vpack.c.b16 %v881, %v880
    %v897 = vpack.c.b16 %v883, %v882
    %v898 = vpack.c.b16 %v885, %v884
    %v899 = vpack.c.b16 %v887, %v886
    %v900 = vpack.c.b16 %v889, %v888
    %v901 = vpack.c.b16 %v891, %v890
    %v902 = vpack.c.b16 %v893, %v892
    %v903 = vpack.c.b16 %v895, %v894
    %912 = vmatprep.subr.bf16.mxu0 0
    %913 = vmatpush1.bf16.msra.mxu0 %v903
    %914 = vmatprep.subr.bf16.mxu0 0
    %915 = vmatpush1.bf16.msra.mxu0 %v902
    %916 = vmatprep.subr.bf16.mxu0 0
    %917 = vmatpush1.bf16.msra.mxu0 %v901
    %918 = vmatprep.subr.bf16.mxu0 0
    %919 = vmatpush1.bf16.msra.mxu0 %v900
    %920 = vmatprep.subr.bf16.mxu0 0
    %921 = vmatpush1.bf16.msra.mxu0 %v899
    %922 = vmatprep.subr.bf16.mxu0 0
    %923 = vmatpush1.bf16.msra.mxu0 %v898
    %924 = vmatprep.subr.bf16.mxu0 0
    %925 = vmatpush1.bf16.msra.mxu0 %v897
    %926 = vmatprep.subr.bf16.mxu0 0
    %927 = vmatpush1.bf16.msra.mxu0 %v896
    %928 = vmatprep.subr.bf16.mxu0 0
    %929 = vmatpush2.bf16.msra.mxu0 0
    %930 = vmatprep.subr.bf16.mxu0 0
    %931 = vmatpush2.bf16.msra.mxu0 0
    %932 = vmatprep.subr.bf16.mxu0 0
    %933 = vmatpush2.bf16.msra.mxu0 0
    %934 = vmatprep.subr.bf16.mxu0 0
    %935 = vmatpush2.bf16.msra.mxu0 0
    %936 = vmatprep.subr.bf16.mxu0 0
    %937 = vmatpush2.bf16.msra.mxu0 0
    %938 = vmatprep.subr.bf16.mxu0 0
    %939 = vmatpush2.bf16.msra.mxu0 0
    %940 = vmatprep.subr.bf16.mxu0 0
    %941 = vmatpush2.bf16.msra.mxu0 0
    %942 = vmatprep.subr.bf16.mxu0 0
    %943 = vmatpush2.bf16.msra.mxu0 0
    %944 = vmatprep.mubr.bf16.mxu0 0
    %945 = vmatmul.mubr.bf16.gmra.mxu0 %v696
    %v946 = vpop.f32.mrf.mxu0
    %v947 = vadd.f32 %v859, %v946
    %v948 = vpop.f32.mrf.mxu0
    %v949 = vpop.f32.mrf.mxu0
    %v950 = vpop.f32.mrf.mxu0
    %951 = vdwg.mxu0
    %s952 = scalar_lea.vmem [#allocation7], 8
    %v953 = vld [vmem:[%s952] sm:$0xf]
    %v955 = vsel %vm652, %v953, 0
    %957 = vmatprep.subr.bf16.mxu0 0
    %958 = vmatpush1.bf16.msra.mxu0 0
    %959 = vmatprep.subr.bf16.mxu0 0
    %960 = vmatpush1.bf16.msra.mxu0 0
    %961 = vmatprep.subr.bf16.mxu0 0
    %962 = vmatpush1.bf16.msra.mxu0 0
    %963 = vmatprep.subr.bf16.mxu0 0
    %964 = vmatpush1.bf16.msra.mxu0 0
    %965 = vmatprep.subr.bf16.mxu0 0
    %966 = vmatpush1.bf16.msra.mxu0 0
    %967 = vmatprep.subr.bf16.mxu0 0
    %968 = vmatpush1.bf16.msra.mxu0 0
    %969 = vmatprep.subr.bf16.mxu0 0
    %970 = vmatpush1.bf16.msra.mxu0 0
    %971 = vmatprep.subr.bf16.mxu0 0
    %972 = vmatpush1.bf16.msra.mxu0 %v650
    %973 = vmatprep.subr.bf16.mxu0 0
    %974 = vmatpush2.bf16.msra.mxu0 0
    %975 = vmatprep.subr.bf16.mxu0 0
    %976 = vmatpush2.bf16.msra.mxu0 0
    %977 = vmatprep.subr.bf16.mxu0 0
    %978 = vmatpush2.bf16.msra.mxu0 0
    %979 = vmatprep.subr.bf16.mxu0 0
    %980 = vmatpush2.bf16.msra.mxu0 0
    %981 = vmatprep.subr.bf16.mxu0 0
    %982 = vmatpush2.bf16.msra.mxu0 0
    %983 = vmatprep.subr.bf16.mxu0 0
    %984 = vmatpush2.bf16.msra.mxu0 0
    %985 = vmatprep.subr.bf16.mxu0 0
    %986 = vmatpush2.bf16.msra.mxu0 0
    %987 = vmatprep.subr.bf16.mxu0 0
    %988 = vmatpush2.bf16.msra.mxu0 0
    %989 = vmatprep.mubr.bf16.mxu0 0
    %990 = vmatmul.mubr.bf16.gmra.mxu0 %v955
    %v991 = vpop.f32.mrf.mxu0
    %v992 = vadd.f32 0.0, %v991
    %v993 = vpop.f32.mrf.mxu0
    %v994 = vpop.f32.mrf.mxu0
    %v995 = vpop.f32.mrf.mxu0
    %996 = vdwg.mxu0
    %v997 = vpack.c.bf16 %v992, %v992
    %s998 = scalar_lea.vmem %s6, 128
    %v999 = vld [vmem:[%s998] sm:$0xf]
    %v1000 = vld [vmem:[%s998 + $0x4] sm:$0xf]
    %v1001 = vld [vmem:[%s998 + $0x8] sm:$0xf]
    %v1002 = vld [vmem:[%s998 + $0xc] sm:$0xf]
    %v1003 = vld [vmem:[%s998 + $0x10] sm:$0xf]
    %v1004 = vld [vmem:[%s998 + $0x14] sm:$0xf]
    %v1005 = vld [vmem:[%s998 + $0x18] sm:$0xf]
    %v1006 = vld [vmem:[%s998 + $0x1c] sm:$0xf]
    %v1007 = vld [vmem:[%s998 + $0x20] sm:$0xf]
    %v1008 = vld [vmem:[%s998 + $0x24] sm:$0xf]
    %v1009 = vld [vmem:[%s998 + $0x28] sm:$0xf]
    %v1010 = vld [vmem:[%s998 + $0x2c] sm:$0xf]
    %v1011 = vld [vmem:[%s998 + $0x30] sm:$0xf]
    %v1012 = vld [vmem:[%s998 + $0x34] sm:$0xf]
    %v1013 = vld [vmem:[%s998 + $0x38] sm:$0xf]
    %v1014 = vld [vmem:[%s998 + $0x3c] sm:$0xf]
    %v1031 = vunpack.c.l.b16 %v999
    %v1032 = vunpack.c.l.b16 %v1000
    %v1033 = vunpack.c.l.b16 %v1001
    %v1034 = vunpack.c.l.b16 %v1002
    %v1035 = vunpack.c.l.b16 %v1003
    %v1036 = vunpack.c.l.b16 %v1004
    %v1037 = vunpack.c.l.b16 %v1005
    %v1038 = vunpack.c.l.b16 %v1006
    %v1039 = vunpack.c.l.b16 %v1007
    %v1040 = vunpack.c.l.b16 %v1008
    %v1041 = vunpack.c.l.b16 %v1009
    %v1042 = vunpack.c.l.b16 %v1010
    %v1043 = vunpack.c.l.b16 %v1011
    %v1044 = vunpack.c.l.b16 %v1012
    %v1045 = vunpack.c.l.b16 %v1013
    %v1046 = vunpack.c.l.b16 %v1014
    %v1047 = vpack.c.b16 %v1032, %v1031
    %v1048 = vpack.c.b16 %v1034, %v1033
    %v1049 = vpack.c.b16 %v1036, %v1035
    %v1050 = vpack.c.b16 %v1038, %v1037
    %v1051 = vpack.c.b16 %v1040, %v1039
    %v1052 = vpack.c.b16 %v1042, %v1041
    %v1053 = vpack.c.b16 %v1044, %v1043
    %v1054 = vpack.c.b16 %v1046, %v1045
    %1063 = vmatprep.subr.bf16.mxu0 0
    %1064 = vmatpush1.bf16.msra.mxu0 %v1054
    %1065 = vmatprep.subr.bf16.mxu0 0
    %1066 = vmatpush1.bf16.msra.mxu0 %v1053
    %1067 = vmatprep.subr.bf16.mxu0 0
    %1068 = vmatpush1.bf16.msra.mxu0 %v1052
    %1069 = vmatprep.subr.bf16.mxu0 0
    %1070 = vmatpush1.bf16.msra.mxu0 %v1051
    %1071 = vmatprep.subr.bf16.mxu0 0
    %1072 = vmatpush1.bf16.msra.mxu0 %v1050
    %1073 = vmatprep.subr.bf16.mxu0 0
    %1074 = vmatpush1.bf16.msra.mxu0 %v1049
    %1075 = vmatprep.subr.bf16.mxu0 0
    %1076 = vmatpush1.bf16.msra.mxu0 %v1048
    %1077 = vmatprep.subr.bf16.mxu0 0
    %1078 = vmatpush1.bf16.msra.mxu0 %v1047
    %1079 = vmatprep.subr.bf16.mxu0 0
    %1080 = vmatpush2.bf16.msra.mxu0 0
    %1081 = vmatprep.subr.bf16.mxu0 0
    %1082 = vmatpush2.bf16.msra.mxu0 0
    %1083 = vmatprep.subr.bf16.mxu0 0
    %1084 = vmatpush2.bf16.msra.mxu0 0
    %1085 = vmatprep.subr.bf16.mxu0 0
    %1086 = vmatpush2.bf16.msra.mxu0 0
    %1087 = vmatprep.subr.bf16.mxu0 0
    %1088 = vmatpush2.bf16.msra.mxu0 0
    %1089 = vmatprep.subr.bf16.mxu0 0
    %1090 = vmatpush2.bf16.msra.mxu0 0
    %1091 = vmatprep.subr.bf16.mxu0 0
    %1092 = vmatpush2.bf16.msra.mxu0 0
    %1093 = vmatprep.subr.bf16.mxu0 0
    %1094 = vmatpush2.bf16.msra.mxu0 0
    %1095 = vmatprep.mubr.bf16.mxu0 0
    %1096 = vmatmul.mubr.bf16.gmra.mxu0 %v997
    %v1097 = vpop.f32.mrf.mxu0
    %v1098 = vadd.f32 0.0, %v1097
    %v1099 = vpop.f32.mrf.mxu0
    %v1100 = vpop.f32.mrf.mxu0
    %v1101 = vpop.f32.mrf.mxu0
    %1102 = vdwg.mxu0
    %v1103 = vadd.f32 %v947, %v1098
    %v1104 = vld [vmem:[#allocation9] sm:$0x1]
    %v1106 = vlaneseq
    %v1107 = vshrl.u32 %v1106, 7
    %v1108 = vsub.s32 0, %v1107
    %v1109 = vrot.slane %v1104, %v1108
    %v1111 = vadd.f32 %v1103, %v1109
    %vm1112 = vcmp.gt.f32.partialorder %v1111, 0.0
    %v1113 = vmul.f32 %v1111, 0.01
    %v1114 = vsel %vm1112, %v1111, %v1113
    %v1115 = vpack.c.bf16 %v1114, %v1114
    %v1116 = vld [vmem:[#allocation10] sm:$0x1]
    %vm1117 = vcmask 64512
    %v1119 = vsel %vm1117, %v1116, 0
    %vm1121 = vcmask 1043456
    %v1123 = vsel %vm1121, %v1115, 0
    %1125 = vmatprep.subr.bf16.mxu0 0
    %1126 = vmatpush1.bf16.msra.mxu0 0
    %1127 = vmatprep.subr.bf16.mxu0 0
    %1128 = vmatpush1.bf16.msra.mxu0 0
    %1129 = vmatprep.subr.bf16.mxu0 0
    %1130 = vmatpush1.bf16.msra.mxu0 0
    %1131 = vmatprep.subr.bf16.mxu0 0
    %1132 = vmatpush1.bf16.msra.mxu0 0
    %1133 = vmatprep.subr.bf16.mxu0 0
    %1134 = vmatpush1.bf16.msra.mxu0 0
    %1135 = vmatprep.subr.bf16.mxu0 0
    %1136 = vmatpush1.bf16.msra.mxu0 0
    %1137 = vmatprep.subr.bf16.mxu0 0
    %1138 = vmatpush1.bf16.msra.mxu0 0
    %1139 = vmatprep.subr.bf16.mxu0 0
    %1140 = vmatpush1.bf16.msra.mxu0 %v1123
    %1141 = vmatprep.subr.bf16.mxu0 0
    %1142 = vmatpush2.bf16.msra.mxu0 0
    %1143 = vmatprep.subr.bf16.mxu0 0
    %1144 = vmatpush2.bf16.msra.mxu0 0
    %1145 = vmatprep.subr.bf16.mxu0 0
    %1146 = vmatpush2.bf16.msra.mxu0 0
    %1147 = vmatprep.subr.bf16.mxu0 0
    %1148 = vmatpush2.bf16.msra.mxu0 0
    %1149 = vmatprep.subr.bf16.mxu0 0
    %1150 = vmatpush2.bf16.msra.mxu0 0
    %1151 = vmatprep.subr.bf16.mxu0 0
    %1152 = vmatpush2.bf16.msra.mxu0 0
    %1153 = vmatprep.subr.bf16.mxu0 0
    %1154 = vmatpush2.bf16.msra.mxu0 0
    %1155 = vmatprep.subr.bf16.mxu0 0
    %1156 = vmatpush2.bf16.msra.mxu0 0
    %1157 = vmatprep.mubr.bf16.mxu0 0
    %1158 = vmatmul.mubr.bf16.gmra.mxu0 %v1119
    %v1159 = vpop.f32.mrf.mxu0
    %v1160 = vadd.f32 0.0, %v1159
    %v1161 = vpop.f32.mrf.mxu0
    %v1162 = vpop.f32.mrf.mxu0
    %v1163 = vpop.f32.mrf.mxu0
    %1164 = vdwg.mxu0
    %v1165 = vpack.c.bf16 %v1160, %v1160
    %v1166 = vld [vmem:[%s9] sm:$0xf]
    %v1167 = vld [vmem:[%s9 + $0x4] sm:$0xf]
    %v1168 = vld [vmem:[%s9 + $0x8] sm:$0xf]
    %v1169 = vld [vmem:[%s9 + $0xc] sm:$0xf]
    %v1170 = vld [vmem:[%s9 + $0x10] sm:$0xf]
    %v1171 = vld [vmem:[%s9 + $0x14] sm:$0xf]
    %v1172 = vld [vmem:[%s9 + $0x18] sm:$0xf]
    %v1173 = vld [vmem:[%s9 + $0x1c] sm:$0xf]
    %v1174 = vld [vmem:[%s9 + $0x20] sm:$0xf]
    %v1175 = vld [vmem:[%s9 + $0x24] sm:$0xf]
    %v1176 = vld [vmem:[%s9 + $0x28] sm:$0xf]
    %v1177 = vld [vmem:[%s9 + $0x2c] sm:$0xf]
    %v1178 = vld [vmem:[%s9 + $0x30] sm:$0xf]
    %v1179 = vld [vmem:[%s9 + $0x34] sm:$0xf]
    %v1180 = vld [vmem:[%s9 + $0x38] sm:$0xf]
    %v1181 = vld [vmem:[%s9 + $0x3c] sm:$0xf]
    %s1182 = scalar_lea.vmem [#allocation10], 1
    %v1183 = vld [vmem:[%s1182] sm:$0x1]
    %v1185 = vsel %vm1117, %v1183, 0
    %1187 = vmatprep.subr.bf16.mxu0 0
    %1188 = vmatpush1.bf16.msra.mxu0 0
    %1189 = vmatprep.subr.bf16.mxu0 0
    %1190 = vmatpush1.bf16.msra.mxu0 0
    %1191 = vmatprep.subr.bf16.mxu0 0
    %1192 = vmatpush1.bf16.msra.mxu0 0
    %1193 = vmatprep.subr.bf16.mxu0 0
    %1194 = vmatpush1.bf16.msra.mxu0 0
    %1195 = vmatprep.subr.bf16.mxu0 0
    %1196 = vmatpush1.bf16.msra.mxu0 0
    %1197 = vmatprep.subr.bf16.mxu0 0
    %1198 = vmatpush1.bf16.msra.mxu0 0
    %1199 = vmatprep.subr.bf16.mxu0 0
    %1200 = vmatpush1.bf16.msra.mxu0 0
    %1201 = vmatprep.subr.bf16.mxu0 0
    %1202 = vmatpush1.bf16.msra.mxu0 %v1123
    %1203 = vmatprep.subr.bf16.mxu0 0
    %1204 = vmatpush2.bf16.msra.mxu0 0
    %1205 = vmatprep.subr.bf16.mxu0 0
    %1206 = vmatpush2.bf16.msra.mxu0 0
    %1207 = vmatprep.subr.bf16.mxu0 0
    %1208 = vmatpush2.bf16.msra.mxu0 0
    %1209 = vmatprep.subr.bf16.mxu0 0
    %1210 = vmatpush2.bf16.msra.mxu0 0
    %1211 = vmatprep.subr.bf16.mxu0 0
    %1212 = vmatpush2.bf16.msra.mxu0 0
    %1213 = vmatprep.subr.bf16.mxu0 0
    %1214 = vmatpush2.bf16.msra.mxu0 0
    %1215 = vmatprep.subr.bf16.mxu0 0
    %1216 = vmatpush2.bf16.msra.mxu0 0
    %1217 = vmatprep.subr.bf16.mxu0 0
    %1218 = vmatpush2.bf16.msra.mxu0 0
    %1219 = vmatprep.mubr.bf16.mxu0 0
    %1220 = vmatmul.mubr.bf16.gmra.mxu0 %v1185
    %v1221 = vpop.f32.mrf.mxu0
    %v1222 = vadd.f32 0.0, %v1221
    %v1223 = vpop.f32.mrf.mxu0
    %v1224 = vpop.f32.mrf.mxu0
    %v1225 = vpop.f32.mrf.mxu0
    %1226 = vdwg.mxu0
    %v1227 = vpack.c.bf16 %v1222, %v1222
    %s1228 = scalar_lea.vmem %s9, 64
    %v1229 = vld [vmem:[%s1228] sm:$0xf]
    %v1230 = vld [vmem:[%s1228 + $0x4] sm:$0xf]
    %v1231 = vld [vmem:[%s1228 + $0x8] sm:$0xf]
    %v1232 = vld [vmem:[%s1228 + $0xc] sm:$0xf]
    %v1233 = vld [vmem:[%s1228 + $0x10] sm:$0xf]
    %v1234 = vld [vmem:[%s1228 + $0x14] sm:$0xf]
    %v1235 = vld [vmem:[%s1228 + $0x18] sm:$0xf]
    %v1236 = vld [vmem:[%s1228 + $0x1c] sm:$0xf]
    %v1237 = vld [vmem:[%s1228 + $0x20] sm:$0xf]
    %v1238 = vld [vmem:[%s1228 + $0x24] sm:$0xf]
    %v1239 = vld [vmem:[%s1228 + $0x28] sm:$0xf]
    %v1240 = vld [vmem:[%s1228 + $0x2c] sm:$0xf]
    %v1241 = vld [vmem:[%s1228 + $0x30] sm:$0xf]
    %v1242 = vld [vmem:[%s1228 + $0x34] sm:$0xf]
    %v1243 = vld [vmem:[%s1228 + $0x38] sm:$0xf]
    %v1244 = vld [vmem:[%s1228 + $0x3c] sm:$0xf]
    %v1261 = vunpack.c.l.b16 %v1229
    %v1262 = vunpack.c.l.b16 %v1230
    %v1263 = vunpack.c.l.b16 %v1231
    %v1264 = vunpack.c.l.b16 %v1232
    %v1265 = vunpack.c.l.b16 %v1233
    %v1266 = vunpack.c.l.b16 %v1234
    %v1267 = vunpack.c.l.b16 %v1235
    %v1268 = vunpack.c.l.b16 %v1236
    %v1269 = vunpack.c.l.b16 %v1237
    %v1270 = vunpack.c.l.b16 %v1238
    %v1271 = vunpack.c.l.b16 %v1239
    %v1272 = vunpack.c.l.b16 %v1240
    %v1273 = vunpack.c.l.b16 %v1241
    %v1274 = vunpack.c.l.b16 %v1242
    %v1275 = vunpack.c.l.b16 %v1243
    %v1276 = vunpack.c.l.b16 %v1244
    %v1277 = vpack.c.b16 %v1262, %v1261
    %v1278 = vpack.c.b16 %v1264, %v1263
    %v1279 = vpack.c.b16 %v1266, %v1265
    %v1280 = vpack.c.b16 %v1268, %v1267
    %v1281 = vpack.c.b16 %v1270, %v1269
    %v1282 = vpack.c.b16 %v1272, %v1271
    %v1283 = vpack.c.b16 %v1274, %v1273
    %v1284 = vpack.c.b16 %v1276, %v1275
    %1293 = vmatprep.subr.bf16.mxu0 0
    %1294 = vmatpush1.bf16.msra.mxu0 %v1284
    %1295 = vmatprep.subr.bf16.mxu0 0
    %1296 = vmatpush1.bf16.msra.mxu0 %v1283
    %1297 = vmatprep.subr.bf16.mxu0 0
    %1298 = vmatpush1.bf16.msra.mxu0 %v1282
    %1299 = vmatprep.subr.bf16.mxu0 0
    %1300 = vmatpush1.bf16.msra.mxu0 %v1281
    %1301 = vmatprep.subr.bf16.mxu0 0
    %1302 = vmatpush1.bf16.msra.mxu0 %v1280
    %1303 = vmatprep.subr.bf16.mxu0 0
    %1304 = vmatpush1.bf16.msra.mxu0 %v1279
    %1305 = vmatprep.subr.bf16.mxu0 0
    %1306 = vmatpush1.bf16.msra.mxu0 %v1278
    %1307 = vmatprep.subr.bf16.mxu0 0
    %1308 = vmatpush1.bf16.msra.mxu0 %v1277
    %1309 = vmatprep.subr.bf16.mxu0 0
    %1310 = vmatpush2.bf16.msra.mxu0 0
    %1311 = vmatprep.subr.bf16.mxu0 0
    %1312 = vmatpush2.bf16.msra.mxu0 0
    %1313 = vmatprep.subr.bf16.mxu0 0
    %1314 = vmatpush2.bf16.msra.mxu0 0
    %1315 = vmatprep.subr.bf16.mxu0 0
    %1316 = vmatpush2.bf16.msra.mxu0 0
    %1317 = vmatprep.subr.bf16.mxu0 0
    %1318 = vmatpush2.bf16.msra.mxu0 0
    %1319 = vmatprep.subr.bf16.mxu0 0
    %1320 = vmatpush2.bf16.msra.mxu0 0
    %1321 = vmatprep.subr.bf16.mxu0 0
    %1322 = vmatpush2.bf16.msra.mxu0 0
    %1323 = vmatprep.subr.bf16.mxu0 0
    %1324 = vmatpush2.bf16.msra.mxu0 0
    %1325 = vmatprep.mubr.bf16.mxu0 0
    %1326 = vmatmul.mubr.bf16.gmra.mxu0 %v1227
    %v1327 = vpop.f32.mrf.mxu0
    %v1328 = vadd.f32 0.0, %v1327
    %v1329 = vpop.f32.mrf.mxu0
    %v1330 = vpop.f32.mrf.mxu0
    %v1331 = vpop.f32.mrf.mxu0
    %1332 = vdwg.mxu0
    %v1349 = vunpack.c.l.b16 %v1166
    %v1350 = vunpack.c.l.b16 %v1167
    %v1351 = vunpack.c.l.b16 %v1168
    %v1352 = vunpack.c.l.b16 %v1169
    %v1353 = vunpack.c.l.b16 %v1170
    %v1354 = vunpack.c.l.b16 %v1171
    %v1355 = vunpack.c.l.b16 %v1172
    %v1356 = vunpack.c.l.b16 %v1173
    %v1357 = vunpack.c.l.b16 %v1174
    %v1358 = vunpack.c.l.b16 %v1175
    %v1359 = vunpack.c.l.b16 %v1176
    %v1360 = vunpack.c.l.b16 %v1177
    %v1361 = vunpack.c.l.b16 %v1178
    %v1362 = vunpack.c.l.b16 %v1179
    %v1363 = vunpack.c.l.b16 %v1180
    %v1364 = vunpack.c.l.b16 %v1181
    %v1365 = vpack.c.b16 %v1350, %v1349
    %v1366 = vpack.c.b16 %v1352, %v1351
    %v1367 = vpack.c.b16 %v1354, %v1353
    %v1368 = vpack.c.b16 %v1356, %v1355
    %v1369 = vpack.c.b16 %v1358, %v1357
    %v1370 = vpack.c.b16 %v1360, %v1359
    %v1371 = vpack.c.b16 %v1362, %v1361
    %v1372 = vpack.c.b16 %v1364, %v1363
    %1381 = vmatprep.subr.bf16.mxu0 0
    %1382 = vmatpush1.bf16.msra.mxu0 %v1372
    %1383 = vmatprep.subr.bf16.mxu0 0
    %1384 = vmatpush1.bf16.msra.mxu0 %v1371
    %1385 = vmatprep.subr.bf16.mxu0 0
    %1386 = vmatpush1.bf16.msra.mxu0 %v1370
    %1387 = vmatprep.subr.bf16.mxu0 0
    %1388 = vmatpush1.bf16.msra.mxu0 %v1369
    %1389 = vmatprep.subr.bf16.mxu0 0
    %1390 = vmatpush1.bf16.msra.mxu0 %v1368
    %1391 = vmatprep.subr.bf16.mxu0 0
    %1392 = vmatpush1.bf16.msra.mxu0 %v1367
    %1393 = vmatprep.subr.bf16.mxu0 0
    %1394 = vmatpush1.bf16.msra.mxu0 %v1366
    %1395 = vmatprep.subr.bf16.mxu0 0
    %1396 = vmatpush1.bf16.msra.mxu0 %v1365
    %1397 = vmatprep.subr.bf16.mxu0 0
    %1398 = vmatpush2.bf16.msra.mxu0 0
    %1399 = vmatprep.subr.bf16.mxu0 0
    %1400 = vmatpush2.bf16.msra.mxu0 0
    %1401 = vmatprep.subr.bf16.mxu0 0
    %1402 = vmatpush2.bf16.msra.mxu0 0
    %1403 = vmatprep.subr.bf16.mxu0 0
    %1404 = vmatpush2.bf16.msra.mxu0 0
    %1405 = vmatprep.subr.bf16.mxu0 0
    %1406 = vmatpush2.bf16.msra.mxu0 0
    %1407 = vmatprep.subr.bf16.mxu0 0
    %1408 = vmatpush2.bf16.msra.mxu0 0
    %1409 = vmatprep.subr.bf16.mxu0 0
    %1410 = vmatpush2.bf16.msra.mxu0 0
    %1411 = vmatprep.subr.bf16.mxu0 0
    %1412 = vmatpush2.bf16.msra.mxu0 0
    %1413 = vmatprep.mubr.bf16.mxu0 0
    %1414 = vmatmul.mubr.bf16.gmra.mxu0 %v1165
    %v1415 = vpop.f32.mrf.mxu0
    %v1416 = vadd.f32 %v1328, %v1415
    %v1417 = vpop.f32.mrf.mxu0
    %v1418 = vpop.f32.mrf.mxu0
    %v1419 = vpop.f32.mrf.mxu0
    %1420 = vdwg.mxu0
    %s1421 = scalar_lea.vmem [#allocation10], 2
    %v1422 = vld [vmem:[%s1421] sm:$0x1]
    %v1424 = vsel %vm1117, %v1422, 0
    %1426 = vmatprep.subr.bf16.mxu0 0
    %1427 = vmatpush1.bf16.msra.mxu0 0
    %1428 = vmatprep.subr.bf16.mxu0 0
    %1429 = vmatpush1.bf16.msra.mxu0 0
    %1430 = vmatprep.subr.bf16.mxu0 0
    %1431 = vmatpush1.bf16.msra.mxu0 0
    %1432 = vmatprep.subr.bf16.mxu0 0
    %1433 = vmatpush1.bf16.msra.mxu0 0
    %1434 = vmatprep.subr.bf16.mxu0 0
    %1435 = vmatpush1.bf16.msra.mxu0 0
    %1436 = vmatprep.subr.bf16.mxu0 0
    %1437 = vmatpush1.bf16.msra.mxu0 0
    %1438 = vmatprep.subr.bf16.mxu0 0
    %1439 = vmatpush1.bf16.msra.mxu0 0
    %1440 = vmatprep.subr.bf16.mxu0 0
    %1441 = vmatpush1.bf16.msra.mxu0 %v1123
    %1442 = vmatprep.subr.bf16.mxu0 0
    %1443 = vmatpush2.bf16.msra.mxu0 0
    %1444 = vmatprep.subr.bf16.mxu0 0
    %1445 = vmatpush2.bf16.msra.mxu0 0
    %1446 = vmatprep.subr.bf16.mxu0 0
    %1447 = vmatpush2.bf16.msra.mxu0 0
    %1448 = vmatprep.subr.bf16.mxu0 0
    %1449 = vmatpush2.bf16.msra.mxu0 0
    %1450 = vmatprep.subr.bf16.mxu0 0
    %1451 = vmatpush2.bf16.msra.mxu0 0
    %1452 = vmatprep.subr.bf16.mxu0 0
    %1453 = vmatpush2.bf16.msra.mxu0 0
    %1454 = vmatprep.subr.bf16.mxu0 0
    %1455 = vmatpush2.bf16.msra.mxu0 0
    %1456 = vmatprep.subr.bf16.mxu0 0
    %1457 = vmatpush2.bf16.msra.mxu0 0
    %1458 = vmatprep.mubr.bf16.mxu0 0
    %1459 = vmatmul.mubr.bf16.gmra.mxu0 %v1424
    %v1460 = vpop.f32.mrf.mxu0
    %v1461 = vadd.f32 0.0, %v1460
    %v1462 = vpop.f32.mrf.mxu0
    %v1463 = vpop.f32.mrf.mxu0
    %v1464 = vpop.f32.mrf.mxu0
    %1465 = vdwg.mxu0
    %v1466 = vpack.c.bf16 %v1461, %v1461
    %s1467 = scalar_lea.vmem %s9, 128
    %v1468 = vld [vmem:[%s1467] sm:$0xf]
    %v1469 = vld [vmem:[%s1467 + $0x4] sm:$0xf]
    %v1470 = vld [vmem:[%s1467 + $0x8] sm:$0xf]
    %v1471 = vld [vmem:[%s1467 + $0xc] sm:$0xf]
    %v1472 = vld [vmem:[%s1467 + $0x10] sm:$0xf]
    %v1473 = vld [vmem:[%s1467 + $0x14] sm:$0xf]
    %v1474 = vld [vmem:[%s1467 + $0x18] sm:$0xf]
    %v1475 = vld [vmem:[%s1467 + $0x1c] sm:$0xf]
    %v1476 = vld [vmem:[%s1467 + $0x20] sm:$0xf]
    %v1477 = vld [vmem:[%s1467 + $0x24] sm:$0xf]
    %v1478 = vld [vmem:[%s1467 + $0x28] sm:$0xf]
    %v1479 = vld [vmem:[%s1467 + $0x2c] sm:$0xf]
    %v1480 = vld [vmem:[%s1467 + $0x30] sm:$0xf]
    %v1481 = vld [vmem:[%s1467 + $0x34] sm:$0xf]
    %v1482 = vld [vmem:[%s1467 + $0x38] sm:$0xf]
    %v1483 = vld [vmem:[%s1467 + $0x3c] sm:$0xf]
    %v1500 = vunpack.c.l.b16 %v1468
    %v1501 = vunpack.c.l.b16 %v1469
    %v1502 = vunpack.c.l.b16 %v1470
    %v1503 = vunpack.c.l.b16 %v1471
    %v1504 = vunpack.c.l.b16 %v1472
    %v1505 = vunpack.c.l.b16 %v1473
    %v1506 = vunpack.c.l.b16 %v1474
    %v1507 = vunpack.c.l.b16 %v1475
    %v1508 = vunpack.c.l.b16 %v1476
    %v1509 = vunpack.c.l.b16 %v1477
    %v1510 = vunpack.c.l.b16 %v1478
    %v1511 = vunpack.c.l.b16 %v1479
    %v1512 = vunpack.c.l.b16 %v1480
    %v1513 = vunpack.c.l.b16 %v1481
    %v1514 = vunpack.c.l.b16 %v1482
    %v1515 = vunpack.c.l.b16 %v1483
    %v1516 = vpack.c.b16 %v1501, %v1500
    %v1517 = vpack.c.b16 %v1503, %v1502
    %v1518 = vpack.c.b16 %v1505, %v1504
    %v1519 = vpack.c.b16 %v1507, %v1506
    %v1520 = vpack.c.b16 %v1509, %v1508
    %v1521 = vpack.c.b16 %v1511, %v1510
    %v1522 = vpack.c.b16 %v1513, %v1512
    %v1523 = vpack.c.b16 %v1515, %v1514
    %1532 = vmatprep.subr.bf16.mxu0 0
    %1533 = vmatpush1.bf16.msra.mxu0 %v1523
    %1534 = vmatprep.subr.bf16.mxu0 0
    %1535 = vmatpush1.bf16.msra.mxu0 %v1522
    %1536 = vmatprep.subr.bf16.mxu0 0
    %1537 = vmatpush1.bf16.msra.mxu0 %v1521
    %1538 = vmatprep.subr.bf16.mxu0 0
    %1539 = vmatpush1.bf16.msra.mxu0 %v1520
    %1540 = vmatprep.subr.bf16.mxu0 0
    %1541 = vmatpush1.bf16.msra.mxu0 %v1519
    %1542 = vmatprep.subr.bf16.mxu0 0
    %1543 = vmatpush1.bf16.msra.mxu0 %v1518
    %1544 = vmatprep.subr.bf16.mxu0 0
    %1545 = vmatpush1.bf16.msra.mxu0 %v1517
    %1546 = vmatprep.subr.bf16.mxu0 0
    %1547 = vmatpush1.bf16.msra.mxu0 %v1516
    %1548 = vmatprep.subr.bf16.mxu0 0
    %1549 = vmatpush2.bf16.msra.mxu0 0
    %1550 = vmatprep.subr.bf16.mxu0 0
    %1551 = vmatpush2.bf16.msra.mxu0 0
    %1552 = vmatprep.subr.bf16.mxu0 0
    %1553 = vmatpush2.bf16.msra.mxu0 0
    %1554 = vmatprep.subr.bf16.mxu0 0
    %1555 = vmatpush2.bf16.msra.mxu0 0
    %1556 = vmatprep.subr.bf16.mxu0 0
    %1557 = vmatpush2.bf16.msra.mxu0 0
    %1558 = vmatprep.subr.bf16.mxu0 0
    %1559 = vmatpush2.bf16.msra.mxu0 0
    %1560 = vmatprep.subr.bf16.mxu0 0
    %1561 = vmatpush2.bf16.msra.mxu0 0
    %1562 = vmatprep.subr.bf16.mxu0 0
    %1563 = vmatpush2.bf16.msra.mxu0 0
    %1564 = vmatprep.mubr.bf16.mxu0 0
    %1565 = vmatmul.mubr.bf16.gmra.mxu0 %v1466
    %v1566 = vpop.f32.mrf.mxu0
    %v1567 = vadd.f32 0.0, %v1566
    %v1568 = vpop.f32.mrf.mxu0
    %v1569 = vpop.f32.mrf.mxu0
    %v1570 = vpop.f32.mrf.mxu0
    %1571 = vdwg.mxu0
    %v1572 = vadd.f32 %v1416, %v1567
    %s1573 = scalar_lea.vmem [#allocation10], 3
    %v1574 = vld [vmem:[%s1573] sm:$0x1]
    %v1576 = vsel %vm1117, %v1574, 0
    %1578 = vmatprep.subr.bf16.mxu0 0
    %1579 = vmatpush1.bf16.msra.mxu0 0
    %1580 = vmatprep.subr.bf16.mxu0 0
    %1581 = vmatpush1.bf16.msra.mxu0 0
    %1582 = vmatprep.subr.bf16.mxu0 0
    %1583 = vmatpush1.bf16.msra.mxu0 0
    %1584 = vmatprep.subr.bf16.mxu0 0
    %1585 = vmatpush1.bf16.msra.mxu0 0
    %1586 = vmatprep.subr.bf16.mxu0 0
    %1587 = vmatpush1.bf16.msra.mxu0 0
    %1588 = vmatprep.subr.bf16.mxu0 0
    %1589 = vmatpush1.bf16.msra.mxu0 0
    %1590 = vmatprep.subr.bf16.mxu0 0
    %1591 = vmatpush1.bf16.msra.mxu0 0
    %1592 = vmatprep.subr.bf16.mxu0 0
    %1593 = vmatpush1.bf16.msra.mxu0 %v1123
    %1594 = vmatprep.subr.bf16.mxu0 0
    %1595 = vmatpush2.bf16.msra.mxu0 0
    %1596 = vmatprep.subr.bf16.mxu0 0
    %1597 = vmatpush2.bf16.msra.mxu0 0
    %1598 = vmatprep.subr.bf16.mxu0 0
    %1599 = vmatpush2.bf16.msra.mxu0 0
    %1600 = vmatprep.subr.bf16.mxu0 0
    %1601 = vmatpush2.bf16.msra.mxu0 0
    %1602 = vmatprep.subr.bf16.mxu0 0
    %1603 = vmatpush2.bf16.msra.mxu0 0
    %1604 = vmatprep.subr.bf16.mxu0 0
    %1605 = vmatpush2.bf16.msra.mxu0 0
    %1606 = vmatprep.subr.bf16.mxu0 0
    %1607 = vmatpush2.bf16.msra.mxu0 0
    %1608 = vmatprep.subr.bf16.mxu0 0
    %1609 = vmatpush2.bf16.msra.mxu0 0
    %1610 = vmatprep.mubr.bf16.mxu0 0
    %1611 = vmatmul.mubr.bf16.gmra.mxu0 %v1576
    %v1612 = vpop.f32.mrf.mxu0
    %v1613 = vadd.f32 0.0, %v1612
    %v1614 = vpop.f32.mrf.mxu0
    %v1615 = vpop.f32.mrf.mxu0
    %v1616 = vpop.f32.mrf.mxu0
    %1617 = vdwg.mxu0
    %v1618 = vpack.c.bf16 %v1613, %v1613
    %s1619 = scalar_lea.vmem %s9, 192
    %v1620 = vld [vmem:[%s1619] sm:$0xf]
    %v1621 = vld [vmem:[%s1619 + $0x4] sm:$0xf]
    %v1622 = vld [vmem:[%s1619 + $0x8] sm:$0xf]
    %v1623 = vld [vmem:[%s1619 + $0xc] sm:$0xf]
    %v1624 = vld [vmem:[%s1619 + $0x10] sm:$0xf]
    %v1625 = vld [vmem:[%s1619 + $0x14] sm:$0xf]
    %v1626 = vld [vmem:[%s1619 + $0x18] sm:$0xf]
    %v1627 = vld [vmem:[%s1619 + $0x1c] sm:$0xf]
    %v1628 = vld [vmem:[%s1619 + $0x20] sm:$0xf]
    %v1629 = vld [vmem:[%s1619 + $0x24] sm:$0xf]
    %v1630 = vld [vmem:[%s1619 + $0x28] sm:$0xf]
    %v1631 = vld [vmem:[%s1619 + $0x2c] sm:$0xf]
    %v1632 = vld [vmem:[%s1619 + $0x30] sm:$0xf]
    %v1633 = vld [vmem:[%s1619 + $0x34] sm:$0xf]
    %v1634 = vld [vmem:[%s1619 + $0x38] sm:$0xf]
    %v1635 = vld [vmem:[%s1619 + $0x3c] sm:$0xf]
    %v1652 = vunpack.c.l.b16 %v1620
    %v1653 = vunpack.c.l.b16 %v1621
    %v1654 = vunpack.c.l.b16 %v1622
    %v1655 = vunpack.c.l.b16 %v1623
    %v1656 = vunpack.c.l.b16 %v1624
    %v1657 = vunpack.c.l.b16 %v1625
    %v1658 = vunpack.c.l.b16 %v1626
    %v1659 = vunpack.c.l.b16 %v1627
    %v1660 = vunpack.c.l.b16 %v1628
    %v1661 = vunpack.c.l.b16 %v1629
    %v1662 = vunpack.c.l.b16 %v1630
    %v1663 = vunpack.c.l.b16 %v1631
    %v1664 = vunpack.c.l.b16 %v1632
    %v1665 = vunpack.c.l.b16 %v1633
    %v1666 = vunpack.c.l.b16 %v1634
    %v1667 = vunpack.c.l.b16 %v1635
    %v1668 = vpack.c.b16 %v1653, %v1652
    %v1669 = vpack.c.b16 %v1655, %v1654
    %v1670 = vpack.c.b16 %v1657, %v1656
    %v1671 = vpack.c.b16 %v1659, %v1658
    %v1672 = vpack.c.b16 %v1661, %v1660
    %v1673 = vpack.c.b16 %v1663, %v1662
    %v1674 = vpack.c.b16 %v1665, %v1664
    %v1675 = vpack.c.b16 %v1667, %v1666
    %1684 = vmatprep.subr.bf16.mxu0 0
    %1685 = vmatpush1.bf16.msra.mxu0 %v1675
    %1686 = vmatprep.subr.bf16.mxu0 0
    %1687 = vmatpush1.bf16.msra.mxu0 %v1674
    %1688 = vmatprep.subr.bf16.mxu0 0
    %1689 = vmatpush1.bf16.msra.mxu0 %v1673
    %1690 = vmatprep.subr.bf16.mxu0 0
    %1691 = vmatpush1.bf16.msra.mxu0 %v1672
    %1692 = vmatprep.subr.bf16.mxu0 0
    %1693 = vmatpush1.bf16.msra.mxu0 %v1671
    %1694 = vmatprep.subr.bf16.mxu0 0
    %1695 = vmatpush1.bf16.msra.mxu0 %v1670
    %1696 = vmatprep.subr.bf16.mxu0 0
    %1697 = vmatpush1.bf16.msra.mxu0 %v1669
    %1698 = vmatprep.subr.bf16.mxu0 0
    %1699 = vmatpush1.bf16.msra.mxu0 %v1668
    %1700 = vmatprep.subr.bf16.mxu0 0
    %1701 = vmatpush2.bf16.msra.mxu0 0
    %1702 = vmatprep.subr.bf16.mxu0 0
    %1703 = vmatpush2.bf16.msra.mxu0 0
    %1704 = vmatprep.subr.bf16.mxu0 0
    %1705 = vmatpush2.bf16.msra.mxu0 0
    %1706 = vmatprep.subr.bf16.mxu0 0
    %1707 = vmatpush2.bf16.msra.mxu0 0
    %1708 = vmatprep.subr.bf16.mxu0 0
    %1709 = vmatpush2.bf16.msra.mxu0 0
    %1710 = vmatprep.subr.bf16.mxu0 0
    %1711 = vmatpush2.bf16.msra.mxu0 0
    %1712 = vmatprep.subr.bf16.mxu0 0
    %1713 = vmatpush2.bf16.msra.mxu0 0
    %1714 = vmatprep.subr.bf16.mxu0 0
    %1715 = vmatpush2.bf16.msra.mxu0 0
    %1716 = vmatprep.mubr.bf16.mxu0 0
    %1717 = vmatmul.mubr.bf16.gmra.mxu0 %v1618
    %v1718 = vpop.f32.mrf.mxu0
    %v1719 = vadd.f32 0.0, %v1718
    %v1720 = vpop.f32.mrf.mxu0
    %v1721 = vpop.f32.mrf.mxu0
    %v1722 = vpop.f32.mrf.mxu0
    %1723 = vdwg.mxu0
    %v1724 = vadd.f32 %v1572, %v1719
    %v1725 = vld [vmem:[#allocation12] sm:$0x1]
    %v1727 = vlaneseq
    %v1728 = vshrl.u32 %v1727, 7
    %v1729 = vsub.s32 0, %v1728
    %v1730 = vrot.slane %v1725, %v1729
    %v1732 = vadd.f32 %v1724, %v1730
    %vm1733 = vcmp.gt.f32.partialorder %v1732, 0.0
    %v1734 = vmul.f32 %v1732, 0.01
    %v1735 = vsel %vm1733, %v1732, %v1734
    %v1736 = vpack.c.bf16 %v1735, %v1735
    %v1737 = vld [vmem:[%s11] sm:$0xf]
    %v1738 = vld [vmem:[%s11 + $0x4] sm:$0xf]
    %v1739 = vld [vmem:[%s11 + $0x8] sm:$0xf]
    %v1740 = vld [vmem:[%s11 + $0xc] sm:$0xf]
    %v1741 = vld [vmem:[%s11 + $0x10] sm:$0xf]
    %v1742 = vld [vmem:[%s11 + $0x14] sm:$0xf]
    %v1743 = vld [vmem:[%s11 + $0x18] sm:$0xf]
    %v1744 = vld [vmem:[%s11 + $0x1c] sm:$0xf]
    %v1745 = vld [vmem:[%s11 + $0x20] sm:$0xf]
    %v1746 = vld [vmem:[%s11 + $0x24] sm:$0xf]
    %v1747 = vld [vmem:[%s11 + $0x28] sm:$0xf]
    %v1748 = vld [vmem:[%s11 + $0x2c] sm:$0xf]
    %v1749 = vld [vmem:[%s11 + $0x30] sm:$0xf]
    %v1750 = vld [vmem:[%s11 + $0x34] sm:$0xf]
    %v1751 = vld [vmem:[%s11 + $0x38] sm:$0xf]
    %v1752 = vld [vmem:[%s11 + $0x3c] sm:$0xf]
    %v1753 = vld [vmem:[#allocation13] sm:$0x1]
    %v1755 = vlaneseq
    %v1756 = vshrl.u32 %v1755, 7
    %v1757 = vsub.s32 0, %v1756
    %v1758 = vrot.slane %v1753, %v1757
    %v1776 = vunpack.c.l.b16 %v1737
    %v1777 = vunpack.c.l.b16 %v1738
    %v1778 = vunpack.c.l.b16 %v1739
    %v1779 = vunpack.c.l.b16 %v1740
    %v1780 = vunpack.c.l.b16 %v1741
    %v1781 = vunpack.c.l.b16 %v1742
    %v1782 = vunpack.c.l.b16 %v1743
    %v1783 = vunpack.c.l.b16 %v1744
    %v1784 = vunpack.c.l.b16 %v1745
    %v1785 = vunpack.c.l.b16 %v1746
    %v1786 = vunpack.c.l.b16 %v1747
    %v1787 = vunpack.c.l.b16 %v1748
    %v1788 = vunpack.c.l.b16 %v1749
    %v1789 = vunpack.c.l.b16 %v1750
    %v1790 = vunpack.c.l.b16 %v1751
    %v1791 = vunpack.c.l.b16 %v1752
    %v1792 = vpack.c.b16 %v1777, %v1776
    %v1793 = vpack.c.b16 %v1779, %v1778
    %v1794 = vpack.c.b16 %v1781, %v1780
    %v1795 = vpack.c.b16 %v1783, %v1782
    %v1796 = vpack.c.b16 %v1785, %v1784
    %v1797 = vpack.c.b16 %v1787, %v1786
    %v1798 = vpack.c.b16 %v1789, %v1788
    %v1799 = vpack.c.b16 %v1791, %v1790
    %1808 = vmatprep.subr.bf16.mxu0 0
    %1809 = vmatpush1.bf16.msra.mxu0 %v1799
    %1810 = vmatprep.subr.bf16.mxu0 0
    %1811 = vmatpush1.bf16.msra.mxu0 %v1798
    %1812 = vmatprep.subr.bf16.mxu0 0
    %1813 = vmatpush1.bf16.msra.mxu0 %v1797
    %1814 = vmatprep.subr.bf16.mxu0 0
    %1815 = vmatpush1.bf16.msra.mxu0 %v1796
    %1816 = vmatprep.subr.bf16.mxu0 0
    %1817 = vmatpush1.bf16.msra.mxu0 %v1795
    %1818 = vmatprep.subr.bf16.mxu0 0
    %1819 = vmatpush1.bf16.msra.mxu0 %v1794
    %1820 = vmatprep.subr.bf16.mxu0 0
    %1821 = vmatpush1.bf16.msra.mxu0 %v1793
    %1822 = vmatprep.subr.bf16.mxu0 0
    %1823 = vmatpush1.bf16.msra.mxu0 %v1792
    %1824 = vmatprep.subr.bf16.mxu0 0
    %1825 = vmatpush2.bf16.msra.mxu0 0
    %1826 = vmatprep.subr.bf16.mxu0 0
    %1827 = vmatpush2.bf16.msra.mxu0 0
    %1828 = vmatprep.subr.bf16.mxu0 0
    %1829 = vmatpush2.bf16.msra.mxu0 0
    %1830 = vmatprep.subr.bf16.mxu0 0
    %1831 = vmatpush2.bf16.msra.mxu0 0
    %1832 = vmatprep.subr.bf16.mxu0 0
    %1833 = vmatpush2.bf16.msra.mxu0 0
    %1834 = vmatprep.subr.bf16.mxu0 0
    %1835 = vmatpush2.bf16.msra.mxu0 0
    %1836 = vmatprep.subr.bf16.mxu0 0
    %1837 = vmatpush2.bf16.msra.mxu0 0
    %1838 = vmatprep.subr.bf16.mxu0 0
    %1839 = vmatpush2.bf16.msra.mxu0 0
    %1840 = vmatprep.mubr.bf16.mxu0 0
    %1841 = vmatmul.mubr.bf16.gmra.mxu0 %v1736
    %v1842 = vpop.f32.mrf.mxu0
    %v1843 = vadd.f32 %v1758, %v1842
    %v1844 = vpop.f32.mrf.mxu0
    %v1845 = vpop.f32.mrf.mxu0
    %v1846 = vpop.f32.mrf.mxu0
    %1847 = vdwg.mxu0
    %v1848 = vmul.f32 %v1843, 1.442695
    %v1849 = vpow.pop %v1848
    %v1850 = vld [vmem:[#allocation2] sm:$0x3]
    %1852 = vrot.lane.b32.xlu0 %v1850, 32
    %v1853 = vpop.permute.xlu0 %1852
    %v1855 = vmul.f32 %v1849, %v1853
    %1857 = vrot.lane.b32.xlu0 %v1855, 96
    %v1858 = vpop.permute.xlu0 %1857
    %v1860 = vadd.f32 %v1843, %v1858
    %v1861 = vpack.c.bf16 %v1860, %v1860
    %v1862 = vld [vmem:[#allocation15] sm:$0xf]
    %v1863 = vld [vmem:[#allocation15 + $0x4] sm:$0xf]
    %v1864 = vld [vmem:[#allocation15 + $0x8] sm:$0xf]
    %v1865 = vld [vmem:[#allocation15 + $0xc] sm:$0xf]
    %v1866 = vld [vmem:[#allocation16] sm:$0x1]
    %v1868 = vlaneseq
    %v1869 = vshrl.u32 %v1868, 7
    %v1870 = vsub.s32 0, %v1869
    %v1871 = vrot.slane %v1866, %v1870
    %v1877 = vunpack.c.l.b16 %v1862
    %v1878 = vunpack.c.l.b16 %v1863
    %v1879 = vunpack.c.l.b16 %v1864
    %v1880 = vunpack.c.l.b16 %v1865
    %v1881 = vpack.c.b16 %v1878, %v1877
    %v1882 = vpack.c.b16 %v1880, %v1879
    %v1886 = vsel %vm250, %v1861, 0
    %1888 = vmatprep.subr.bf16.mxu0 0
    %1889 = vmatpush1.bf16.msra.mxu0 0
    %1890 = vmatprep.subr.bf16.mxu0 0
    %1891 = vmatpush1.bf16.msra.mxu0 0
    %1892 = vmatprep.subr.bf16.mxu0 0
    %1893 = vmatpush1.bf16.msra.mxu0 0
    %1894 = vmatprep.subr.bf16.mxu0 0
    %1895 = vmatpush1.bf16.msra.mxu0 0
    %1896 = vmatprep.subr.bf16.mxu0 0
    %1897 = vmatpush1.bf16.msra.mxu0 0
    %1898 = vmatprep.subr.bf16.mxu0 0
    %1899 = vmatpush1.bf16.msra.mxu0 0
    %1900 = vmatprep.subr.bf16.mxu0 0
    %1901 = vmatpush1.bf16.msra.mxu0 %v1882
    %1902 = vmatprep.subr.bf16.mxu0 0
    %1903 = vmatpush1.bf16.msra.mxu0 %v1881
    %1904 = vmatprep.subr.bf16.mxu0 0
    %1905 = vmatpush2.bf16.msra.mxu0 0
    %1906 = vmatprep.subr.bf16.mxu0 0
    %1907 = vmatpush2.bf16.msra.mxu0 0
    %1908 = vmatprep.subr.bf16.mxu0 0
    %1909 = vmatpush2.bf16.msra.mxu0 0
    %1910 = vmatprep.subr.bf16.mxu0 0
    %1911 = vmatpush2.bf16.msra.mxu0 0
    %1912 = vmatprep.subr.bf16.mxu0 0
    %1913 = vmatpush2.bf16.msra.mxu0 0
    %1914 = vmatprep.subr.bf16.mxu0 0
    %1915 = vmatpush2.bf16.msra.mxu0 0
    %1916 = vmatprep.subr.bf16.mxu0 0
    %1917 = vmatpush2.bf16.msra.mxu0 0
    %1918 = vmatprep.subr.bf16.mxu0 0
    %1919 = vmatpush2.bf16.msra.mxu0 0
    %1920 = vmatprep.mubr.bf16.mxu0 0
    %1921 = vmatmul.mubr.bf16.gmra.mxu0 %v1886
    %v1922 = vpop.f32.mrf.mxu0
    %v1923 = vadd.f32 %v1871, %v1922
    %v1924 = vpop.f32.mrf.mxu0
    %v1925 = vpop.f32.mrf.mxu0
    %v1926 = vpop.f32.mrf.mxu0
    %1927 = vdwg.mxu0
    %vm1928 = vcmp.gt.f32.partialorder %v1923, 0.0
    %v1929 = vmul.f32 %v1923, 0.01
    %v1930 = vsel %vm1928, %v1923, %v1929
    %v1931 = vpack.c.bf16 %v1930, %v1930
    %v1932 = vld [vmem:[%s15] sm:$0xf]
    %vm1933 = vcmask 15360
    %v1935 = vsel %vm1933, %v1932, 0
    %vm1937 = vcmask 1040384
    %v1939 = vsel %vm1937, %v1931, 0
    %1941 = vmatprep.subr.bf16.mxu0 0
    %1942 = vmatpush1.bf16.msra.mxu0 0
    %1943 = vmatprep.subr.bf16.mxu0 0
    %1944 = vmatpush1.bf16.msra.mxu0 0
    %1945 = vmatprep.subr.bf16.mxu0 0
    %1946 = vmatpush1.bf16.msra.mxu0 0
    %1947 = vmatprep.subr.bf16.mxu0 0
    %1948 = vmatpush1.bf16.msra.mxu0 0
    %1949 = vmatprep.subr.bf16.mxu0 0
    %1950 = vmatpush1.bf16.msra.mxu0 0
    %1951 = vmatprep.subr.bf16.mxu0 0
    %1952 = vmatpush1.bf16.msra.mxu0 0
    %1953 = vmatprep.subr.bf16.mxu0 0
    %1954 = vmatpush1.bf16.msra.mxu0 0
    %1955 = vmatprep.subr.bf16.mxu0 0
    %1956 = vmatpush1.bf16.msra.mxu0 %v1939
    %1957 = vmatprep.subr.bf16.mxu0 0
    %1958 = vmatpush2.bf16.msra.mxu0 0
    %1959 = vmatprep.subr.bf16.mxu0 0
    %1960 = vmatpush2.bf16.msra.mxu0 0
    %1961 = vmatprep.subr.bf16.mxu0 0
    %1962 = vmatpush2.bf16.msra.mxu0 0
    %1963 = vmatprep.subr.bf16.mxu0 0
    %1964 = vmatpush2.bf16.msra.mxu0 0
    %1965 = vmatprep.subr.bf16.mxu0 0
    %1966 = vmatpush2.bf16.msra.mxu0 0
    %1967 = vmatprep.subr.bf16.mxu0 0
    %1968 = vmatpush2.bf16.msra.mxu0 0
    %1969 = vmatprep.subr.bf16.mxu0 0
    %1970 = vmatpush2.bf16.msra.mxu0 0
    %1971 = vmatprep.subr.bf16.mxu0 0
    %1972 = vmatpush2.bf16.msra.mxu0 0
    %1973 = vmatprep.mubr.bf16.mxu0 0
    %1974 = vmatmul.mubr.bf16.gmra.mxu0 %v1935
    %v1975 = vpop.f32.mrf.mxu0
    %v1976 = vadd.f32 0.0, %v1975
    %v1977 = vpop.f32.mrf.mxu0
    %v1978 = vpop.f32.mrf.mxu0
    %v1979 = vpop.f32.mrf.mxu0
    %1980 = vdwg.mxu0
    %v1981 = vpack.c.bf16 %v1976, %v1976
    %v1982 = vld [vmem:[%s16] sm:$0xf]
    %v1983 = vld [vmem:[%s16 + $0x4] sm:$0xf]
    %v1984 = vld [vmem:[%s16 + $0x8] sm:$0xf]
    %v1985 = vld [vmem:[%s16 + $0xc] sm:$0xf]
    %v1986 = vld [vmem:[%s16 + $0x10] sm:$0xf]
    %v1987 = vld [vmem:[%s16 + $0x14] sm:$0xf]
    %v1988 = vld [vmem:[%s16 + $0x18] sm:$0xf]
    %v1989 = vld [vmem:[%s16 + $0x1c] sm:$0xf]
    %v1990 = vld [vmem:[%s16 + $0x20] sm:$0xf]
    %v1991 = vld [vmem:[%s16 + $0x24] sm:$0xf]
    %v1992 = vld [vmem:[%s16 + $0x28] sm:$0xf]
    %v1993 = vld [vmem:[%s16 + $0x2c] sm:$0xf]
    %v1994 = vld [vmem:[%s16 + $0x30] sm:$0xf]
    %v1995 = vld [vmem:[%s16 + $0x34] sm:$0xf]
    %v1996 = vld [vmem:[%s16 + $0x38] sm:$0xf]
    %v1997 = vld [vmem:[%s16 + $0x3c] sm:$0xf]
    %s1998 = scalar_lea.vmem %s15, 4
    %v1999 = vld [vmem:[%s1998] sm:$0xf]
    %v2001 = vsel %vm1933, %v1999, 0
    %2003 = vmatprep.subr.bf16.mxu0 0
    %2004 = vmatpush1.bf16.msra.mxu0 0
    %2005 = vmatprep.subr.bf16.mxu0 0
    %2006 = vmatpush1.bf16.msra.mxu0 0
    %2007 = vmatprep.subr.bf16.mxu0 0
    %2008 = vmatpush1.bf16.msra.mxu0 0
    %2009 = vmatprep.subr.bf16.mxu0 0
    %2010 = vmatpush1.bf16.msra.mxu0 0
    %2011 = vmatprep.subr.bf16.mxu0 0
    %2012 = vmatpush1.bf16.msra.mxu0 0
    %2013 = vmatprep.subr.bf16.mxu0 0
    %2014 = vmatpush1.bf16.msra.mxu0 0
    %2015 = vmatprep.subr.bf16.mxu0 0
    %2016 = vmatpush1.bf16.msra.mxu0 0
    %2017 = vmatprep.subr.bf16.mxu0 0
    %2018 = vmatpush1.bf16.msra.mxu0 %v1939
    %2019 = vmatprep.subr.bf16.mxu0 0
    %2020 = vmatpush2.bf16.msra.mxu0 0
    %2021 = vmatprep.subr.bf16.mxu0 0
    %2022 = vmatpush2.bf16.msra.mxu0 0
    %2023 = vmatprep.subr.bf16.mxu0 0
    %2024 = vmatpush2.bf16.msra.mxu0 0
    %2025 = vmatprep.subr.bf16.mxu0 0
    %2026 = vmatpush2.bf16.msra.mxu0 0
    %2027 = vmatprep.subr.bf16.mxu0 0
    %2028 = vmatpush2.bf16.msra.mxu0 0
    %2029 = vmatprep.subr.bf16.mxu0 0
    %2030 = vmatpush2.bf16.msra.mxu0 0
    %2031 = vmatprep.subr.bf16.mxu0 0
    %2032 = vmatpush2.bf16.msra.mxu0 0
    %2033 = vmatprep.subr.bf16.mxu0 0
    %2034 = vmatpush2.bf16.msra.mxu0 0
    %2035 = vmatprep.mubr.bf16.mxu0 0
    %2036 = vmatmul.mubr.bf16.gmra.mxu0 %v2001
    %v2037 = vpop.f32.mrf.mxu0
    %v2038 = vadd.f32 0.0, %v2037
    %v2039 = vpop.f32.mrf.mxu0
    %v2040 = vpop.f32.mrf.mxu0
    %v2041 = vpop.f32.mrf.mxu0
    %2042 = vdwg.mxu0
    %v2043 = vpack.c.bf16 %v2038, %v2038
    %s2044 = scalar_lea.vmem %s16, 64
    %v2045 = vld [vmem:[%s2044] sm:$0xf]
    %v2046 = vld [vmem:[%s2044 + $0x4] sm:$0xf]
    %v2047 = vld [vmem:[%s2044 + $0x8] sm:$0xf]
    %v2048 = vld [vmem:[%s2044 + $0xc] sm:$0xf]
    %v2049 = vld [vmem:[%s2044 + $0x10] sm:$0xf]
    %v2050 = vld [vmem:[%s2044 + $0x14] sm:$0xf]
    %v2051 = vld [vmem:[%s2044 + $0x18] sm:$0xf]
    %v2052 = vld [vmem:[%s2044 + $0x1c] sm:$0xf]
    %v2053 = vld [vmem:[%s2044 + $0x20] sm:$0xf]
    %v2054 = vld [vmem:[%s2044 + $0x24] sm:$0xf]
    %v2055 = vld [vmem:[%s2044 + $0x28] sm:$0xf]
    %v2056 = vld [vmem:[%s2044 + $0x2c] sm:$0xf]
    %v2057 = vld [vmem:[%s2044 + $0x30] sm:$0xf]
    %v2058 = vld [vmem:[%s2044 + $0x34] sm:$0xf]
    %v2059 = vld [vmem:[%s2044 + $0x38] sm:$0xf]
    %v2060 = vld [vmem:[%s2044 + $0x3c] sm:$0xf]
    %v2077 = vunpack.c.l.b16 %v2045
    %v2078 = vunpack.c.l.b16 %v2046
    %v2079 = vunpack.c.l.b16 %v2047
    %v2080 = vunpack.c.l.b16 %v2048
    %v2081 = vunpack.c.l.b16 %v2049
    %v2082 = vunpack.c.l.b16 %v2050
    %v2083 = vunpack.c.l.b16 %v2051
    %v2084 = vunpack.c.l.b16 %v2052
    %v2085 = vunpack.c.l.b16 %v2053
    %v2086 = vunpack.c.l.b16 %v2054
    %v2087 = vunpack.c.l.b16 %v2055
    %v2088 = vunpack.c.l.b16 %v2056
    %v2089 = vunpack.c.l.b16 %v2057
    %v2090 = vunpack.c.l.b16 %v2058
    %v2091 = vunpack.c.l.b16 %v2059
    %v2092 = vunpack.c.l.b16 %v2060
    %v2093 = vpack.c.b16 %v2078, %v2077
    %v2094 = vpack.c.b16 %v2080, %v2079
    %v2095 = vpack.c.b16 %v2082, %v2081
    %v2096 = vpack.c.b16 %v2084, %v2083
    %v2097 = vpack.c.b16 %v2086, %v2085
    %v2098 = vpack.c.b16 %v2088, %v2087
    %v2099 = vpack.c.b16 %v2090, %v2089
    %v2100 = vpack.c.b16 %v2092, %v2091
    %2109 = vmatprep.subr.bf16.mxu0 0
    %2110 = vmatpush1.bf16.msra.mxu0 %v2100
    %2111 = vmatprep.subr.bf16.mxu0 0
    %2112 = vmatpush1.bf16.msra.mxu0 %v2099
    %2113 = vmatprep.subr.bf16.mxu0 0
    %2114 = vmatpush1.bf16.msra.mxu0 %v2098
    %2115 = vmatprep.subr.bf16.mxu0 0
    %2116 = vmatpush1.bf16.msra.mxu0 %v2097
    %2117 = vmatprep.subr.bf16.mxu0 0
    %2118 = vmatpush1.bf16.msra.mxu0 %v2096
    %2119 = vmatprep.subr.bf16.mxu0 0
    %2120 = vmatpush1.bf16.msra.mxu0 %v2095
    %2121 = vmatprep.subr.bf16.mxu0 0
    %2122 = vmatpush1.bf16.msra.mxu0 %v2094
    %2123 = vmatprep.subr.bf16.mxu0 0
    %2124 = vmatpush1.bf16.msra.mxu0 %v2093
    %2125 = vmatprep.subr.bf16.mxu0 0
    %2126 = vmatpush2.bf16.msra.mxu0 0
    %2127 = vmatprep.subr.bf16.mxu0 0
    %2128 = vmatpush2.bf16.msra.mxu0 0
    %2129 = vmatprep.subr.bf16.mxu0 0
    %2130 = vmatpush2.bf16.msra.mxu0 0
    %2131 = vmatprep.subr.bf16.mxu0 0
    %2132 = vmatpush2.bf16.msra.mxu0 0
    %2133 = vmatprep.subr.bf16.mxu0 0
    %2134 = vmatpush2.bf16.msra.mxu0 0
    %2135 = vmatprep.subr.bf16.mxu0 0
    %2136 = vmatpush2.bf16.msra.mxu0 0
    %2137 = vmatprep.subr.bf16.mxu0 0
    %2138 = vmatpush2.bf16.msra.mxu0 0
    %2139 = vmatprep.subr.bf16.mxu0 0
    %2140 = vmatpush2.bf16.msra.mxu0 0
    %2141 = vmatprep.mubr.bf16.mxu0 0
    %2142 = vmatmul.mubr.bf16.gmra.mxu0 %v2043
    %v2143 = vpop.f32.mrf.mxu0
    %v2144 = vadd.f32 0.0, %v2143
    %v2145 = vpop.f32.mrf.mxu0
    %v2146 = vpop.f32.mrf.mxu0
    %v2147 = vpop.f32.mrf.mxu0
    %2148 = vdwg.mxu0
    %v2165 = vunpack.c.l.b16 %v1982
    %v2166 = vunpack.c.l.b16 %v1983
    %v2167 = vunpack.c.l.b16 %v1984
    %v2168 = vunpack.c.l.b16 %v1985
    %v2169 = vunpack.c.l.b16 %v1986
    %v2170 = vunpack.c.l.b16 %v1987
    %v2171 = vunpack.c.l.b16 %v1988
    %v2172 = vunpack.c.l.b16 %v1989
    %v2173 = vunpack.c.l.b16 %v1990
    %v2174 = vunpack.c.l.b16 %v1991
    %v2175 = vunpack.c.l.b16 %v1992
    %v2176 = vunpack.c.l.b16 %v1993
    %v2177 = vunpack.c.l.b16 %v1994
    %v2178 = vunpack.c.l.b16 %v1995
    %v2179 = vunpack.c.l.b16 %v1996
    %v2180 = vunpack.c.l.b16 %v1997
    %v2181 = vpack.c.b16 %v2166, %v2165
    %v2182 = vpack.c.b16 %v2168, %v2167
    %v2183 = vpack.c.b16 %v2170, %v2169
    %v2184 = vpack.c.b16 %v2172, %v2171
    %v2185 = vpack.c.b16 %v2174, %v2173
    %v2186 = vpack.c.b16 %v2176, %v2175
    %v2187 = vpack.c.b16 %v2178, %v2177
    %v2188 = vpack.c.b16 %v2180, %v2179
    %2197 = vmatprep.subr.bf16.mxu0 0
    %2198 = vmatpush1.bf16.msra.mxu0 %v2188
    %2199 = vmatprep.subr.bf16.mxu0 0
    %2200 = vmatpush1.bf16.msra.mxu0 %v2187
    %2201 = vmatprep.subr.bf16.mxu0 0
    %2202 = vmatpush1.bf16.msra.mxu0 %v2186
    %2203 = vmatprep.subr.bf16.mxu0 0
    %2204 = vmatpush1.bf16.msra.mxu0 %v2185
    %2205 = vmatprep.subr.bf16.mxu0 0
    %2206 = vmatpush1.bf16.msra.mxu0 %v2184
    %2207 = vmatprep.subr.bf16.mxu0 0
    %2208 = vmatpush1.bf16.msra.mxu0 %v2183
    %2209 = vmatprep.subr.bf16.mxu0 0
    %2210 = vmatpush1.bf16.msra.mxu0 %v2182
    %2211 = vmatprep.subr.bf16.mxu0 0
    %2212 = vmatpush1.bf16.msra.mxu0 %v2181
    %2213 = vmatprep.subr.bf16.mxu0 0
    %2214 = vmatpush2.bf16.msra.mxu0 0
    %2215 = vmatprep.subr.bf16.mxu0 0
    %2216 = vmatpush2.bf16.msra.mxu0 0
    %2217 = vmatprep.subr.bf16.mxu0 0
    %2218 = vmatpush2.bf16.msra.mxu0 0
    %2219 = vmatprep.subr.bf16.mxu0 0
    %2220 = vmatpush2.bf16.msra.mxu0 0
    %2221 = vmatprep.subr.bf16.mxu0 0
    %2222 = vmatpush2.bf16.msra.mxu0 0
    %2223 = vmatprep.subr.bf16.mxu0 0
    %2224 = vmatpush2.bf16.msra.mxu0 0
    %2225 = vmatprep.subr.bf16.mxu0 0
    %2226 = vmatpush2.bf16.msra.mxu0 0
    %2227 = vmatprep.subr.bf16.mxu0 0
    %2228 = vmatpush2.bf16.msra.mxu0 0
    %2229 = vmatprep.mubr.bf16.mxu0 0
    %2230 = vmatmul.mubr.bf16.gmra.mxu0 %v1981
    %v2231 = vpop.f32.mrf.mxu0
    %v2232 = vadd.f32 %v2144, %v2231
    %v2233 = vpop.f32.mrf.mxu0
    %v2234 = vpop.f32.mrf.mxu0
    %v2235 = vpop.f32.mrf.mxu0
    %2236 = vdwg.mxu0
    %s2237 = scalar_lea.vmem %s15, 8
    %v2238 = vld [vmem:[%s2237] sm:$0xf]
    %v2240 = vsel %vm1933, %v2238, 0
    %2242 = vmatprep.subr.bf16.mxu0 0
    %2243 = vmatpush1.bf16.msra.mxu0 0
    %2244 = vmatprep.subr.bf16.mxu0 0
    %2245 = vmatpush1.bf16.msra.mxu0 0
    %2246 = vmatprep.subr.bf16.mxu0 0
    %2247 = vmatpush1.bf16.msra.mxu0 0
    %2248 = vmatprep.subr.bf16.mxu0 0
    %2249 = vmatpush1.bf16.msra.mxu0 0
    %2250 = vmatprep.subr.bf16.mxu0 0
    %2251 = vmatpush1.bf16.msra.mxu0 0
    %2252 = vmatprep.subr.bf16.mxu0 0
    %2253 = vmatpush1.bf16.msra.mxu0 0
    %2254 = vmatprep.subr.bf16.mxu0 0
    %2255 = vmatpush1.bf16.msra.mxu0 0
    %2256 = vmatprep.subr.bf16.mxu0 0
    %2257 = vmatpush1.bf16.msra.mxu0 %v1939
    %2258 = vmatprep.subr.bf16.mxu0 0
    %2259 = vmatpush2.bf16.msra.mxu0 0
    %2260 = vmatprep.subr.bf16.mxu0 0
    %2261 = vmatpush2.bf16.msra.mxu0 0
    %2262 = vmatprep.subr.bf16.mxu0 0
    %2263 = vmatpush2.bf16.msra.mxu0 0
    %2264 = vmatprep.subr.bf16.mxu0 0
    %2265 = vmatpush2.bf16.msra.mxu0 0
    %2266 = vmatprep.subr.bf16.mxu0 0
    %2267 = vmatpush2.bf16.msra.mxu0 0
    %2268 = vmatprep.subr.bf16.mxu0 0
    %2269 = vmatpush2.bf16.msra.mxu0 0
    %2270 = vmatprep.subr.bf16.mxu0 0
    %2271 = vmatpush2.bf16.msra.mxu0 0
    %2272 = vmatprep.subr.bf16.mxu0 0
    %2273 = vmatpush2.bf16.msra.mxu0 0
    %2274 = vmatprep.mubr.bf16.mxu0 0
    %2275 = vmatmul.mubr.bf16.gmra.mxu0 %v2240
    %v2276 = vpop.f32.mrf.mxu0
    %v2277 = vadd.f32 0.0, %v2276
    %v2278 = vpop.f32.mrf.mxu0
    %v2279 = vpop.f32.mrf.mxu0
    %v2280 = vpop.f32.mrf.mxu0
    %2281 = vdwg.mxu0
    %v2282 = vpack.c.bf16 %v2277, %v2277
    %s2283 = scalar_lea.vmem %s16, 128
    %v2284 = vld [vmem:[%s2283] sm:$0xf]
    %v2285 = vld [vmem:[%s2283 + $0x4] sm:$0xf]
    %v2286 = vld [vmem:[%s2283 + $0x8] sm:$0xf]
    %v2287 = vld [vmem:[%s2283 + $0xc] sm:$0xf]
    %v2288 = vld [vmem:[%s2283 + $0x10] sm:$0xf]
    %v2289 = vld [vmem:[%s2283 + $0x14] sm:$0xf]
    %v2290 = vld [vmem:[%s2283 + $0x18] sm:$0xf]
    %v2291 = vld [vmem:[%s2283 + $0x1c] sm:$0xf]
    %v2292 = vld [vmem:[%s2283 + $0x20] sm:$0xf]
    %v2293 = vld [vmem:[%s2283 + $0x24] sm:$0xf]
    %v2294 = vld [vmem:[%s2283 + $0x28] sm:$0xf]
    %v2295 = vld [vmem:[%s2283 + $0x2c] sm:$0xf]
    %v2296 = vld [vmem:[%s2283 + $0x30] sm:$0xf]
    %v2297 = vld [vmem:[%s2283 + $0x34] sm:$0xf]
    %v2298 = vld [vmem:[%s2283 + $0x38] sm:$0xf]
    %v2299 = vld [vmem:[%s2283 + $0x3c] sm:$0xf]
    %v2316 = vunpack.c.l.b16 %v2284
    %v2317 = vunpack.c.l.b16 %v2285
    %v2318 = vunpack.c.l.b16 %v2286
    %v2319 = vunpack.c.l.b16 %v2287
    %v2320 = vunpack.c.l.b16 %v2288
    %v2321 = vunpack.c.l.b16 %v2289
    %v2322 = vunpack.c.l.b16 %v2290
    %v2323 = vunpack.c.l.b16 %v2291
    %v2324 = vunpack.c.l.b16 %v2292
    %v2325 = vunpack.c.l.b16 %v2293
    %v2326 = vunpack.c.l.b16 %v2294
    %v2327 = vunpack.c.l.b16 %v2295
    %v2328 = vunpack.c.l.b16 %v2296
    %v2329 = vunpack.c.l.b16 %v2297
    %v2330 = vunpack.c.l.b16 %v2298
    %v2331 = vunpack.c.l.b16 %v2299
    %v2332 = vpack.c.b16 %v2317, %v2316
    %v2333 = vpack.c.b16 %v2319, %v2318
    %v2334 = vpack.c.b16 %v2321, %v2320
    %v2335 = vpack.c.b16 %v2323, %v2322
    %v2336 = vpack.c.b16 %v2325, %v2324
    %v2337 = vpack.c.b16 %v2327, %v2326
    %v2338 = vpack.c.b16 %v2329, %v2328
    %v2339 = vpack.c.b16 %v2331, %v2330
    %2348 = vmatprep.subr.bf16.mxu0 0
    %2349 = vmatpush1.bf16.msra.mxu0 %v2339
    %2350 = vmatprep.subr.bf16.mxu0 0
    %2351 = vmatpush1.bf16.msra.mxu0 %v2338
    %2352 = vmatprep.subr.bf16.mxu0 0
    %2353 = vmatpush1.bf16.msra.mxu0 %v2337
    %2354 = vmatprep.subr.bf16.mxu0 0
    %2355 = vmatpush1.bf16.msra.mxu0 %v2336
    %2356 = vmatprep.subr.bf16.mxu0 0
    %2357 = vmatpush1.bf16.msra.mxu0 %v2335
    %2358 = vmatprep.subr.bf16.mxu0 0
    %2359 = vmatpush1.bf16.msra.mxu0 %v2334
    %2360 = vmatprep.subr.bf16.mxu0 0
    %2361 = vmatpush1.bf16.msra.mxu0 %v2333
    %2362 = vmatprep.subr.bf16.mxu0 0
    %2363 = vmatpush1.bf16.msra.mxu0 %v2332
    %2364 = vmatprep.subr.bf16.mxu0 0
    %2365 = vmatpush2.bf16.msra.mxu0 0
    %2366 = vmatprep.subr.bf16.mxu0 0
    %2367 = vmatpush2.bf16.msra.mxu0 0
    %2368 = vmatprep.subr.bf16.mxu0 0
    %2369 = vmatpush2.bf16.msra.mxu0 0
    %2370 = vmatprep.subr.bf16.mxu0 0
    %2371 = vmatpush2.bf16.msra.mxu0 0
    %2372 = vmatprep.subr.bf16.mxu0 0
    %2373 = vmatpush2.bf16.msra.mxu0 0
    %2374 = vmatprep.subr.bf16.mxu0 0
    %2375 = vmatpush2.bf16.msra.mxu0 0
    %2376 = vmatprep.subr.bf16.mxu0 0
    %2377 = vmatpush2.bf16.msra.mxu0 0
    %2378 = vmatprep.subr.bf16.mxu0 0
    %2379 = vmatpush2.bf16.msra.mxu0 0
    %2380 = vmatprep.mubr.bf16.mxu0 0
    %2381 = vmatmul.mubr.bf16.gmra.mxu0 %v2282
    %v2382 = vpop.f32.mrf.mxu0
    %v2383 = vadd.f32 0.0, %v2382
    %v2384 = vpop.f32.mrf.mxu0
    %v2385 = vpop.f32.mrf.mxu0
    %v2386 = vpop.f32.mrf.mxu0
    %2387 = vdwg.mxu0
    %v2388 = vadd.f32 %v2232, %v2383
    %s2389 = scalar_lea.vmem %s15, 12
    %v2390 = vld [vmem:[%s2389] sm:$0xf]
    %v2392 = vsel %vm1933, %v2390, 0
    %2394 = vmatprep.subr.bf16.mxu0 0
    %2395 = vmatpush1.bf16.msra.mxu0 0
    %2396 = vmatprep.subr.bf16.mxu0 0
    %2397 = vmatpush1.bf16.msra.mxu0 0
    %2398 = vmatprep.subr.bf16.mxu0 0
    %2399 = vmatpush1.bf16.msra.mxu0 0
    %2400 = vmatprep.subr.bf16.mxu0 0
    %2401 = vmatpush1.bf16.msra.mxu0 0
    %2402 = vmatprep.subr.bf16.mxu0 0
    %2403 = vmatpush1.bf16.msra.mxu0 0
    %2404 = vmatprep.subr.bf16.mxu0 0
    %2405 = vmatpush1.bf16.msra.mxu0 0
    %2406 = vmatprep.subr.bf16.mxu0 0
    %2407 = vmatpush1.bf16.msra.mxu0 0
    %2408 = vmatprep.subr.bf16.mxu0 0
    %2409 = vmatpush1.bf16.msra.mxu0 %v1939
    %2410 = vmatprep.subr.bf16.mxu0 0
    %2411 = vmatpush2.bf16.msra.mxu0 0
    %2412 = vmatprep.subr.bf16.mxu0 0
    %2413 = vmatpush2.bf16.msra.mxu0 0
    %2414 = vmatprep.subr.bf16.mxu0 0
    %2415 = vmatpush2.bf16.msra.mxu0 0
    %2416 = vmatprep.subr.bf16.mxu0 0
    %2417 = vmatpush2.bf16.msra.mxu0 0
    %2418 = vmatprep.subr.bf16.mxu0 0
    %2419 = vmatpush2.bf16.msra.mxu0 0
    %2420 = vmatprep.subr.bf16.mxu0 0
    %2421 = vmatpush2.bf16.msra.mxu0 0
    %2422 = vmatprep.subr.bf16.mxu0 0
    %2423 = vmatpush2.bf16.msra.mxu0 0
    %2424 = vmatprep.subr.bf16.mxu0 0
    %2425 = vmatpush2.bf16.msra.mxu0 0
    %2426 = vmatprep.mubr.bf16.mxu0 0
    %2427 = vmatmul.mubr.bf16.gmra.mxu0 %v2392
    %v2428 = vpop.f32.mrf.mxu0
    %v2429 = vadd.f32 0.0, %v2428
    %v2430 = vpop.f32.mrf.mxu0
    %v2431 = vpop.f32.mrf.mxu0
    %v2432 = vpop.f32.mrf.mxu0
    %2433 = vdwg.mxu0
    %v2434 = vpack.c.bf16 %v2429, %v2429
    %s2435 = scalar_lea.vmem %s16, 192
    %v2436 = vld [vmem:[%s2435] sm:$0xf]
    %v2437 = vld [vmem:[%s2435 + $0x4] sm:$0xf]
    %v2438 = vld [vmem:[%s2435 + $0x8] sm:$0xf]
    %v2439 = vld [vmem:[%s2435 + $0xc] sm:$0xf]
    %v2440 = vld [vmem:[%s2435 + $0x10] sm:$0xf]
    %v2441 = vld [vmem:[%s2435 + $0x14] sm:$0xf]
    %v2442 = vld [vmem:[%s2435 + $0x18] sm:$0xf]
    %v2443 = vld [vmem:[%s2435 + $0x1c] sm:$0xf]
    %v2444 = vld [vmem:[%s2435 + $0x20] sm:$0xf]
    %v2445 = vld [vmem:[%s2435 + $0x24] sm:$0xf]
    %v2446 = vld [vmem:[%s2435 + $0x28] sm:$0xf]
    %v2447 = vld [vmem:[%s2435 + $0x2c] sm:$0xf]
    %v2448 = vld [vmem:[%s2435 + $0x30] sm:$0xf]
    %v2449 = vld [vmem:[%s2435 + $0x34] sm:$0xf]
    %v2450 = vld [vmem:[%s2435 + $0x38] sm:$0xf]
    %v2451 = vld [vmem:[%s2435 + $0x3c] sm:$0xf]
    %v2468 = vunpack.c.l.b16 %v2436
    %v2469 = vunpack.c.l.b16 %v2437
    %v2470 = vunpack.c.l.b16 %v2438
    %v2471 = vunpack.c.l.b16 %v2439
    %v2472 = vunpack.c.l.b16 %v2440
    %v2473 = vunpack.c.l.b16 %v2441
    %v2474 = vunpack.c.l.b16 %v2442
    %v2475 = vunpack.c.l.b16 %v2443
    %v2476 = vunpack.c.l.b16 %v2444
    %v2477 = vunpack.c.l.b16 %v2445
    %v2478 = vunpack.c.l.b16 %v2446
    %v2479 = vunpack.c.l.b16 %v2447
    %v2480 = vunpack.c.l.b16 %v2448
    %v2481 = vunpack.c.l.b16 %v2449
    %v2482 = vunpack.c.l.b16 %v2450
    %v2483 = vunpack.c.l.b16 %v2451
    %v2484 = vpack.c.b16 %v2469, %v2468
    %v2485 = vpack.c.b16 %v2471, %v2470
    %v2486 = vpack.c.b16 %v2473, %v2472
    %v2487 = vpack.c.b16 %v2475, %v2474
    %v2488 = vpack.c.b16 %v2477, %v2476
    %v2489 = vpack.c.b16 %v2479, %v2478
    %v2490 = vpack.c.b16 %v2481, %v2480
    %v2491 = vpack.c.b16 %v2483, %v2482
    %2500 = vmatprep.subr.bf16.mxu0 0
    %2501 = vmatpush1.bf16.msra.mxu0 %v2491
    %2502 = vmatprep.subr.bf16.mxu0 0
    %2503 = vmatpush1.bf16.msra.mxu0 %v2490
    %2504 = vmatprep.subr.bf16.mxu0 0
    %2505 = vmatpush1.bf16.msra.mxu0 %v2489
    %2506 = vmatprep.subr.bf16.mxu0 0
    %2507 = vmatpush1.bf16.msra.mxu0 %v2488
    %2508 = vmatprep.subr.bf16.mxu0 0
    %2509 = vmatpush1.bf16.msra.mxu0 %v2487
    %2510 = vmatprep.subr.bf16.mxu0 0
    %2511 = vmatpush1.bf16.msra.mxu0 %v2486
    %2512 = vmatprep.subr.bf16.mxu0 0
    %2513 = vmatpush1.bf16.msra.mxu0 %v2485
    %2514 = vmatprep.subr.bf16.mxu0 0
    %2515 = vmatpush1.bf16.msra.mxu0 %v2484
    %2516 = vmatprep.subr.bf16.mxu0 0
    %2517 = vmatpush2.bf16.msra.mxu0 0
    %2518 = vmatprep.subr.bf16.mxu0 0
    %2519 = vmatpush2.bf16.msra.mxu0 0
    %2520 = vmatprep.subr.bf16.mxu0 0
    %2521 = vmatpush2.bf16.msra.mxu0 0
    %2522 = vmatprep.subr.bf16.mxu0 0
    %2523 = vmatpush2.bf16.msra.mxu0 0
    %2524 = vmatprep.subr.bf16.mxu0 0
    %2525 = vmatpush2.bf16.msra.mxu0 0
    %2526 = vmatprep.subr.bf16.mxu0 0
    %2527 = vmatpush2.bf16.msra.mxu0 0
    %2528 = vmatprep.subr.bf16.mxu0 0
    %2529 = vmatpush2.bf16.msra.mxu0 0
    %2530 = vmatprep.subr.bf16.mxu0 0
    %2531 = vmatpush2.bf16.msra.mxu0 0
    %2532 = vmatprep.mubr.bf16.mxu0 0
    %2533 = vmatmul.mubr.bf16.gmra.mxu0 %v2434
    %v2534 = vpop.f32.mrf.mxu0
    %v2535 = vadd.f32 0.0, %v2534
    %v2536 = vpop.f32.mrf.mxu0
    %v2537 = vpop.f32.mrf.mxu0
    %v2538 = vpop.f32.mrf.mxu0
    %2539 = vdwg.mxu0
    %v2540 = vadd.f32 %v2388, %v2535
    %v2541 = vld [vmem:[#allocation18] sm:$0xff]
    %v2542 = vadd.f32 %v2540, %v2541
    %vm2543 = vcmp.gt.f32.partialorder %v2542, 0.0
    %v2544 = vmul.f32 %v2542, 0.01
    %v2545 = vsel %vm2543, %v2542, %v2544
    %v2546 = vpack.c.bf16 %v2545, %v2545
    %v2547 = vld [vmem:[%s18] sm:$0xf]
    %v2548 = vld [vmem:[%s18 + $0x4] sm:$0xf]
    %v2551 = vunpack.c.l.b16 %v2547
    %v2552 = vunpack.c.l.b16 %v2548
    %v2553 = vpack.c.b16 %v2552, %v2551
    %v2555 = vsel %vm1117, %v2553, 0
    %v2558 = vsel %vm1121, %v2546, 0
    %2560 = vmatprep.subr.bf16.mxu0 0
    %2561 = vmatpush1.bf16.msra.mxu0 0
    %2562 = vmatprep.subr.bf16.mxu0 0
    %2563 = vmatpush1.bf16.msra.mxu0 0
    %2564 = vmatprep.subr.bf16.mxu0 0
    %2565 = vmatpush1.bf16.msra.mxu0 0
    %2566 = vmatprep.subr.bf16.mxu0 0
    %2567 = vmatpush1.bf16.msra.mxu0 0
    %2568 = vmatprep.subr.bf16.mxu0 0
    %2569 = vmatpush1.bf16.msra.mxu0 0
    %2570 = vmatprep.subr.bf16.mxu0 0
    %2571 = vmatpush1.bf16.msra.mxu0 0
    %2572 = vmatprep.subr.bf16.mxu0 0
    %2573 = vmatpush1.bf16.msra.mxu0 0
    %2574 = vmatprep.subr.bf16.mxu0 0
    %2575 = vmatpush1.bf16.msra.mxu0 %v2558
    %2576 = vmatprep.subr.bf16.mxu0 0
    %2577 = vmatpush2.bf16.msra.mxu0 0
    %2578 = vmatprep.subr.bf16.mxu0 0
    %2579 = vmatpush2.bf16.msra.mxu0 0
    %2580 = vmatprep.subr.bf16.mxu0 0
    %2581 = vmatpush2.bf16.msra.mxu0 0
    %2582 = vmatprep.subr.bf16.mxu0 0
    %2583 = vmatpush2.bf16.msra.mxu0 0
    %2584 = vmatprep.subr.bf16.mxu0 0
    %2585 = vmatpush2.bf16.msra.mxu0 0
    %2586 = vmatprep.subr.bf16.mxu0 0
    %2587 = vmatpush2.bf16.msra.mxu0 0
    %2588 = vmatprep.subr.bf16.mxu0 0
    %2589 = vmatpush2.bf16.msra.mxu0 0
    %2590 = vmatprep.subr.bf16.mxu0 0
    %2591 = vmatpush2.bf16.msra.mxu0 0
    %2592 = vmatprep.mubr.bf16.mxu0 0
    %2593 = vmatmul.mubr.bf16.gmra.mxu0 %v2555
    %v2594 = vpop.f32.mrf.mxu0
    %v2595 = vadd.f32 0.0, %v2594
    %v2596 = vpop.f32.mrf.mxu0
    %v2597 = vpop.f32.mrf.mxu0
    %v2598 = vadd.f32 0.0, %v2597
    %v2599 = vpop.f32.mrf.mxu0
    %2600 = vdwg.mxu0
    %v2601 = vpack.c.bf16 %v2598, %v2595
    %v2602 = vld [vmem:[%s19] sm:$0xf]
    %v2603 = vld [vmem:[%s19 + $0x4] sm:$0xf]
    %v2604 = vld [vmem:[%s19 + $0x8] sm:$0xf]
    %v2605 = vld [vmem:[%s19 + $0xc] sm:$0xf]
    %v2606 = vld [vmem:[%s19 + $0x10] sm:$0xf]
    %v2607 = vld [vmem:[%s19 + $0x14] sm:$0xf]
    %v2608 = vld [vmem:[%s19 + $0x18] sm:$0xf]
    %v2609 = vld [vmem:[%s19 + $0x1c] sm:$0xf]
    %v2610 = vld [vmem:[%s19 + $0x20] sm:$0xf]
    %v2611 = vld [vmem:[%s19 + $0x24] sm:$0xf]
    %v2612 = vld [vmem:[%s19 + $0x28] sm:$0xf]
    %v2613 = vld [vmem:[%s19 + $0x2c] sm:$0xf]
    %v2614 = vld [vmem:[%s19 + $0x30] sm:$0xf]
    %v2615 = vld [vmem:[%s19 + $0x34] sm:$0xf]
    %v2616 = vld [vmem:[%s19 + $0x38] sm:$0xf]
    %v2617 = vld [vmem:[%s19 + $0x3c] sm:$0xf]
    %s2618 = scalar_lea.vmem %s18, 8
    %v2619 = vld [vmem:[%s2618] sm:$0xf]
    %v2620 = vld [vmem:[%s2618 + $0x4] sm:$0xf]
    %v2623 = vunpack.c.l.b16 %v2619
    %v2624 = vunpack.c.l.b16 %v2620
    %v2625 = vpack.c.b16 %v2624, %v2623
    %v2627 = vsel %vm1117, %v2625, 0
    %2629 = vmatprep.subr.bf16.mxu0 0
    %2630 = vmatpush1.bf16.msra.mxu0 0
    %2631 = vmatprep.subr.bf16.mxu0 0
    %2632 = vmatpush1.bf16.msra.mxu0 0
    %2633 = vmatprep.subr.bf16.mxu0 0
    %2634 = vmatpush1.bf16.msra.mxu0 0
    %2635 = vmatprep.subr.bf16.mxu0 0
    %2636 = vmatpush1.bf16.msra.mxu0 0
    %2637 = vmatprep.subr.bf16.mxu0 0
    %2638 = vmatpush1.bf16.msra.mxu0 0
    %2639 = vmatprep.subr.bf16.mxu0 0
    %2640 = vmatpush1.bf16.msra.mxu0 0
    %2641 = vmatprep.subr.bf16.mxu0 0
    %2642 = vmatpush1.bf16.msra.mxu0 0
    %2643 = vmatprep.subr.bf16.mxu0 0
    %2644 = vmatpush1.bf16.msra.mxu0 %v2558
    %2645 = vmatprep.subr.bf16.mxu0 0
    %2646 = vmatpush2.bf16.msra.mxu0 0
    %2647 = vmatprep.subr.bf16.mxu0 0
    %2648 = vmatpush2.bf16.msra.mxu0 0
    %2649 = vmatprep.subr.bf16.mxu0 0
    %2650 = vmatpush2.bf16.msra.mxu0 0
    %2651 = vmatprep.subr.bf16.mxu0 0
    %2652 = vmatpush2.bf16.msra.mxu0 0
    %2653 = vmatprep.subr.bf16.mxu0 0
    %2654 = vmatpush2.bf16.msra.mxu0 0
    %2655 = vmatprep.subr.bf16.mxu0 0
    %2656 = vmatpush2.bf16.msra.mxu0 0
    %2657 = vmatprep.subr.bf16.mxu0 0
    %2658 = vmatpush2.bf16.msra.mxu0 0
    %2659 = vmatprep.subr.bf16.mxu0 0
    %2660 = vmatpush2.bf16.msra.mxu0 0
    %2661 = vmatprep.mubr.bf16.mxu0 0
    %2662 = vmatmul.mubr.bf16.gmra.mxu0 %v2627
    %v2663 = vpop.f32.mrf.mxu0
    %v2664 = vadd.f32 0.0, %v2663
    %v2665 = vpop.f32.mrf.mxu0
    %v2666 = vpop.f32.mrf.mxu0
    %v2667 = vadd.f32 0.0, %v2666
    %v2668 = vpop.f32.mrf.mxu0
    %2669 = vdwg.mxu0
    %v2670 = vpack.c.bf16 %v2667, %v2664
    %s2671 = scalar_lea.vmem %s19, 64
    %v2672 = vld [vmem:[%s2671] sm:$0xf]
    %v2673 = vld [vmem:[%s2671 + $0x4] sm:$0xf]
    %v2674 = vld [vmem:[%s2671 + $0x8] sm:$0xf]
    %v2675 = vld [vmem:[%s2671 + $0xc] sm:$0xf]
    %v2676 = vld [vmem:[%s2671 + $0x10] sm:$0xf]
    %v2677 = vld [vmem:[%s2671 + $0x14] sm:$0xf]
    %v2678 = vld [vmem:[%s2671 + $0x18] sm:$0xf]
    %v2679 = vld [vmem:[%s2671 + $0x1c] sm:$0xf]
    %v2680 = vld [vmem:[%s2671 + $0x20] sm:$0xf]
    %v2681 = vld [vmem:[%s2671 + $0x24] sm:$0xf]
    %v2682 = vld [vmem:[%s2671 + $0x28] sm:$0xf]
    %v2683 = vld [vmem:[%s2671 + $0x2c] sm:$0xf]
    %v2684 = vld [vmem:[%s2671 + $0x30] sm:$0xf]
    %v2685 = vld [vmem:[%s2671 + $0x34] sm:$0xf]
    %v2686 = vld [vmem:[%s2671 + $0x38] sm:$0xf]
    %v2687 = vld [vmem:[%s2671 + $0x3c] sm:$0xf]
    %v2704 = vunpack.c.l.b16 %v2672
    %v2705 = vunpack.c.l.b16 %v2673
    %v2706 = vunpack.c.l.b16 %v2674
    %v2707 = vunpack.c.l.b16 %v2675
    %v2708 = vunpack.c.l.b16 %v2676
    %v2709 = vunpack.c.l.b16 %v2677
    %v2710 = vunpack.c.l.b16 %v2678
    %v2711 = vunpack.c.l.b16 %v2679
    %v2712 = vunpack.c.l.b16 %v2680
    %v2713 = vunpack.c.l.b16 %v2681
    %v2714 = vunpack.c.l.b16 %v2682
    %v2715 = vunpack.c.l.b16 %v2683
    %v2716 = vunpack.c.l.b16 %v2684
    %v2717 = vunpack.c.l.b16 %v2685
    %v2718 = vunpack.c.l.b16 %v2686
    %v2719 = vunpack.c.l.b16 %v2687
    %v2720 = vpack.c.b16 %v2705, %v2704
    %v2721 = vpack.c.b16 %v2707, %v2706
    %v2722 = vpack.c.b16 %v2709, %v2708
    %v2723 = vpack.c.b16 %v2711, %v2710
    %v2724 = vpack.c.b16 %v2713, %v2712
    %v2725 = vpack.c.b16 %v2715, %v2714
    %v2726 = vpack.c.b16 %v2717, %v2716
    %v2727 = vpack.c.b16 %v2719, %v2718
    %2736 = vmatprep.subr.bf16.mxu0 0
    %2737 = vmatpush1.bf16.msra.mxu0 %v2727
    %2738 = vmatprep.subr.bf16.mxu0 0
    %2739 = vmatpush1.bf16.msra.mxu0 %v2726
    %2740 = vmatprep.subr.bf16.mxu0 0
    %2741 = vmatpush1.bf16.msra.mxu0 %v2725
    %2742 = vmatprep.subr.bf16.mxu0 0
    %2743 = vmatpush1.bf16.msra.mxu0 %v2724
    %2744 = vmatprep.subr.bf16.mxu0 0
    %2745 = vmatpush1.bf16.msra.mxu0 %v2723
    %2746 = vmatprep.subr.bf16.mxu0 0
    %2747 = vmatpush1.bf16.msra.mxu0 %v2722
    %2748 = vmatprep.subr.bf16.mxu0 0
    %2749 = vmatpush1.bf16.msra.mxu0 %v2721
    %2750 = vmatprep.subr.bf16.mxu0 0
    %2751 = vmatpush1.bf16.msra.mxu0 %v2720
    %2752 = vmatprep.subr.bf16.mxu0 0
    %2753 = vmatpush2.bf16.msra.mxu0 0
    %2754 = vmatprep.subr.bf16.mxu0 0
    %2755 = vmatpush2.bf16.msra.mxu0 0
    %2756 = vmatprep.subr.bf16.mxu0 0
    %2757 = vmatpush2.bf16.msra.mxu0 0
    %2758 = vmatprep.subr.bf16.mxu0 0
    %2759 = vmatpush2.bf16.msra.mxu0 0
    %2760 = vmatprep.subr.bf16.mxu0 0
    %2761 = vmatpush2.bf16.msra.mxu0 0
    %2762 = vmatprep.subr.bf16.mxu0 0
    %2763 = vmatpush2.bf16.msra.mxu0 0
    %2764 = vmatprep.subr.bf16.mxu0 0
    %2765 = vmatpush2.bf16.msra.mxu0 0
    %2766 = vmatprep.subr.bf16.mxu0 0
    %2767 = vmatpush2.bf16.msra.mxu0 0
    %2768 = vmatprep.mubr.bf16.mxu0 0
    %2769 = vmatmul.mubr.bf16.gmra.mxu0 %v2670
    %v2770 = vpop.f32.mrf.mxu0
    %v2771 = vadd.f32 0.0, %v2770
    %v2772 = vpop.f32.mrf.mxu0
    %v2773 = vpop.f32.mrf.mxu0
    %v2774 = vadd.f32 0.0, %v2773
    %v2775 = vpop.f32.mrf.mxu0
    %2776 = vdwg.mxu0
    %v2793 = vunpack.c.l.b16 %v2602
    %v2794 = vunpack.c.l.b16 %v2603
    %v2795 = vunpack.c.l.b16 %v2604
    %v2796 = vunpack.c.l.b16 %v2605
    %v2797 = vunpack.c.l.b16 %v2606
    %v2798 = vunpack.c.l.b16 %v2607
    %v2799 = vunpack.c.l.b16 %v2608
    %v2800 = vunpack.c.l.b16 %v2609
    %v2801 = vunpack.c.l.b16 %v2610
    %v2802 = vunpack.c.l.b16 %v2611
    %v2803 = vunpack.c.l.b16 %v2612
    %v2804 = vunpack.c.l.b16 %v2613
    %v2805 = vunpack.c.l.b16 %v2614
    %v2806 = vunpack.c.l.b16 %v2615
    %v2807 = vunpack.c.l.b16 %v2616
    %v2808 = vunpack.c.l.b16 %v2617
    %v2809 = vpack.c.b16 %v2794, %v2793
    %v2810 = vpack.c.b16 %v2796, %v2795
    %v2811 = vpack.c.b16 %v2798, %v2797
    %v2812 = vpack.c.b16 %v2800, %v2799
    %v2813 = vpack.c.b16 %v2802, %v2801
    %v2814 = vpack.c.b16 %v2804, %v2803
    %v2815 = vpack.c.b16 %v2806, %v2805
    %v2816 = vpack.c.b16 %v2808, %v2807
    %2825 = vmatprep.subr.bf16.mxu0 0
    %2826 = vmatpush1.bf16.msra.mxu0 %v2816
    %2827 = vmatprep.subr.bf16.mxu0 0
    %2828 = vmatpush1.bf16.msra.mxu0 %v2815
    %2829 = vmatprep.subr.bf16.mxu0 0
    %2830 = vmatpush1.bf16.msra.mxu0 %v2814
    %2831 = vmatprep.subr.bf16.mxu0 0
    %2832 = vmatpush1.bf16.msra.mxu0 %v2813
    %2833 = vmatprep.subr.bf16.mxu0 0
    %2834 = vmatpush1.bf16.msra.mxu0 %v2812
    %2835 = vmatprep.subr.bf16.mxu0 0
    %2836 = vmatpush1.bf16.msra.mxu0 %v2811
    %2837 = vmatprep.subr.bf16.mxu0 0
    %2838 = vmatpush1.bf16.msra.mxu0 %v2810
    %2839 = vmatprep.subr.bf16.mxu0 0
    %2840 = vmatpush1.bf16.msra.mxu0 %v2809
    %2841 = vmatprep.subr.bf16.mxu0 0
    %2842 = vmatpush2.bf16.msra.mxu0 0
    %2843 = vmatprep.subr.bf16.mxu0 0
    %2844 = vmatpush2.bf16.msra.mxu0 0
    %2845 = vmatprep.subr.bf16.mxu0 0
    %2846 = vmatpush2.bf16.msra.mxu0 0
    %2847 = vmatprep.subr.bf16.mxu0 0
    %2848 = vmatpush2.bf16.msra.mxu0 0
    %2849 = vmatprep.subr.bf16.mxu0 0
    %2850 = vmatpush2.bf16.msra.mxu0 0
    %2851 = vmatprep.subr.bf16.mxu0 0
    %2852 = vmatpush2.bf16.msra.mxu0 0
    %2853 = vmatprep.subr.bf16.mxu0 0
    %2854 = vmatpush2.bf16.msra.mxu0 0
    %2855 = vmatprep.subr.bf16.mxu0 0
    %2856 = vmatpush2.bf16.msra.mxu0 0
    %2857 = vmatprep.mubr.bf16.mxu0 0
    %2858 = vmatmul.mubr.bf16.gmra.mxu0 %v2601
    %v2859 = vpop.f32.mrf.mxu0
    %v2860 = vadd.f32 %v2771, %v2859
    %v2861 = vpop.f32.mrf.mxu0
    %v2862 = vpop.f32.mrf.mxu0
    %v2863 = vadd.f32 %v2774, %v2862
    %v2864 = vpop.f32.mrf.mxu0
    %2865 = vdwg.mxu0
    %s2866 = scalar_lea.vmem %s18, 16
    %v2867 = vld [vmem:[%s2866] sm:$0xf]
    %v2868 = vld [vmem:[%s2866 + $0x4] sm:$0xf]
    %v2871 = vunpack.c.l.b16 %v2867
    %v2872 = vunpack.c.l.b16 %v2868
    %v2873 = vpack.c.b16 %v2872, %v2871
    %v2875 = vsel %vm1117, %v2873, 0
    %2877 = vmatprep.subr.bf16.mxu0 0
    %2878 = vmatpush1.bf16.msra.mxu0 0
    %2879 = vmatprep.subr.bf16.mxu0 0
    %2880 = vmatpush1.bf16.msra.mxu0 0
    %2881 = vmatprep.subr.bf16.mxu0 0
    %2882 = vmatpush1.bf16.msra.mxu0 0
    %2883 = vmatprep.subr.bf16.mxu0 0
    %2884 = vmatpush1.bf16.msra.mxu0 0
    %2885 = vmatprep.subr.bf16.mxu0 0
    %2886 = vmatpush1.bf16.msra.mxu0 0
    %2887 = vmatprep.subr.bf16.mxu0 0
    %2888 = vmatpush1.bf16.msra.mxu0 0
    %2889 = vmatprep.subr.bf16.mxu0 0
    %2890 = vmatpush1.bf16.msra.mxu0 0
    %2891 = vmatprep.subr.bf16.mxu0 0
    %2892 = vmatpush1.bf16.msra.mxu0 %v2558
    %2893 = vmatprep.subr.bf16.mxu0 0
    %2894 = vmatpush2.bf16.msra.mxu0 0
    %2895 = vmatprep.subr.bf16.mxu0 0
    %2896 = vmatpush2.bf16.msra.mxu0 0
    %2897 = vmatprep.subr.bf16.mxu0 0
    %2898 = vmatpush2.bf16.msra.mxu0 0
    %2899 = vmatprep.subr.bf16.mxu0 0
    %2900 = vmatpush2.bf16.msra.mxu0 0
    %2901 = vmatprep.subr.bf16.mxu0 0
    %2902 = vmatpush2.bf16.msra.mxu0 0
    %2903 = vmatprep.subr.bf16.mxu0 0
    %2904 = vmatpush2.bf16.msra.mxu0 0
    %2905 = vmatprep.subr.bf16.mxu0 0
    %2906 = vmatpush2.bf16.msra.mxu0 0
    %2907 = vmatprep.subr.bf16.mxu0 0
    %2908 = vmatpush2.bf16.msra.mxu0 0
    %2909 = vmatprep.mubr.bf16.mxu0 0
    %2910 = vmatmul.mubr.bf16.gmra.mxu0 %v2875
    %v2911 = vpop.f32.mrf.mxu0
    %v2912 = vadd.f32 0.0, %v2911
    %v2913 = vpop.f32.mrf.mxu0
    %v2914 = vpop.f32.mrf.mxu0
    %v2915 = vadd.f32 0.0, %v2914
    %v2916 = vpop.f32.mrf.mxu0
    %2917 = vdwg.mxu0
    %v2918 = vpack.c.bf16 %v2915, %v2912
    %s2919 = scalar_lea.vmem %s19, 128
    %v2920 = vld [vmem:[%s2919] sm:$0xf]
    %v2921 = vld [vmem:[%s2919 + $0x4] sm:$0xf]
    %v2922 = vld [vmem:[%s2919 + $0x8] sm:$0xf]
    %v2923 = vld [vmem:[%s2919 + $0xc] sm:$0xf]
    %v2924 = vld [vmem:[%s2919 + $0x10] sm:$0xf]
    %v2925 = vld [vmem:[%s2919 + $0x14] sm:$0xf]
    %v2926 = vld [vmem:[%s2919 + $0x18] sm:$0xf]
    %v2927 = vld [vmem:[%s2919 + $0x1c] sm:$0xf]
    %v2928 = vld [vmem:[%s2919 + $0x20] sm:$0xf]
    %v2929 = vld [vmem:[%s2919 + $0x24] sm:$0xf]
    %v2930 = vld [vmem:[%s2919 + $0x28] sm:$0xf]
    %v2931 = vld [vmem:[%s2919 + $0x2c] sm:$0xf]
    %v2932 = vld [vmem:[%s2919 + $0x30] sm:$0xf]
    %v2933 = vld [vmem:[%s2919 + $0x34] sm:$0xf]
    %v2934 = vld [vmem:[%s2919 + $0x38] sm:$0xf]
    %v2935 = vld [vmem:[%s2919 + $0x3c] sm:$0xf]
    %v2952 = vunpack.c.l.b16 %v2920
    %v2953 = vunpack.c.l.b16 %v2921
    %v2954 = vunpack.c.l.b16 %v2922
    %v2955 = vunpack.c.l.b16 %v2923
    %v2956 = vunpack.c.l.b16 %v2924
    %v2957 = vunpack.c.l.b16 %v2925
    %v2958 = vunpack.c.l.b16 %v2926
    %v2959 = vunpack.c.l.b16 %v2927
    %v2960 = vunpack.c.l.b16 %v2928
    %v2961 = vunpack.c.l.b16 %v2929
    %v2962 = vunpack.c.l.b16 %v2930
    %v2963 = vunpack.c.l.b16 %v2931
    %v2964 = vunpack.c.l.b16 %v2932
    %v2965 = vunpack.c.l.b16 %v2933
    %v2966 = vunpack.c.l.b16 %v2934
    %v2967 = vunpack.c.l.b16 %v2935
    %v2968 = vpack.c.b16 %v2953, %v2952
    %v2969 = vpack.c.b16 %v2955, %v2954
    %v2970 = vpack.c.b16 %v2957, %v2956
    %v2971 = vpack.c.b16 %v2959, %v2958
    %v2972 = vpack.c.b16 %v2961, %v2960
    %v2973 = vpack.c.b16 %v2963, %v2962
    %v2974 = vpack.c.b16 %v2965, %v2964
    %v2975 = vpack.c.b16 %v2967, %v2966
    %2984 = vmatprep.subr.bf16.mxu0 0
    %2985 = vmatpush1.bf16.msra.mxu0 %v2975
    %2986 = vmatprep.subr.bf16.mxu0 0
    %2987 = vmatpush1.bf16.msra.mxu0 %v2974
    %2988 = vmatprep.subr.bf16.mxu0 0
    %2989 = vmatpush1.bf16.msra.mxu0 %v2973
    %2990 = vmatprep.subr.bf16.mxu0 0
    %2991 = vmatpush1.bf16.msra.mxu0 %v2972
    %2992 = vmatprep.subr.bf16.mxu0 0
    %2993 = vmatpush1.bf16.msra.mxu0 %v2971
    %2994 = vmatprep.subr.bf16.mxu0 0
    %2995 = vmatpush1.bf16.msra.mxu0 %v2970
    %2996 = vmatprep.subr.bf16.mxu0 0
    %2997 = vmatpush1.bf16.msra.mxu0 %v2969
    %2998 = vmatprep.subr.bf16.mxu0 0
    %2999 = vmatpush1.bf16.msra.mxu0 %v2968
    %3000 = vmatprep.subr.bf16.mxu0 0
    %3001 = vmatpush2.bf16.msra.mxu0 0
    %3002 = vmatprep.subr.bf16.mxu0 0
    %3003 = vmatpush2.bf16.msra.mxu0 0
    %3004 = vmatprep.subr.bf16.mxu0 0
    %3005 = vmatpush2.bf16.msra.mxu0 0
    %3006 = vmatprep.subr.bf16.mxu0 0
    %3007 = vmatpush2.bf16.msra.mxu0 0
    %3008 = vmatprep.subr.bf16.mxu0 0
    %3009 = vmatpush2.bf16.msra.mxu0 0
    %3010 = vmatprep.subr.bf16.mxu0 0
    %3011 = vmatpush2.bf16.msra.mxu0 0
    %3012 = vmatprep.subr.bf16.mxu0 0
    %3013 = vmatpush2.bf16.msra.mxu0 0
    %3014 = vmatprep.subr.bf16.mxu0 0
    %3015 = vmatpush2.bf16.msra.mxu0 0
    %3016 = vmatprep.mubr.bf16.mxu0 0
    %3017 = vmatmul.mubr.bf16.gmra.mxu0 %v2918
    %v3018 = vpop.f32.mrf.mxu0
    %v3019 = vadd.f32 0.0, %v3018
    %v3020 = vpop.f32.mrf.mxu0
    %v3021 = vpop.f32.mrf.mxu0
    %v3022 = vadd.f32 0.0, %v3021
    %v3023 = vpop.f32.mrf.mxu0
    %3024 = vdwg.mxu0
    %v3025 = vadd.f32 %v2860, %v3019
    %v3026 = vadd.f32 %v2863, %v3022
    %s3027 = scalar_lea.vmem %s18, 24
    %v3028 = vld [vmem:[%s3027] sm:$0xf]
    %v3029 = vld [vmem:[%s3027 + $0x4] sm:$0xf]
    %v3032 = vunpack.c.l.b16 %v3028
    %v3033 = vunpack.c.l.b16 %v3029
    %v3034 = vpack.c.b16 %v3033, %v3032
    %v3036 = vsel %vm1117, %v3034, 0
    %3038 = vmatprep.subr.bf16.mxu0 0
    %3039 = vmatpush1.bf16.msra.mxu0 0
    %3040 = vmatprep.subr.bf16.mxu0 0
    %3041 = vmatpush1.bf16.msra.mxu0 0
    %3042 = vmatprep.subr.bf16.mxu0 0
    %3043 = vmatpush1.bf16.msra.mxu0 0
    %3044 = vmatprep.subr.bf16.mxu0 0
    %3045 = vmatpush1.bf16.msra.mxu0 0
    %3046 = vmatprep.subr.bf16.mxu0 0
    %3047 = vmatpush1.bf16.msra.mxu0 0
    %3048 = vmatprep.subr.bf16.mxu0 0
    %3049 = vmatpush1.bf16.msra.mxu0 0
    %3050 = vmatprep.subr.bf16.mxu0 0
    %3051 = vmatpush1.bf16.msra.mxu0 0
    %3052 = vmatprep.subr.bf16.mxu0 0
    %3053 = vmatpush1.bf16.msra.mxu0 %v2558
    %3054 = vmatprep.subr.bf16.mxu0 0
    %3055 = vmatpush2.bf16.msra.mxu0 0
    %3056 = vmatprep.subr.bf16.mxu0 0
    %3057 = vmatpush2.bf16.msra.mxu0 0
    %3058 = vmatprep.subr.bf16.mxu0 0
    %3059 = vmatpush2.bf16.msra.mxu0 0
    %3060 = vmatprep.subr.bf16.mxu0 0
    %3061 = vmatpush2.bf16.msra.mxu0 0
    %3062 = vmatprep.subr.bf16.mxu0 0
    %3063 = vmatpush2.bf16.msra.mxu0 0
    %3064 = vmatprep.subr.bf16.mxu0 0
    %3065 = vmatpush2.bf16.msra.mxu0 0
    %3066 = vmatprep.subr.bf16.mxu0 0
    %3067 = vmatpush2.bf16.msra.mxu0 0
    %3068 = vmatprep.subr.bf16.mxu0 0
    %3069 = vmatpush2.bf16.msra.mxu0 0
    %3070 = vmatprep.mubr.bf16.mxu0 0
    %3071 = vmatmul.mubr.bf16.gmra.mxu0 %v3036
    %v3072 = vpop.f32.mrf.mxu0
    %v3073 = vadd.f32 0.0, %v3072
    %v3074 = vpop.f32.mrf.mxu0
    %v3075 = vpop.f32.mrf.mxu0
    %v3076 = vadd.f32 0.0, %v3075
    %v3077 = vpop.f32.mrf.mxu0
    %3078 = vdwg.mxu0
    %v3079 = vpack.c.bf16 %v3076, %v3073
    %s3080 = scalar_lea.vmem %s19, 192
    %v3081 = vld [vmem:[%s3080] sm:$0xf]
    %v3082 = vld [vmem:[%s3080 + $0x4] sm:$0xf]
    %v3083 = vld [vmem:[%s3080 + $0x8] sm:$0xf]
    %v3084 = vld [vmem:[%s3080 + $0xc] sm:$0xf]
    %v3085 = vld [vmem:[%s3080 + $0x10] sm:$0xf]
    %v3086 = vld [vmem:[%s3080 + $0x14] sm:$0xf]
    %v3087 = vld [vmem:[%s3080 + $0x18] sm:$0xf]
    %v3088 = vld [vmem:[%s3080 + $0x1c] sm:$0xf]
    %v3089 = vld [vmem:[%s3080 + $0x20] sm:$0xf]
    %v3090 = vld [vmem:[%s3080 + $0x24] sm:$0xf]
    %v3091 = vld [vmem:[%s3080 + $0x28] sm:$0xf]
    %v3092 = vld [vmem:[%s3080 + $0x2c] sm:$0xf]
    %v3093 = vld [vmem:[%s3080 + $0x30] sm:$0xf]
    %v3094 = vld [vmem:[%s3080 + $0x34] sm:$0xf]
    %v3095 = vld [vmem:[%s3080 + $0x38] sm:$0xf]
    %v3096 = vld [vmem:[%s3080 + $0x3c] sm:$0xf]
    %v3113 = vunpack.c.l.b16 %v3081
    %v3114 = vunpack.c.l.b16 %v3082
    %v3115 = vunpack.c.l.b16 %v3083
    %v3116 = vunpack.c.l.b16 %v3084
    %v3117 = vunpack.c.l.b16 %v3085
    %v3118 = vunpack.c.l.b16 %v3086
    %v3119 = vunpack.c.l.b16 %v3087
    %v3120 = vunpack.c.l.b16 %v3088
    %v3121 = vunpack.c.l.b16 %v3089
    %v3122 = vunpack.c.l.b16 %v3090
    %v3123 = vunpack.c.l.b16 %v3091
    %v3124 = vunpack.c.l.b16 %v3092
    %v3125 = vunpack.c.l.b16 %v3093
    %v3126 = vunpack.c.l.b16 %v3094
    %v3127 = vunpack.c.l.b16 %v3095
    %v3128 = vunpack.c.l.b16 %v3096
    %v3129 = vpack.c.b16 %v3114, %v3113
    %v3130 = vpack.c.b16 %v3116, %v3115
    %v3131 = vpack.c.b16 %v3118, %v3117
    %v3132 = vpack.c.b16 %v3120, %v3119
    %v3133 = vpack.c.b16 %v3122, %v3121
    %v3134 = vpack.c.b16 %v3124, %v3123
    %v3135 = vpack.c.b16 %v3126, %v3125
    %v3136 = vpack.c.b16 %v3128, %v3127
    %3145 = vmatprep.subr.bf16.mxu0 0
    %3146 = vmatpush1.bf16.msra.mxu0 %v3136
    %3147 = vmatprep.subr.bf16.mxu0 0
    %3148 = vmatpush1.bf16.msra.mxu0 %v3135
    %3149 = vmatprep.subr.bf16.mxu0 0
    %3150 = vmatpush1.bf16.msra.mxu0 %v3134
    %3151 = vmatprep.subr.bf16.mxu0 0
    %3152 = vmatpush1.bf16.msra.mxu0 %v3133
    %3153 = vmatprep.subr.bf16.mxu0 0
    %3154 = vmatpush1.bf16.msra.mxu0 %v3132
    %3155 = vmatprep.subr.bf16.mxu0 0
    %3156 = vmatpush1.bf16.msra.mxu0 %v3131
    %3157 = vmatprep.subr.bf16.mxu0 0
    %3158 = vmatpush1.bf16.msra.mxu0 %v3130
    %3159 = vmatprep.subr.bf16.mxu0 0
    %3160 = vmatpush1.bf16.msra.mxu0 %v3129
    %3161 = vmatprep.subr.bf16.mxu0 0
    %3162 = vmatpush2.bf16.msra.mxu0 0
    %3163 = vmatprep.subr.bf16.mxu0 0
    %3164 = vmatpush2.bf16.msra.mxu0 0
    %3165 = vmatprep.subr.bf16.mxu0 0
    %3166 = vmatpush2.bf16.msra.mxu0 0
    %3167 = vmatprep.subr.bf16.mxu0 0
    %3168 = vmatpush2.bf16.msra.mxu0 0
    %3169 = vmatprep.subr.bf16.mxu0 0
    %3170 = vmatpush2.bf16.msra.mxu0 0
    %3171 = vmatprep.subr.bf16.mxu0 0
    %3172 = vmatpush2.bf16.msra.mxu0 0
    %3173 = vmatprep.subr.bf16.mxu0 0
    %3174 = vmatpush2.bf16.msra.mxu0 0
    %3175 = vmatprep.subr.bf16.mxu0 0
    %3176 = vmatpush2.bf16.msra.mxu0 0
    %3177 = vmatprep.mubr.bf16.mxu0 0
    %3178 = vmatmul.mubr.bf16.gmra.mxu0 %v3079
    %v3179 = vpop.f32.mrf.mxu0
    %v3180 = vadd.f32 0.0, %v3179
    %v3181 = vpop.f32.mrf.mxu0
    %v3182 = vpop.f32.mrf.mxu0
    %v3183 = vadd.f32 0.0, %v3182
    %v3184 = vpop.f32.mrf.mxu0
    %3185 = vdwg.mxu0
    %v3186 = vadd.f32 %v3025, %v3180
    %v3187 = vadd.f32 %v3026, %v3183
    %v3188 = vld [vmem:[#allocation19] sm:$0x1]
    %v3190 = vlaneseq
    %v3191 = vshrl.u32 %v3190, 7
    %v3192 = vsub.s32 0, %v3191
    %v3193 = vrot.slane %v3188, %v3192
    %v3195 = vadd.f32 %v3186, %v3193
    %v3196 = vadd.f32 %v3187, %v3193
    %vm3197 = vcmp.gt.f32.partialorder %v3195, 0.0
    %vm3198 = vcmp.gt.f32.partialorder %v3196, 0.0
    %v3199 = vmul.f32 %v3195, 0.01
    %v3200 = vmul.f32 %v3196, 0.01
    %v3201 = vsel %vm3197, %v3195, %v3199
    %v3202 = vsel %vm3198, %v3196, %v3200
    %v3203 = vpack.c.bf16 %v3202, %v3201
    %v3204 = vld [vmem:[%s21] sm:$0xf]
    %v3205 = vld [vmem:[%s21 + $0x4] sm:$0xf]
    %v3206 = vld [vmem:[%s21 + $0x8] sm:$0xf]
    %v3207 = vld [vmem:[%s21 + $0xc] sm:$0xf]
    %v3212 = vunpack.c.l.b16 %v3204
    %v3213 = vunpack.c.l.b16 %v3205
    %v3214 = vunpack.c.l.b16 %v3206
    %v3215 = vunpack.c.l.b16 %v3207
    %v3216 = vpack.c.b16 %v3213, %v3212
    %v3217 = vpack.c.b16 %v3215, %v3214
    %v3219 = vsel %vm652, %v3216, 0
    %v3222 = vsel %vm652, %v3217, 0
    %3224 = vmatprep.subr.bf16.mxu0 0
    %3225 = vmatpush1.bf16.msra.mxu0 0
    %3226 = vmatprep.subr.bf16.mxu0 0
    %3227 = vmatpush1.bf16.msra.mxu0 0
    %3228 = vmatprep.subr.bf16.mxu0 0
    %3229 = vmatpush1.bf16.msra.mxu0 0
    %3230 = vmatprep.subr.bf16.mxu0 0
    %3231 = vmatpush1.bf16.msra.mxu0 0
    %3232 = vmatprep.subr.bf16.mxu0 0
    %3233 = vmatpush1.bf16.msra.mxu0 0
    %3234 = vmatprep.subr.bf16.mxu0 0
    %3235 = vmatpush1.bf16.msra.mxu0 0
    %3236 = vmatprep.subr.bf16.mxu0 0
    %3237 = vmatpush1.bf16.msra.mxu0 0
    %3238 = vmatprep.subr.bf16.mxu0 0
    %3239 = vmatpush1.bf16.msra.mxu0 %v3203
    %3240 = vmatprep.subr.bf16.mxu0 0
    %3241 = vmatpush2.bf16.msra.mxu0 0
    %3242 = vmatprep.subr.bf16.mxu0 0
    %3243 = vmatpush2.bf16.msra.mxu0 0
    %3244 = vmatprep.subr.bf16.mxu0 0
    %3245 = vmatpush2.bf16.msra.mxu0 0
    %3246 = vmatprep.subr.bf16.mxu0 0
    %3247 = vmatpush2.bf16.msra.mxu0 0
    %3248 = vmatprep.subr.bf16.mxu0 0
    %3249 = vmatpush2.bf16.msra.mxu0 0
    %3250 = vmatprep.subr.bf16.mxu0 0
    %3251 = vmatpush2.bf16.msra.mxu0 0
    %3252 = vmatprep.subr.bf16.mxu0 0
    %3253 = vmatpush2.bf16.msra.mxu0 0
    %3254 = vmatprep.subr.bf16.mxu0 0
    %3255 = vmatpush2.bf16.msra.mxu0 0
    %3256 = vmatprep.mubr.bf16.mxu0 0
    %3257 = vmatmul.mubr.bf16.gmra.mxu0 %v3219
    %v3258 = vpop.f32.mrf.mxu0
    %v3259 = vadd.f32 0.0, %v3258
    %v3260 = vpop.f32.mrf.mxu0
    %v3261 = vpop.f32.mrf.mxu0
    %v3262 = vadd.f32 0.0, %v3261
    %v3263 = vpop.f32.mrf.mxu0
    %3264 = vmatprep.mubr.bf16.mxu0 0
    %3265 = vmatmul.mubr.bf16.gmra.mxu0 %v3222
    %v3266 = vpop.f32.mrf.mxu0
    %v3267 = vadd.f32 0.0, %v3266
    %v3268 = vpop.f32.mrf.mxu0
    %v3269 = vpop.f32.mrf.mxu0
    %v3270 = vadd.f32 0.0, %v3269
    %v3271 = vpop.f32.mrf.mxu0
    %3272 = vdwg.mxu0
    %v3273 = vpack.c.bf16 %v3262, %v3259
    %v3274 = vpack.c.bf16 %v3270, %v3267
    %v3275 = vld [vmem:[%s22] sm:$0xf]
    %v3276 = vld [vmem:[%s22 + $0x4] sm:$0xf]
    %v3277 = vld [vmem:[%s22 + $0x8] sm:$0xf]
    %v3278 = vld [vmem:[%s22 + $0xc] sm:$0xf]
    %v3279 = vld [vmem:[%s22 + $0x10] sm:$0xf]
    %v3280 = vld [vmem:[%s22 + $0x14] sm:$0xf]
    %v3281 = vld [vmem:[%s22 + $0x18] sm:$0xf]
    %v3282 = vld [vmem:[%s22 + $0x1c] sm:$0xf]
    %v3283 = vld [vmem:[%s22 + $0x20] sm:$0xf]
    %v3284 = vld [vmem:[%s22 + $0x24] sm:$0xf]
    %v3285 = vld [vmem:[%s22 + $0x28] sm:$0xf]
    %v3286 = vld [vmem:[%s22 + $0x2c] sm:$0xf]
    %v3287 = vld [vmem:[%s22 + $0x30] sm:$0xf]
    %v3288 = vld [vmem:[%s22 + $0x34] sm:$0xf]
    %v3289 = vld [vmem:[%s22 + $0x38] sm:$0xf]
    %v3290 = vld [vmem:[%s22 + $0x3c] sm:$0xf]
    %s3291 = scalar_lea.vmem %s21, 16
    %v3292 = vld [vmem:[%s3291] sm:$0xf]
    %v3293 = vld [vmem:[%s3291 + $0x4] sm:$0xf]
    %v3294 = vld [vmem:[%s3291 + $0x8] sm:$0xf]
    %v3295 = vld [vmem:[%s3291 + $0xc] sm:$0xf]
    %v3300 = vunpack.c.l.b16 %v3292
    %v3301 = vunpack.c.l.b16 %v3293
    %v3302 = vunpack.c.l.b16 %v3294
    %v3303 = vunpack.c.l.b16 %v3295
    %v3304 = vpack.c.b16 %v3301, %v3300
    %v3305 = vpack.c.b16 %v3303, %v3302
    %v3307 = vsel %vm652, %v3304, 0
    %v3310 = vsel %vm652, %v3305, 0
    %3312 = vmatprep.subr.bf16.mxu0 0
    %3313 = vmatpush1.bf16.msra.mxu0 0
    %3314 = vmatprep.subr.bf16.mxu0 0
    %3315 = vmatpush1.bf16.msra.mxu0 0
    %3316 = vmatprep.subr.bf16.mxu0 0
    %3317 = vmatpush1.bf16.msra.mxu0 0
    %3318 = vmatprep.subr.bf16.mxu0 0
    %3319 = vmatpush1.bf16.msra.mxu0 0
    %3320 = vmatprep.subr.bf16.mxu0 0
    %3321 = vmatpush1.bf16.msra.mxu0 0
    %3322 = vmatprep.subr.bf16.mxu0 0
    %3323 = vmatpush1.bf16.msra.mxu0 0
    %3324 = vmatprep.subr.bf16.mxu0 0
    %3325 = vmatpush1.bf16.msra.mxu0 0
    %3326 = vmatprep.subr.bf16.mxu0 0
    %3327 = vmatpush1.bf16.msra.mxu0 %v3203
    %3328 = vmatprep.subr.bf16.mxu0 0
    %3329 = vmatpush2.bf16.msra.mxu0 0
    %3330 = vmatprep.subr.bf16.mxu0 0
    %3331 = vmatpush2.bf16.msra.mxu0 0
    %3332 = vmatprep.subr.bf16.mxu0 0
    %3333 = vmatpush2.bf16.msra.mxu0 0
    %3334 = vmatprep.subr.bf16.mxu0 0
    %3335 = vmatpush2.bf16.msra.mxu0 0
    %3336 = vmatprep.subr.bf16.mxu0 0
    %3337 = vmatpush2.bf16.msra.mxu0 0
    %3338 = vmatprep.subr.bf16.mxu0 0
    %3339 = vmatpush2.bf16.msra.mxu0 0
    %3340 = vmatprep.subr.bf16.mxu0 0
    %3341 = vmatpush2.bf16.msra.mxu0 0
    %3342 = vmatprep.subr.bf16.mxu0 0
    %3343 = vmatpush2.bf16.msra.mxu0 0
    %3344 = vmatprep.mubr.bf16.mxu0 0
    %3345 = vmatmul.mubr.bf16.gmra.mxu0 %v3307
    %v3346 = vpop.f32.mrf.mxu0
    %v3347 = vadd.f32 0.0, %v3346
    %v3348 = vpop.f32.mrf.mxu0
    %v3349 = vpop.f32.mrf.mxu0
    %v3350 = vadd.f32 0.0, %v3349
    %v3351 = vpop.f32.mrf.mxu0
    %3352 = vmatprep.mubr.bf16.mxu0 0
    %3353 = vmatmul.mubr.bf16.gmra.mxu0 %v3310
    %v3354 = vpop.f32.mrf.mxu0
    %v3355 = vadd.f32 0.0, %v3354
    %v3356 = vpop.f32.mrf.mxu0
    %v3357 = vpop.f32.mrf.mxu0
    %v3358 = vadd.f32 0.0, %v3357
    %v3359 = vpop.f32.mrf.mxu0
    %3360 = vdwg.mxu0
    %v3361 = vpack.c.bf16 %v3350, %v3347
    %v3362 = vpack.c.bf16 %v3358, %v3355
    %s3363 = scalar_lea.vmem %s22, 64
    %v3364 = vld [vmem:[%s3363] sm:$0xf]
    %v3365 = vld [vmem:[%s3363 + $0x4] sm:$0xf]
    %v3366 = vld [vmem:[%s3363 + $0x8] sm:$0xf]
    %v3367 = vld [vmem:[%s3363 + $0xc] sm:$0xf]
    %v3368 = vld [vmem:[%s3363 + $0x10] sm:$0xf]
    %v3369 = vld [vmem:[%s3363 + $0x14] sm:$0xf]
    %v3370 = vld [vmem:[%s3363 + $0x18] sm:$0xf]
    %v3371 = vld [vmem:[%s3363 + $0x1c] sm:$0xf]
    %v3372 = vld [vmem:[%s3363 + $0x20] sm:$0xf]
    %v3373 = vld [vmem:[%s3363 + $0x24] sm:$0xf]
    %v3374 = vld [vmem:[%s3363 + $0x28] sm:$0xf]
    %v3375 = vld [vmem:[%s3363 + $0x2c] sm:$0xf]
    %v3376 = vld [vmem:[%s3363 + $0x30] sm:$0xf]
    %v3377 = vld [vmem:[%s3363 + $0x34] sm:$0xf]
    %v3378 = vld [vmem:[%s3363 + $0x38] sm:$0xf]
    %v3379 = vld [vmem:[%s3363 + $0x3c] sm:$0xf]
    %v3396 = vunpack.c.l.b16 %v3364
    %v3397 = vunpack.c.l.b16 %v3365
    %v3398 = vunpack.c.l.b16 %v3366
    %v3399 = vunpack.c.l.b16 %v3367
    %v3400 = vunpack.c.l.b16 %v3368
    %v3401 = vunpack.c.l.b16 %v3369
    %v3402 = vunpack.c.l.b16 %v3370
    %v3403 = vunpack.c.l.b16 %v3371
    %v3404 = vunpack.c.l.b16 %v3372
    %v3405 = vunpack.c.l.b16 %v3373
    %v3406 = vunpack.c.l.b16 %v3374
    %v3407 = vunpack.c.l.b16 %v3375
    %v3408 = vunpack.c.l.b16 %v3376
    %v3409 = vunpack.c.l.b16 %v3377
    %v3410 = vunpack.c.l.b16 %v3378
    %v3411 = vunpack.c.l.b16 %v3379
    %v3412 = vpack.c.b16 %v3397, %v3396
    %v3413 = vpack.c.b16 %v3399, %v3398
    %v3414 = vpack.c.b16 %v3401, %v3400
    %v3415 = vpack.c.b16 %v3403, %v3402
    %v3416 = vpack.c.b16 %v3405, %v3404
    %v3417 = vpack.c.b16 %v3407, %v3406
    %v3418 = vpack.c.b16 %v3409, %v3408
    %v3419 = vpack.c.b16 %v3411, %v3410
    %3428 = vmatprep.subr.bf16.mxu0 0
    %3429 = vmatpush1.bf16.msra.mxu0 %v3419
    %3430 = vmatprep.subr.bf16.mxu0 0
    %3431 = vmatpush1.bf16.msra.mxu0 %v3418
    %3432 = vmatprep.subr.bf16.mxu0 0
    %3433 = vmatpush1.bf16.msra.mxu0 %v3417
    %3434 = vmatprep.subr.bf16.mxu0 0
    %3435 = vmatpush1.bf16.msra.mxu0 %v3416
    %3436 = vmatprep.subr.bf16.mxu0 0
    %3437 = vmatpush1.bf16.msra.mxu0 %v3415
    %3438 = vmatprep.subr.bf16.mxu0 0
    %3439 = vmatpush1.bf16.msra.mxu0 %v3414
    %3440 = vmatprep.subr.bf16.mxu0 0
    %3441 = vmatpush1.bf16.msra.mxu0 %v3413
    %3442 = vmatprep.subr.bf16.mxu0 0
    %3443 = vmatpush1.bf16.msra.mxu0 %v3412
    %3444 = vmatprep.subr.bf16.mxu0 0
    %3445 = vmatpush2.bf16.msra.mxu0 0
    %3446 = vmatprep.subr.bf16.mxu0 0
    %3447 = vmatpush2.bf16.msra.mxu0 0
    %3448 = vmatprep.subr.bf16.mxu0 0
    %3449 = vmatpush2.bf16.msra.mxu0 0
    %3450 = vmatprep.subr.bf16.mxu0 0
    %3451 = vmatpush2.bf16.msra.mxu0 0
    %3452 = vmatprep.subr.bf16.mxu0 0
    %3453 = vmatpush2.bf16.msra.mxu0 0
    %3454 = vmatprep.subr.bf16.mxu0 0
    %3455 = vmatpush2.bf16.msra.mxu0 0
    %3456 = vmatprep.subr.bf16.mxu0 0
    %3457 = vmatpush2.bf16.msra.mxu0 0
    %3458 = vmatprep.subr.bf16.mxu0 0
    %3459 = vmatpush2.bf16.msra.mxu0 0
    %3460 = vmatprep.mubr.bf16.mxu0 0
    %3461 = vmatmul.mubr.bf16.gmra.mxu0 %v3361
    %v3462 = vpop.f32.mrf.mxu0
    %v3463 = vadd.f32 0.0, %v3462
    %v3464 = vpop.f32.mrf.mxu0
    %v3465 = vpop.f32.mrf.mxu0
    %v3466 = vadd.f32 0.0, %v3465
    %v3467 = vpop.f32.mrf.mxu0
    %3468 = vmatprep.mubr.bf16.mxu0 0
    %3469 = vmatmul.mubr.bf16.gmra.mxu0 %v3362
    %v3470 = vpop.f32.mrf.mxu0
    %v3471 = vadd.f32 0.0, %v3470
    %v3472 = vpop.f32.mrf.mxu0
    %v3473 = vpop.f32.mrf.mxu0
    %v3474 = vadd.f32 0.0, %v3473
    %v3475 = vpop.f32.mrf.mxu0
    %3476 = vdwg.mxu0
    %v3493 = vunpack.c.l.b16 %v3275
    %v3494 = vunpack.c.l.b16 %v3276
    %v3495 = vunpack.c.l.b16 %v3277
    %v3496 = vunpack.c.l.b16 %v3278
    %v3497 = vunpack.c.l.b16 %v3279
    %v3498 = vunpack.c.l.b16 %v3280
    %v3499 = vunpack.c.l.b16 %v3281
    %v3500 = vunpack.c.l.b16 %v3282
    %v3501 = vunpack.c.l.b16 %v3283
    %v3502 = vunpack.c.l.b16 %v3284
    %v3503 = vunpack.c.l.b16 %v3285
    %v3504 = vunpack.c.l.b16 %v3286
    %v3505 = vunpack.c.l.b16 %v3287
    %v3506 = vunpack.c.l.b16 %v3288
    %v3507 = vunpack.c.l.b16 %v3289
    %v3508 = vunpack.c.l.b16 %v3290
    %v3509 = vpack.c.b16 %v3494, %v3493
    %v3510 = vpack.c.b16 %v3496, %v3495
    %v3511 = vpack.c.b16 %v3498, %v3497
    %v3512 = vpack.c.b16 %v3500, %v3499
    %v3513 = vpack.c.b16 %v3502, %v3501
    %v3514 = vpack.c.b16 %v3504, %v3503
    %v3515 = vpack.c.b16 %v3506, %v3505
    %v3516 = vpack.c.b16 %v3508, %v3507
    %3525 = vmatprep.subr.bf16.mxu0 0
    %3526 = vmatpush1.bf16.msra.mxu0 %v3516
    %3527 = vmatprep.subr.bf16.mxu0 0
    %3528 = vmatpush1.bf16.msra.mxu0 %v3515
    %3529 = vmatprep.subr.bf16.mxu0 0
    %3530 = vmatpush1.bf16.msra.mxu0 %v3514
    %3531 = vmatprep.subr.bf16.mxu0 0
    %3532 = vmatpush1.bf16.msra.mxu0 %v3513
    %3533 = vmatprep.subr.bf16.mxu0 0
    %3534 = vmatpush1.bf16.msra.mxu0 %v3512
    %3535 = vmatprep.subr.bf16.mxu0 0
    %3536 = vmatpush1.bf16.msra.mxu0 %v3511
    %3537 = vmatprep.subr.bf16.mxu0 0
    %3538 = vmatpush1.bf16.msra.mxu0 %v3510
    %3539 = vmatprep.subr.bf16.mxu0 0
    %3540 = vmatpush1.bf16.msra.mxu0 %v3509
    %3541 = vmatprep.subr.bf16.mxu0 0
    %3542 = vmatpush2.bf16.msra.mxu0 0
    %3543 = vmatprep.subr.bf16.mxu0 0
    %3544 = vmatpush2.bf16.msra.mxu0 0
    %3545 = vmatprep.subr.bf16.mxu0 0
    %3546 = vmatpush2.bf16.msra.mxu0 0
    %3547 = vmatprep.subr.bf16.mxu0 0
    %3548 = vmatpush2.bf16.msra.mxu0 0
    %3549 = vmatprep.subr.bf16.mxu0 0
    %3550 = vmatpush2.bf16.msra.mxu0 0
    %3551 = vmatprep.subr.bf16.mxu0 0
    %3552 = vmatpush2.bf16.msra.mxu0 0
    %3553 = vmatprep.subr.bf16.mxu0 0
    %3554 = vmatpush2.bf16.msra.mxu0 0
    %3555 = vmatprep.subr.bf16.mxu0 0
    %3556 = vmatpush2.bf16.msra.mxu0 0
    %3557 = vmatprep.mubr.bf16.mxu0 0
    %3558 = vmatmul.mubr.bf16.gmra.mxu0 %v3273
    %v3559 = vpop.f32.mrf.mxu0
    %v3560 = vadd.f32 %v3463, %v3559
    %v3561 = vpop.f32.mrf.mxu0
    %v3562 = vpop.f32.mrf.mxu0
    %v3563 = vadd.f32 %v3466, %v3562
    %v3564 = vpop.f32.mrf.mxu0
    %3565 = vmatprep.mubr.bf16.mxu0 0
    %3566 = vmatmul.mubr.bf16.gmra.mxu0 %v3274
    %v3567 = vpop.f32.mrf.mxu0
    %v3568 = vadd.f32 %v3471, %v3567
    %v3569 = vpop.f32.mrf.mxu0
    %v3570 = vpop.f32.mrf.mxu0
    %v3571 = vadd.f32 %v3474, %v3570
    %v3572 = vpop.f32.mrf.mxu0
    %3573 = vdwg.mxu0
    %s3574 = scalar_lea.vmem %s21, 32
    %v3575 = vld [vmem:[%s3574] sm:$0xf]
    %v3576 = vld [vmem:[%s3574 + $0x4] sm:$0xf]
    %v3577 = vld [vmem:[%s3574 + $0x8] sm:$0xf]
    %v3578 = vld [vmem:[%s3574 + $0xc] sm:$0xf]
    %v3583 = vunpack.c.l.b16 %v3575
    %v3584 = vunpack.c.l.b16 %v3576
    %v3585 = vunpack.c.l.b16 %v3577
    %v3586 = vunpack.c.l.b16 %v3578
    %v3587 = vpack.c.b16 %v3584, %v3583
    %v3588 = vpack.c.b16 %v3586, %v3585
    %v3590 = vsel %vm652, %v3587, 0
    %v3593 = vsel %vm652, %v3588, 0
    %3595 = vmatprep.subr.bf16.mxu0 0
    %3596 = vmatpush1.bf16.msra.mxu0 0
    %3597 = vmatprep.subr.bf16.mxu0 0
    %3598 = vmatpush1.bf16.msra.mxu0 0
    %3599 = vmatprep.subr.bf16.mxu0 0
    %3600 = vmatpush1.bf16.msra.mxu0 0
    %3601 = vmatprep.subr.bf16.mxu0 0
    %3602 = vmatpush1.bf16.msra.mxu0 0
    %3603 = vmatprep.subr.bf16.mxu0 0
    %3604 = vmatpush1.bf16.msra.mxu0 0
    %3605 = vmatprep.subr.bf16.mxu0 0
    %3606 = vmatpush1.bf16.msra.mxu0 0
    %3607 = vmatprep.subr.bf16.mxu0 0
    %3608 = vmatpush1.bf16.msra.mxu0 0
    %3609 = vmatprep.subr.bf16.mxu0 0
    %3610 = vmatpush1.bf16.msra.mxu0 %v3203
    %3611 = vmatprep.subr.bf16.mxu0 0
    %3612 = vmatpush2.bf16.msra.mxu0 0
    %3613 = vmatprep.subr.bf16.mxu0 0
    %3614 = vmatpush2.bf16.msra.mxu0 0
    %3615 = vmatprep.subr.bf16.mxu0 0
    %3616 = vmatpush2.bf16.msra.mxu0 0
    %3617 = vmatprep.subr.bf16.mxu0 0
    %3618 = vmatpush2.bf16.msra.mxu0 0
    %3619 = vmatprep.subr.bf16.mxu0 0
    %3620 = vmatpush2.bf16.msra.mxu0 0
    %3621 = vmatprep.subr.bf16.mxu0 0
    %3622 = vmatpush2.bf16.msra.mxu0 0
    %3623 = vmatprep.subr.bf16.mxu0 0
    %3624 = vmatpush2.bf16.msra.mxu0 0
    %3625 = vmatprep.subr.bf16.mxu0 0
    %3626 = vmatpush2.bf16.msra.mxu0 0
    %3627 = vmatprep.mubr.bf16.mxu0 0
    %3628 = vmatmul.mubr.bf16.gmra.mxu0 %v3590
    %v3629 = vpop.f32.mrf.mxu0
    %v3630 = vadd.f32 0.0, %v3629
    %v3631 = vpop.f32.mrf.mxu0
    %v3632 = vpop.f32.mrf.mxu0
    %v3633 = vadd.f32 0.0, %v3632
    %v3634 = vpop.f32.mrf.mxu0
    %3635 = vmatprep.mubr.bf16.mxu0 0
    %3636 = vmatmul.mubr.bf16.gmra.mxu0 %v3593
    %v3637 = vpop.f32.mrf.mxu0
    %v3638 = vadd.f32 0.0, %v3637
    %v3639 = vpop.f32.mrf.mxu0
    %v3640 = vpop.f32.mrf.mxu0
    %v3641 = vadd.f32 0.0, %v3640
    %v3642 = vpop.f32.mrf.mxu0
    %3643 = vdwg.mxu0
    %v3644 = vpack.c.bf16 %v3633, %v3630
    %v3645 = vpack.c.bf16 %v3641, %v3638
    %s3646 = scalar_lea.vmem %s22, 128
    %v3647 = vld [vmem:[%s3646] sm:$0xf]
    %v3648 = vld [vmem:[%s3646 + $0x4] sm:$0xf]
    %v3649 = vld [vmem:[%s3646 + $0x8] sm:$0xf]
    %v3650 = vld [vmem:[%s3646 + $0xc] sm:$0xf]
    %v3651 = vld [vmem:[%s3646 + $0x10] sm:$0xf]
    %v3652 = vld [vmem:[%s3646 + $0x14] sm:$0xf]
    %v3653 = vld [vmem:[%s3646 + $0x18] sm:$0xf]
    %v3654 = vld [vmem:[%s3646 + $0x1c] sm:$0xf]
    %v3655 = vld [vmem:[%s3646 + $0x20] sm:$0xf]
    %v3656 = vld [vmem:[%s3646 + $0x24] sm:$0xf]
    %v3657 = vld [vmem:[%s3646 + $0x28] sm:$0xf]
    %v3658 = vld [vmem:[%s3646 + $0x2c] sm:$0xf]
    %v3659 = vld [vmem:[%s3646 + $0x30] sm:$0xf]
    %v3660 = vld [vmem:[%s3646 + $0x34] sm:$0xf]
    %v3661 = vld [vmem:[%s3646 + $0x38] sm:$0xf]
    %v3662 = vld [vmem:[%s3646 + $0x3c] sm:$0xf]
    %v3679 = vunpack.c.l.b16 %v3647
    %v3680 = vunpack.c.l.b16 %v3648
    %v3681 = vunpack.c.l.b16 %v3649
    %v3682 = vunpack.c.l.b16 %v3650
    %v3683 = vunpack.c.l.b16 %v3651
    %v3684 = vunpack.c.l.b16 %v3652
    %v3685 = vunpack.c.l.b16 %v3653
    %v3686 = vunpack.c.l.b16 %v3654
    %v3687 = vunpack.c.l.b16 %v3655
    %v3688 = vunpack.c.l.b16 %v3656
    %v3689 = vunpack.c.l.b16 %v3657
    %v3690 = vunpack.c.l.b16 %v3658
    %v3691 = vunpack.c.l.b16 %v3659
    %v3692 = vunpack.c.l.b16 %v3660
    %v3693 = vunpack.c.l.b16 %v3661
    %v3694 = vunpack.c.l.b16 %v3662
    %v3695 = vpack.c.b16 %v3680, %v3679
    %v3696 = vpack.c.b16 %v3682, %v3681
    %v3697 = vpack.c.b16 %v3684, %v3683
    %v3698 = vpack.c.b16 %v3686, %v3685
    %v3699 = vpack.c.b16 %v3688, %v3687
    %v3700 = vpack.c.b16 %v3690, %v3689
    %v3701 = vpack.c.b16 %v3692, %v3691
    %v3702 = vpack.c.b16 %v3694, %v3693
    %3711 = vmatprep.subr.bf16.mxu0 0
    %3712 = vmatpush1.bf16.msra.mxu0 %v3702
    %3713 = vmatprep.subr.bf16.mxu0 0
    %3714 = vmatpush1.bf16.msra.mxu0 %v3701
    %3715 = vmatprep.subr.bf16.mxu0 0
    %3716 = vmatpush1.bf16.msra.mxu0 %v3700
    %3717 = vmatprep.subr.bf16.mxu0 0
    %3718 = vmatpush1.bf16.msra.mxu0 %v3699
    %3719 = vmatprep.subr.bf16.mxu0 0
    %3720 = vmatpush1.bf16.msra.mxu0 %v3698
    %3721 = vmatprep.subr.bf16.mxu0 0
    %3722 = vmatpush1.bf16.msra.mxu0 %v3697
    %3723 = vmatprep.subr.bf16.mxu0 0
    %3724 = vmatpush1.bf16.msra.mxu0 %v3696
    %3725 = vmatprep.subr.bf16.mxu0 0
    %3726 = vmatpush1.bf16.msra.mxu0 %v3695
    %3727 = vmatprep.subr.bf16.mxu0 0
    %3728 = vmatpush2.bf16.msra.mxu0 0
    %3729 = vmatprep.subr.bf16.mxu0 0
    %3730 = vmatpush2.bf16.msra.mxu0 0
    %3731 = vmatprep.subr.bf16.mxu0 0
    %3732 = vmatpush2.bf16.msra.mxu0 0
    %3733 = vmatprep.subr.bf16.mxu0 0
    %3734 = vmatpush2.bf16.msra.mxu0 0
    %3735 = vmatprep.subr.bf16.mxu0 0
    %3736 = vmatpush2.bf16.msra.mxu0 0
    %3737 = vmatprep.subr.bf16.mxu0 0
    %3738 = vmatpush2.bf16.msra.mxu0 0
    %3739 = vmatprep.subr.bf16.mxu0 0
    %3740 = vmatpush2.bf16.msra.mxu0 0
    %3741 = vmatprep.subr.bf16.mxu0 0
    %3742 = vmatpush2.bf16.msra.mxu0 0
    %3743 = vmatprep.mubr.bf16.mxu0 0
    %3744 = vmatmul.mubr.bf16.gmra.mxu0 %v3644
    %v3745 = vpop.f32.mrf.mxu0
    %v3746 = vadd.f32 0.0, %v3745
    %v3747 = vpop.f32.mrf.mxu0
    %v3748 = vpop.f32.mrf.mxu0
    %v3749 = vadd.f32 0.0, %v3748
    %v3750 = vpop.f32.mrf.mxu0
    %3751 = vmatprep.mubr.bf16.mxu0 0
    %3752 = vmatmul.mubr.bf16.gmra.mxu0 %v3645
    %v3753 = vpop.f32.mrf.mxu0
    %v3754 = vadd.f32 0.0, %v3753
    %v3755 = vpop.f32.mrf.mxu0
    %v3756 = vpop.f32.mrf.mxu0
    %v3757 = vadd.f32 0.0, %v3756
    %v3758 = vpop.f32.mrf.mxu0
    %3759 = vdwg.mxu0
    %v3760 = vadd.f32 %v3560, %v3746
    %v3761 = vadd.f32 %v3563, %v3749
    %v3762 = vadd.f32 %v3568, %v3754
    %v3763 = vadd.f32 %v3571, %v3757
    %s3764 = scalar_lea.vmem %s21, 48
    %v3765 = vld [vmem:[%s3764] sm:$0xf]
    %v3766 = vld [vmem:[%s3764 + $0x4] sm:$0xf]
    %v3767 = vld [vmem:[%s3764 + $0x8] sm:$0xf]
    %v3768 = vld [vmem:[%s3764 + $0xc] sm:$0xf]
    %v3773 = vunpack.c.l.b16 %v3765
    %v3774 = vunpack.c.l.b16 %v3766
    %v3775 = vunpack.c.l.b16 %v3767
    %v3776 = vunpack.c.l.b16 %v3768
    %v3777 = vpack.c.b16 %v3774, %v3773
    %v3778 = vpack.c.b16 %v3776, %v3775
    %v3780 = vsel %vm652, %v3777, 0
    %v3783 = vsel %vm652, %v3778, 0
    %3785 = vmatprep.subr.bf16.mxu0 0
    %3786 = vmatpush1.bf16.msra.mxu0 0
    %3787 = vmatprep.subr.bf16.mxu0 0
    %3788 = vmatpush1.bf16.msra.mxu0 0
    %3789 = vmatprep.subr.bf16.mxu0 0
    %3790 = vmatpush1.bf16.msra.mxu0 0
    %3791 = vmatprep.subr.bf16.mxu0 0
    %3792 = vmatpush1.bf16.msra.mxu0 0
    %3793 = vmatprep.subr.bf16.mxu0 0
    %3794 = vmatpush1.bf16.msra.mxu0 0
    %3795 = vmatprep.subr.bf16.mxu0 0
    %3796 = vmatpush1.bf16.msra.mxu0 0
    %3797 = vmatprep.subr.bf16.mxu0 0
    %3798 = vmatpush1.bf16.msra.mxu0 0
    %3799 = vmatprep.subr.bf16.mxu0 0
    %3800 = vmatpush1.bf16.msra.mxu0 %v3203
    %3801 = vmatprep.subr.bf16.mxu0 0
    %3802 = vmatpush2.bf16.msra.mxu0 0
    %3803 = vmatprep.subr.bf16.mxu0 0
    %3804 = vmatpush2.bf16.msra.mxu0 0
    %3805 = vmatprep.subr.bf16.mxu0 0
    %3806 = vmatpush2.bf16.msra.mxu0 0
    %3807 = vmatprep.subr.bf16.mxu0 0
    %3808 = vmatpush2.bf16.msra.mxu0 0
    %3809 = vmatprep.subr.bf16.mxu0 0
    %3810 = vmatpush2.bf16.msra.mxu0 0
    %3811 = vmatprep.subr.bf16.mxu0 0
    %3812 = vmatpush2.bf16.msra.mxu0 0
    %3813 = vmatprep.subr.bf16.mxu0 0
    %3814 = vmatpush2.bf16.msra.mxu0 0
    %3815 = vmatprep.subr.bf16.mxu0 0
    %3816 = vmatpush2.bf16.msra.mxu0 0
    %3817 = vmatprep.mubr.bf16.mxu0 0
    %3818 = vmatmul.mubr.bf16.gmra.mxu0 %v3780
    %v3819 = vpop.f32.mrf.mxu0
    %v3820 = vadd.f32 0.0, %v3819
    %v3821 = vpop.f32.mrf.mxu0
    %v3822 = vpop.f32.mrf.mxu0
    %v3823 = vadd.f32 0.0, %v3822
    %v3824 = vpop.f32.mrf.mxu0
    %3825 = vmatprep.mubr.bf16.mxu0 0
    %3826 = vmatmul.mubr.bf16.gmra.mxu0 %v3783
    %v3827 = vpop.f32.mrf.mxu0
    %v3828 = vadd.f32 0.0, %v3827
    %v3829 = vpop.f32.mrf.mxu0
    %v3830 = vpop.f32.mrf.mxu0
    %v3831 = vadd.f32 0.0, %v3830
    %v3832 = vpop.f32.mrf.mxu0
    %3833 = vdwg.mxu0
    %v3834 = vpack.c.bf16 %v3823, %v3820
    %v3835 = vpack.c.bf16 %v3831, %v3828
    %s3836 = scalar_lea.vmem %s22, 192
    %v3837 = vld [vmem:[%s3836] sm:$0xf]
    %v3838 = vld [vmem:[%s3836 + $0x4] sm:$0xf]
    %v3839 = vld [vmem:[%s3836 + $0x8] sm:$0xf]
    %v3840 = vld [vmem:[%s3836 + $0xc] sm:$0xf]
    %v3841 = vld [vmem:[%s3836 + $0x10] sm:$0xf]
    %v3842 = vld [vmem:[%s3836 + $0x14] sm:$0xf]
    %v3843 = vld [vmem:[%s3836 + $0x18] sm:$0xf]
    %v3844 = vld [vmem:[%s3836 + $0x1c] sm:$0xf]
    %v3845 = vld [vmem:[%s3836 + $0x20] sm:$0xf]
    %v3846 = vld [vmem:[%s3836 + $0x24] sm:$0xf]
    %v3847 = vld [vmem:[%s3836 + $0x28] sm:$0xf]
    %v3848 = vld [vmem:[%s3836 + $0x2c] sm:$0xf]
    %v3849 = vld [vmem:[%s3836 + $0x30] sm:$0xf]
    %v3850 = vld [vmem:[%s3836 + $0x34] sm:$0xf]
    %v3851 = vld [vmem:[%s3836 + $0x38] sm:$0xf]
    %v3852 = vld [vmem:[%s3836 + $0x3c] sm:$0xf]
    %v3869 = vunpack.c.l.b16 %v3837
    %v3870 = vunpack.c.l.b16 %v3838
    %v3871 = vunpack.c.l.b16 %v3839
    %v3872 = vunpack.c.l.b16 %v3840
    %v3873 = vunpack.c.l.b16 %v3841
    %v3874 = vunpack.c.l.b16 %v3842
    %v3875 = vunpack.c.l.b16 %v3843
    %v3876 = vunpack.c.l.b16 %v3844
    %v3877 = vunpack.c.l.b16 %v3845
    %v3878 = vunpack.c.l.b16 %v3846
    %v3879 = vunpack.c.l.b16 %v3847
    %v3880 = vunpack.c.l.b16 %v3848
    %v3881 = vunpack.c.l.b16 %v3849
    %v3882 = vunpack.c.l.b16 %v3850
    %v3883 = vunpack.c.l.b16 %v3851
    %v3884 = vunpack.c.l.b16 %v3852
    %v3885 = vpack.c.b16 %v3870, %v3869
    %v3886 = vpack.c.b16 %v3872, %v3871
    %v3887 = vpack.c.b16 %v3874, %v3873
    %v3888 = vpack.c.b16 %v3876, %v3875
    %v3889 = vpack.c.b16 %v3878, %v3877
    %v3890 = vpack.c.b16 %v3880, %v3879
    %v3891 = vpack.c.b16 %v3882, %v3881
    %v3892 = vpack.c.b16 %v3884, %v3883
    %3901 = vmatprep.subr.bf16.mxu0 0
    %3902 = vmatpush1.bf16.msra.mxu0 %v3892
    %3903 = vmatprep.subr.bf16.mxu0 0
    %3904 = vmatpush1.bf16.msra.mxu0 %v3891
    %3905 = vmatprep.subr.bf16.mxu0 0
    %3906 = vmatpush1.bf16.msra.mxu0 %v3890
    %3907 = vmatprep.subr.bf16.mxu0 0
    %3908 = vmatpush1.bf16.msra.mxu0 %v3889
    %3909 = vmatprep.subr.bf16.mxu0 0
    %3910 = vmatpush1.bf16.msra.mxu0 %v3888
    %3911 = vmatprep.subr.bf16.mxu0 0
    %3912 = vmatpush1.bf16.msra.mxu0 %v3887
    %3913 = vmatprep.subr.bf16.mxu0 0
    %3914 = vmatpush1.bf16.msra.mxu0 %v3886
    %3915 = vmatprep.subr.bf16.mxu0 0
    %3916 = vmatpush1.bf16.msra.mxu0 %v3885
    %3917 = vmatprep.subr.bf16.mxu0 0
    %3918 = vmatpush2.bf16.msra.mxu0 0
    %3919 = vmatprep.subr.bf16.mxu0 0
    %3920 = vmatpush2.bf16.msra.mxu0 0
    %3921 = vmatprep.subr.bf16.mxu0 0
    %3922 = vmatpush2.bf16.msra.mxu0 0
    %3923 = vmatprep.subr.bf16.mxu0 0
    %3924 = vmatpush2.bf16.msra.mxu0 0
    %3925 = vmatprep.subr.bf16.mxu0 0
    %3926 = vmatpush2.bf16.msra.mxu0 0
    %3927 = vmatprep.subr.bf16.mxu0 0
    %3928 = vmatpush2.bf16.msra.mxu0 0
    %3929 = vmatprep.subr.bf16.mxu0 0
    %3930 = vmatpush2.bf16.msra.mxu0 0
    %3931 = vmatprep.subr.bf16.mxu0 0
    %3932 = vmatpush2.bf16.msra.mxu0 0
    %3933 = vmatprep.mubr.bf16.mxu0 0
    %3934 = vmatmul.mubr.bf16.gmra.mxu0 %v3834
    %v3935 = vpop.f32.mrf.mxu0
    %v3936 = vadd.f32 0.0, %v3935
    %v3937 = vpop.f32.mrf.mxu0
    %v3938 = vpop.f32.mrf.mxu0
    %v3939 = vadd.f32 0.0, %v3938
    %v3940 = vpop.f32.mrf.mxu0
    %3941 = vmatprep.mubr.bf16.mxu0 0
    %3942 = vmatmul.mubr.bf16.gmra.mxu0 %v3835
    %v3943 = vpop.f32.mrf.mxu0
    %v3944 = vadd.f32 0.0, %v3943
    %v3945 = vpop.f32.mrf.mxu0
    %v3946 = vpop.f32.mrf.mxu0
    %v3947 = vadd.f32 0.0, %v3946
    %v3948 = vpop.f32.mrf.mxu0
    %3949 = vdwg.mxu0
    %v3950 = vadd.f32 %v3760, %v3936
    %v3951 = vadd.f32 %v3761, %v3939
    %v3952 = vadd.f32 %v3762, %v3944
    %v3953 = vadd.f32 %v3763, %v3947
    %v3954 = vld [vmem:[%s23] sm:$0x1]
    %v3956 = vlaneseq
    %v3957 = vshrl.u32 %v3956, 7
    %v3958 = vsub.s32 0, %v3957
    %v3959 = vrot.slane %v3954, %v3958
    %v3961 = vadd.f32 %v3950, %v3959
    %v3962 = vadd.f32 %v3951, %v3959
    %v3963 = vadd.f32 %v3952, %v3959
    %v3964 = vadd.f32 %v3953, %v3959
    %v3965 = vsub.f32 0.0, %v3961
    %v3966 = vsub.f32 0.0, %v3962
    %v3967 = vsub.f32 0.0, %v3963
    %v3968 = vsub.f32 0.0, %v3964
    %v3969 = vmul.f32 %v3965, 1.442695
    %v3970 = vpow.pop %v3969
    %v3971 = vmul.f32 %v3966, 1.442695
    %v3972 = vpow.pop %v3971
    %v3973 = vmul.f32 %v3967, 1.442695
    %v3974 = vpow.pop %v3973
    %v3975 = vmul.f32 %v3968, 1.442695
    %v3976 = vpow.pop %v3975
    %v3977 = vadd.f32 %v3970, 1.0
    %v3978 = vadd.f32 %v3972, 1.0
    %v3979 = vadd.f32 %v3974, 1.0
    %v3980 = vadd.f32 %v3976, 1.0
    %v3981 = vrcp.pop %v3977
    %v3982 = vrcp.pop %v3978
    %v3983 = vrcp.pop %v3979
    %v3984 = vrcp.pop %v3980
    %3985 = vst.msk [vmem:[%s24] sm:$0xff] %vm390, %v3981
    %3986 = vst.msk [vmem:[%s24 + $0x8] sm:$0xff] %vm390, %v3982
    %3987 = vst.msk [vmem:[%s24 + $0x10] sm:$0xff] %vm390, %v3983
    %3988 = vst.msk [vmem:[%s24 + $0x18] sm:$0xff] %vm390, %v3984
    // Predicated region
    $region146: #{fwd.1} parent=1 // pred_check
      _
    $region147: #{fwd.1} parent=1 // pred_check_branch
      %3990 = sbr.rel (0) target = $region149
    $region148: #{fwd.1} parent=1 // pred_region
      _
    $region149: #{fwd.1} parent=1 // pred_fallthru
      _
    // Predicated region
    $region150: #{fwd.1} parent=1 // pred_check
      _
    $region151: #{fwd.1} parent=1 // pred_check_branch
      %3992 = sbr.rel (0) target = $region153
    $region152: #{fwd.1} parent=1 // pred_region
      _
    $region153: #{fwd.1} parent=1 // pred_fallthru
      _
    %3993 = vsyncpa [#allocation3], 1
    %3994 = vsyncpa [#allocation5], 1
    %3995 = vsyncpa [#allocation8], 1
    %3996 = vsyncpa [#allocation11], 1
    %3997 = vsyncpa [#allocation14], 1
    %3998 = vsyncpa [#allocation17], 1
    %3999 = vsyncpa [#allocation20], 1

</llo_original>
